<compile_context>
chip_gen: v7x
topology: tpu7x:2x2x1
jax: 0.10.0
libtpu: 0.0.40
codegen_flags: <defaults>
</compile_context>

<pallas_src>
import math

import jax
import jax.numpy as jnp
from jax.experimental import pallas as pl
from jax.experimental.pallas import tpu as pltpu


def _round_up(x, m):
    return (x + m - 1) // m * m


# Safe on v5e (128 MiB phys), v6e (128 MiB) and v7x (64 MiB phys / 32 MiB scoped).
VMEM_LIMIT_BYTES = 32 * 1024 * 1024


# ---------------------------------------------------------------------------
# Pallas kernel: fused x @ w + b -> ReLU   (conv-as-matmul path)
# Grid: (M tiles,).  x tile (tm, Kp) bf16, w (Kp, 128) bf16 resident, out bf16.
# ---------------------------------------------------------------------------
def _conv_mm_kernel(x_ref, w_ref, b_ref, o_ref):
    acc = jnp.dot(x_ref[...], w_ref[...], preferred_element_type=jnp.float32)
    acc = jnp.maximum(acc + b_ref[...], 0.0)
    o_ref[...] = acc.astype(o_ref.dtype)


def conv_matmul(x, w, b, n_out, tm_max=512):
    """ReLU(x @ w + b) with pre-padded bf16 weights. x:(M,K) -> (M, n_out) bf16."""
    M, K = x.shape
    Kp, Np = w.shape
    Mp = _round_up(M, 8)
    if Mp > tm_max:
        tm = tm_max
        Mp = _round_up(M, tm)
    else:
        tm = Mp
    xp = jnp.pad(x.astype(jnp.bfloat16), ((0, Mp - M), (0, Kp - K)))
    out = pl.pallas_call(
        _conv_mm_kernel,
        out_shape=jax.ShapeDtypeStruct((Mp, Np), jnp.bfloat16),
        grid=(Mp // tm,),
        in_specs=[
            pl.BlockSpec((tm, Kp), lambda i: (i, 0)),
            pl.BlockSpec((Kp, Np), lambda i: (0, 0)),
            pl.BlockSpec((1, Np), lambda i: (0, 0)),
        ],
        out_specs=pl.BlockSpec((tm, Np), lambda i: (i, 0)),
        compiler_params=pltpu.CompilerParams(
            dimension_semantics=("parallel",),
            vmem_limit_bytes=VMEM_LIMIT_BYTES),
    )(xp, w, b)
    return out[:M, :n_out]


# ---------------------------------------------------------------------------
# Pallas kernel: fused Linear(1568->512)+ReLU and critic Linear(512->1).
# Grid: (M tiles, K tiles). f32 VMEM accumulator, init/finalize via pl.when.
# The critic is computed as an epilogue on the finished hidden tile.
# ---------------------------------------------------------------------------
def _fc_critic_kernel(x_ref, wf_ref, bf_ref, wc_ref, bc_ref,
                      h_ref, c_ref, acc_ref):
    k = pl.program_id(1)

    @pl.when(k == 0)
    def _():
        acc_ref[...] = jnp.zeros_like(acc_ref)

    acc_ref[...] += jnp.dot(x_ref[...], wf_ref[...],
                            preferred_element_type=jnp.float32)

    @pl.when(k == pl.num_programs(1) - 1)
    def _():
        h = jnp.maximum(acc_ref[...] + bf_ref[...], 0.0)
        h_ref[...] = h.astype(h_ref.dtype)
        c_ref[...] = (jnp.dot(h, wc_ref[...],
                              preferred_element_type=jnp.float32)
                      + bc_ref[...]).astype(c_ref.dtype)


def fc_critic_head(x, w_fc, b_fc, w_c, b_c, n_hidden, tm_max=512):
    """Returns (hidden (M,n_hidden) f32, critic (M,1) f32)."""
    M, K = x.shape
    Kp, Hp = w_fc.shape
    tk = min(512, Kp)
    assert Kp % tk == 0
    nk = Kp // tk
    Mp = _round_up(M, 8)
    if Mp > tm_max:
        tm = tm_max
        Mp = _round_up(M, tm)
    else:
        tm = Mp
    xp = jnp.pad(x.astype(jnp.bfloat16), ((0, Mp - M), (0, Kp - K)))
    hidden, critic = pl.pallas_call(
        _fc_critic_kernel,
        out_shape=(jax.ShapeDtypeStruct((Mp, Hp), jnp.float32),
                   jax.ShapeDtypeStruct((Mp, 128), jnp.float32)),
        grid=(Mp // tm, nk),
        in_specs=[
            pl.BlockSpec((tm, tk), lambda i, k: (i, k)),
            pl.BlockSpec((tk, Hp), lambda i, k: (k, 0)),
            pl.BlockSpec((1, Hp), lambda i, k: (0, 0)),
            pl.BlockSpec((Hp, 128), lambda i, k: (0, 0)),
            pl.BlockSpec((1, 128), lambda i, k: (0, 0)),
        ],
        out_specs=(
            pl.BlockSpec((tm, Hp), lambda i, k: (i, 0)),
            pl.BlockSpec((tm, 128), lambda i, k: (i, 0)),
        ),
        scratch_shapes=[pltpu.VMEM((tm, Hp), jnp.float32)],
        compiler_params=pltpu.CompilerParams(
            dimension_semantics=("parallel", "arbitrary"),
            vmem_limit_bytes=VMEM_LIMIT_BYTES),
    )(xp, w_fc, b_fc, w_c, b_c)
    return hidden[:M, :n_hidden], critic[:M, :1]


# ---------------------------------------------------------------------------
# im2col glue (plain JAX): extract conv patches from an NHWC tensor (bf16).
# Patch feature ordering is [kh, kw, in_channel] (matches weight layout below).
# ---------------------------------------------------------------------------
def im2col(x_nhwc, kh, kw, stride):
    B, H, W, C = x_nhwc.shape
    OH = (H - kh) // stride + 1
    OW = (W - kw) // stride + 1
    cols = []
    for i in range(kh):
        for j in range(kw):
            cols.append(x_nhwc[:, i:i + stride * OH:stride,
                               j:j + stride * OW:stride, :])
    p = jnp.stack(cols, axis=3)            # (B, OH, OW, kh*kw, C)
    return p.reshape(B * OH * OW, kh * kw * C), (OH, OW)


# ---------------------------------------------------------------------------
# Parameter init (orthogonal / relu gain trunk, gain=1 critic, zero biases).
# Weights are stored pre-padded to TPU tiles, in bf16, with the 1/255 scale
# folded into w1 and w_fc rows permuted to the NHWC-flatten order.
# Conv weights live directly in im2col layout (kh*kw*in, out); a PyTorch
# (O,I,kh,kw) conv weight would map via transpose(2,3,1,0).reshape(K, O).
# ---------------------------------------------------------------------------
def init_params(key, num_inputs, hidden_size=512):
    ks = jax.random.split(key, 5)
    gain_relu = math.sqrt(2.0)
    ortho = lambda g: jax.nn.initializers.orthogonal(scale=g)

    def pad_mat(m, kp, np_):
        k, n = m.shape
        return jnp.pad(m, ((0, kp - k), (0, np_ - n)))

    k1 = num_inputs * 8 * 8
    w1 = ortho(gain_relu)(ks[0], (k1, 32), jnp.float32) * (1.0 / 255.0)  # /255 folded
    w2 = ortho(gain_relu)(ks[1], (32 * 4 * 4, 64), jnp.float32)
    w3 = ortho(gain_relu)(ks[2], (64 * 3 * 3, 32), jnp.float32)

    # fc weight generated in PyTorch (C,H,W)-flatten row order, then permuted
    # so that row r corresponds to the NHWC-flatten index r (h*7*32 + w*32 + c).
    k_fc = 32 * 7 * 7
    w_fc = ortho(gain_relu)(ks[3], (k_fc, hidden_size), jnp.float32)
    idx = jnp.arange(k_fc)
    h_i = idx // (7 * 32)
    w_i = (idx // 32) % 7
    c_i = idx % 32
    w_fc = w_fc[c_i * 49 + h_i * 7 + w_i]

    w_cr = ortho(1.0)(ks[4], (hidden_size, 1), jnp.float32)

    hp = _round_up(hidden_size, 128)
    kp_fc = _round_up(k_fc, 128)
    if kp_fc > 512:                      # K-tiled in 512-wide chunks in the kernel
        kp_fc = _round_up(kp_fc, 512)

    return {
        "w1": pad_mat(w1, _round_up(k1, 128), 128).astype(jnp.bfloat16),
        "b1": jnp.zeros((1, 128), jnp.float32),
        "w2": pad_mat(w2, 512, 128).astype(jnp.bfloat16),
        "b2": jnp.zeros((1, 128), jnp.float32),
        "w3": pad_mat(w3, _round_up(576, 128), 128).astype(jnp.bfloat16),
        "b3": jnp.zeros((1, 128), jnp.float32),
        "w_fc": pad_mat(w_fc, kp_fc, hp).astype(jnp.bfloat16),
        "b_fc": jnp.zeros((1, hp), jnp.float32),
        "w_critic": pad_mat(w_cr, hp, 128).astype(jnp.float32),
        "b_critic": jnp.zeros((1, 128), jnp.float32),
    }


# ---------------------------------------------------------------------------
# CNNBase.forward: returns (critic_linear(x), x, rnn_hxs).
# recurrent=False (default), so rnn_hxs / masks pass straight through.
# ---------------------------------------------------------------------------
def cnn_base_forward(params, inputs_nchw, rnn_hxs, masks, hidden_size=512):
    x = jnp.transpose(inputs_nchw, (0, 2, 3, 1)).astype(jnp.bfloat16)   # NCHW -> NHWC
    B = x.shape[0]

    # Conv1: 8x8 stride 4 + ReLU (the 1/255 scale is already baked into w1).
    # TODO(synk): conv1's im2col patches are still materialized by XLA in HBM
    # (the strided patch gather has no clean BlockSpec form); done in bf16 to
    # halve the traffic.
    p, (OH, OW) = im2col(x, 8, 8, 4)
    x = conv_matmul(p, params["w1"], params["b1"], 32).reshape(B, OH, OW, 32)

    # Conv2: 4x4 stride 2 + ReLU.
    p, (OH, OW) = im2col(x, 4, 4, 2)
    x = conv_matmul(p, params["w2"], params["b2"], 64).reshape(B, OH, OW, 64)

    # Conv3: 3x3 stride 1 + ReLU.
    p, (OH, OW) = im2col(x, 3, 3, 1)
    x = conv_matmul(p, params["w3"], params["b3"], 32).reshape(B, OH, OW, 32)

    # Flatten directly in NHWC order (w_fc rows were permuted at init), then
    # fused fc+ReLU and critic head in one Pallas kernel.
    feat = x.reshape(B, -1)
    hidden, critic = fc_critic_head(feat, params["w_fc"], params["b_fc"],
                                    params["w_critic"], params["b_critic"],
                                    n_hidden=hidden_size)

    # Not recurrent: rnn_hxs unchanged, masks unused.
    return critic, hidden, rnn_hxs


if __name__ == "__main__":
    key = jax.random.PRNGKey(0)
    num_inputs = 4
    batch = 2
    hidden = 512

    kp, kx = jax.random.split(key)
    params = init_params(kp, num_inputs, hidden)

    # Spatial 84x84 is implied by the 32*7*7 flatten in the module.
    inputs = jax.random.uniform(kx, (batch, num_inputs, 84, 84),
                                jnp.float32, minval=0.0, maxval=255.0)
    rnn_hxs = jnp.zeros((batch, 1), jnp.float32)   # recurrent_hidden_state_size == 1
    masks = jnp.ones((batch, 1), jnp.float32)

    fwd = jax.jit(cnn_base_forward)
    critic, feat, hxs = fwd(params, inputs, rnn_hxs, masks)
    jax.block_until_ready((critic, feat, hxs))

    assert critic.shape == (batch, 1)
    assert feat.shape == (batch, hidden)
    assert hxs.shape == rnn_hxs.shape
    assert bool(jnp.all(jnp.isfinite(critic)))
    assert bool(jnp.all(feat >= 0.0))              # ReLU output
    print("KERNEL_OK")
</pallas_src>

<mosaic_0001>
module attributes {stable_mosaic.version = 11 : i64} {
  func.func @_conv_mm_kernel(%arg0: i32, %arg1: memref<512x256xbf16, #tpu.memory_space<vmem>>, %arg2: memref<256x128xbf16, #tpu.memory_space<vmem>>, %arg3: memref<1x128xf32, #tpu.memory_space<vmem>>, %arg4: memref<512x128xbf16, #tpu.memory_space<vmem>>) attributes {dimension_semantics = [#tpu.dimension_semantics<parallel>], iteration_bounds = array<i64: 2>, scalar_prefetch = 0 : i64, scratch_operands = 0 : i64, tpu.core_type = #tpu.core_type<tc>, window_params = [{transform_indices = @transform_0, window_bounds = array<i64: 512, 256>}, {pipeline_mode = #tpu.pipeline_mode<synchronous>, transform_indices = @transform_1, window_bounds = array<i64: 256, 128>}, {pipeline_mode = #tpu.pipeline_mode<synchronous>, transform_indices = @transform_2, window_bounds = array<i64: 1, 128>}, {transform_indices = @transform_3, window_bounds = array<i64: 512, 128>}]} {
    %c0 = arith.constant 0 : index
    %c0_0 = arith.constant 0 : index
    %0 = vector.load %arg1[%c0, %c0_0] : memref<512x256xbf16, #tpu.memory_space<vmem>>, vector<512x256xbf16>
    %c0_1 = arith.constant 0 : index
    %c0_2 = arith.constant 0 : index
    %1 = vector.load %arg2[%c0_1, %c0_2] : memref<256x128xbf16, #tpu.memory_space<vmem>>, vector<256x128xbf16>
    %cst = arith.constant dense<0.000000e+00> : vector<512x128xf32>
    %2 = tpu.matmul %0, %1, %cst {dimension_numbers = #tpu.dot_dimension_numbers<[1], [0], [0], [1], [0, 0, 1, 1], [], []>} : vector<512x256xbf16>, vector<256x128xbf16>, vector<512x128xf32> -> vector<512x128xf32>
    %c0_3 = arith.constant 0 : index
    %c0_4 = arith.constant 0 : index
    %3 = vector.load %arg3[%c0_3, %c0_4] : memref<1x128xf32, #tpu.memory_space<vmem>>, vector<1x128xf32>
    %4 = vector.broadcast %3 : vector<1x128xf32> to vector<512x128xf32>
    %5 = arith.addf %2, %4 : vector<512x128xf32>
    %cst_5 = arith.constant 0.000000e+00 : f32
    %6 = vector.broadcast %cst_5 : f32 to vector<512x128xf32>
    %7 = arith.maximumf %5, %6 : vector<512x128xf32>
    %8 = arith.truncf %7 : vector<512x128xf32> to vector<512x128xbf16>
    %c0_6 = arith.constant 0 : index
    %c0_7 = arith.constant 0 : index
    %9 = vector.load %arg4[%c0_6, %c0_7] : memref<512x128xbf16, #tpu.memory_space<vmem>>, vector<512x128xbf16>
    tpu.vector_store %arg4[%c0_6, %c0_7], %8 {strides = array<i32>} : memref<512x128xbf16, #tpu.memory_space<vmem>>, vector<512x128xbf16>,
    return
  }
  func.func @transform_0(%arg0: i32) -> (i32, i32) {
    %c0_i32 = arith.constant 0 : i32
    %c0_i32_0 = arith.constant 0 : i32
    return %arg0, %c0_i32 : i32, i32
  }
  func.func @transform_1(%arg0: i32) -> (i32, i32) {
    %c0_i32 = arith.constant 0 : i32
    %c0_i32_0 = arith.constant 0 : i32
    %c0_i32_1 = arith.constant 0 : i32
    return %c0_i32, %c0_i32_0 : i32, i32
  }
  func.func @transform_2(%arg0: i32) -> (i32, i32) {
    %c0_i32 = arith.constant 0 : i32
    %c0_i32_0 = arith.constant 0 : i32
    %c0_i32_1 = arith.constant 0 : i32
    return %c0_i32, %c0_i32_0 : i32, i32
  }
  func.func @transform_3(%arg0: i32) -> (i32, i32) {
    %c0_i32 = arith.constant 0 : i32
    %c0_i32_0 = arith.constant 0 : i32
    return %arg0, %c0_i32 : i32, i32
  }
}

module attributes {stable_mosaic.version = 11 : i64} {
  func.func @_conv_mm_kernel(%arg0: i32, %arg1: memref<168x512xbf16, #tpu.memory_space<vmem>>, %arg2: memref<512x128xbf16, #tpu.memory_space<vmem>>, %arg3: memref<1x128xf32, #tpu.memory_space<vmem>>, %arg4: memref<168x128xbf16, #tpu.memory_space<vmem>>) attributes {dimension_semantics = [#tpu.dimension_semantics<parallel>], iteration_bounds = array<i64: 1>, scalar_prefetch = 0 : i64, scratch_operands = 0 : i64, tpu.core_type = #tpu.core_type<tc>, window_params = [{transform_indices = @transform_0, window_bounds = array<i64: 168, 512>}, {pipeline_mode = #tpu.pipeline_mode<synchronous>, transform_indices = @transform_1, window_bounds = array<i64: 512, 128>}, {pipeline_mode = #tpu.pipeline_mode<synchronous>, transform_indices = @transform_2, window_bounds = array<i64: 1, 128>}, {transform_indices = @transform_3, window_bounds = array<i64: 168, 128>}]} {
    %c0 = arith.constant 0 : index
    %c0_0 = arith.constant 0 : index
    %0 = vector.load %arg1[%c0, %c0_0] : memref<168x512xbf16, #tpu.memory_space<vmem>>, vector<168x512xbf16>
    %c0_1 = arith.constant 0 : index
    %c0_2 = arith.constant 0 : index
    %1 = vector.load %arg2[%c0_1, %c0_2] : memref<512x128xbf16, #tpu.memory_space<vmem>>, vector<512x128xbf16>
    %cst = arith.constant dense<0.000000e+00> : vector<168x128xf32>
    %2 = tpu.matmul %0, %1, %cst {dimension_numbers = #tpu.dot_dimension_numbers<[1], [0], [0], [1], [0, 0, 1, 1], [], []>} : vector<168x512xbf16>, vector<512x128xbf16>, vector<168x128xf32> -> vector<168x128xf32>
    %c0_3 = arith.constant 0 : index
    %c0_4 = arith.constant 0 : index
    %3 = vector.load %arg3[%c0_3, %c0_4] : memref<1x128xf32, #tpu.memory_space<vmem>>, vector<1x128xf32>
    %4 = vector.broadcast %3 : vector<1x128xf32> to vector<168x128xf32>
    %5 = arith.addf %2, %4 : vector<168x128xf32>
    %cst_5 = arith.constant 0.000000e+00 : f32
    %6 = vector.broadcast %cst_5 : f32 to vector<168x128xf32>
    %7 = arith.maximumf %5, %6 : vector<168x128xf32>
    %8 = arith.truncf %7 : vector<168x128xf32> to vector<168x128xbf16>
    %c0_6 = arith.constant 0 : index
    %c0_7 = arith.constant 0 : index
    %9 = vector.load %arg4[%c0_6, %c0_7] : memref<168x128xbf16, #tpu.memory_space<vmem>>, vector<168x128xbf16>
    tpu.vector_store %arg4[%c0_6, %c0_7], %8 {strides = array<i32>} : memref<168x128xbf16, #tpu.memory_space<vmem>>, vector<168x128xbf16>,
    return
  }
  func.func @transform_0(%arg0: i32) -> (i32, i32) {
    %c0_i32 = arith.constant 0 : i32
    %c0_i32_0 = arith.constant 0 : i32
    return %arg0, %c0_i32 : i32, i32
  }
  func.func @transform_1(%arg0: i32) -> (i32, i32) {
    %c0_i32 = arith.constant 0 : i32
    %c0_i32_0 = arith.constant 0 : i32
    %c0_i32_1 = arith.constant 0 : i32
    return %c0_i32, %c0_i32_0 : i32, i32
  }
  func.func @transform_2(%arg0: i32) -> (i32, i32) {
    %c0_i32 = arith.constant 0 : i32
    %c0_i32_0 = arith.constant 0 : i32
    %c0_i32_1 = arith.constant 0 : i32
    return %c0_i32, %c0_i32_0 : i32, i32
  }
  func.func @transform_3(%arg0: i32) -> (i32, i32) {
    %c0_i32 = arith.constant 0 : i32
    %c0_i32_0 = arith.constant 0 : i32
    return %arg0, %c0_i32 : i32, i32
  }
}

module attributes {stable_mosaic.version = 11 : i64} {
  func.func @_conv_mm_kernel(%arg0: i32, %arg1: memref<104x640xbf16, #tpu.memory_space<vmem>>, %arg2: memref<640x128xbf16, #tpu.memory_space<vmem>>, %arg3: memref<1x128xf32, #tpu.memory_space<vmem>>, %arg4: memref<104x128xbf16, #tpu.memory_space<vmem>>) attributes {dimension_semantics = [#tpu.dimension_semantics<parallel>], iteration_bounds = array<i64: 1>, scalar_prefetch = 0 : i64, scratch_operands = 0 : i64, tpu.core_type = #tpu.core_type<tc>, window_params = [{transform_indices = @transform_0, window_bounds = array<i64: 104, 640>}, {pipeline_mode = #tpu.pipeline_mode<synchronous>, transform_indices = @transform_1, window_bounds = array<i64: 640, 128>}, {pipeline_mode = #tpu.pipeline_mode<synchronous>, transform_indices = @transform_2, window_bounds = array<i64: 1, 128>}, {transform_indices = @transform_3, window_bounds = array<i64: 104, 128>}]} {
    %c0 = arith.constant 0 : index
    %c0_0 = arith.constant 0 : index
    %0 = vector.load %arg1[%c0, %c0_0] : memref<104x640xbf16, #tpu.memory_space<vmem>>, vector<104x640xbf16>
    %c0_1 = arith.constant 0 : index
    %c0_2 = arith.constant 0 : index
    %1 = vector.load %arg2[%c0_1, %c0_2] : memref<640x128xbf16, #tpu.memory_space<vmem>>, vector<640x128xbf16>
    %cst = arith.constant dense<0.000000e+00> : vector<104x128xf32>
    %2 = tpu.matmul %0, %1, %cst {dimension_numbers = #tpu.dot_dimension_numbers<[1], [0], [0], [1], [0, 0, 1, 1], [], []>} : vector<104x640xbf16>, vector<640x128xbf16>, vector<104x128xf32> -> vector<104x128xf32>
    %c0_3 = arith.constant 0 : index
    %c0_4 = arith.constant 0 : index
    %3 = vector.load %arg3[%c0_3, %c0_4] : memref<1x128xf32, #tpu.memory_space<vmem>>, vector<1x128xf32>
    %4 = vector.broadcast %3 : vector<1x128xf32> to vector<104x128xf32>
    %5 = arith.addf %2, %4 : vector<104x128xf32>
    %cst_5 = arith.constant 0.000000e+00 : f32
    %6 = vector.broadcast %cst_5 : f32 to vector<104x128xf32>
    %7 = arith.maximumf %5, %6 : vector<104x128xf32>
    %8 = arith.truncf %7 : vector<104x128xf32> to vector<104x128xbf16>
    %c0_6 = arith.constant 0 : index
    %c0_7 = arith.constant 0 : index
    %9 = vector.load %arg4[%c0_6, %c0_7] : memref<104x128xbf16, #tpu.memory_space<vmem>>, vector<104x128xbf16>
    tpu.vector_store %arg4[%c0_6, %c0_7], %8 {strides = array<i32>} : memref<104x128xbf16, #tpu.memory_space<vmem>>, vector<104x128xbf16>,
    return
  }
  func.func @transform_0(%arg0: i32) -> (i32, i32) {
    %c0_i32 = arith.constant 0 : i32
    %c0_i32_0 = arith.constant 0 : i32
    return %arg0, %c0_i32 : i32, i32
  }
  func.func @transform_1(%arg0: i32) -> (i32, i32) {
    %c0_i32 = arith.constant 0 : i32
    %c0_i32_0 = arith.constant 0 : i32
    %c0_i32_1 = arith.constant 0 : i32
    return %c0_i32, %c0_i32_0 : i32, i32
  }
  func.func @transform_2(%arg0: i32) -> (i32, i32) {
    %c0_i32 = arith.constant 0 : i32
    %c0_i32_0 = arith.constant 0 : i32
    %c0_i32_1 = arith.constant 0 : i32
    return %c0_i32, %c0_i32_0 : i32, i32
  }
  func.func @transform_3(%arg0: i32) -> (i32, i32) {
    %c0_i32 = arith.constant 0 : i32
    %c0_i32_0 = arith.constant 0 : i32
    return %arg0, %c0_i32 : i32, i32
  }
}

module attributes {stable_mosaic.version = 11 : i64} {
  func.func @_fc_critic_kernel(%arg0: i32, %arg1: i32, %arg2: memref<8x512xbf16, #tpu.memory_space<vmem>>, %arg3: memref<512x512xbf16, #tpu.memory_space<vmem>>, %arg4: memref<1x512xf32, #tpu.memory_space<vmem>>, %arg5: memref<512x128xf32, #tpu.memory_space<vmem>>, %arg6: memref<1x128xf32, #tpu.memory_space<vmem>>, %arg7: memref<8x512xf32, #tpu.memory_space<vmem>>, %arg8: memref<8x128xf32, #tpu.memory_space<vmem>>, %arg9: memref<8x512xf32, #tpu.memory_space<vmem>>) attributes {dimension_semantics = [#tpu.dimension_semantics<parallel>, #tpu.dimension_semantics<arbitrary>], iteration_bounds = array<i64: 1, 4>, scalar_prefetch = 0 : i64, scratch_operands = 1 : i64, tpu.core_type = #tpu.core_type<tc>, window_params = [{transform_indices = @transform_0, window_bounds = array<i64: 8, 512>}, {transform_indices = @transform_1, window_bounds = array<i64: 512, 512>}, {pipeline_mode = #tpu.pipeline_mode<synchronous>, transform_indices = @transform_2, window_bounds = array<i64: 1, 512>}, {pipeline_mode = #tpu.pipeline_mode<synchronous>, transform_indices = @transform_3, window_bounds = array<i64: 512, 128>}, {pipeline_mode = #tpu.pipeline_mode<synchronous>, transform_indices = @transform_4, window_bounds = array<i64: 1, 128>}, {transform_indices = @transform_5, window_bounds = array<i64: 8, 512>}, {transform_indices = @transform_6, window_bounds = array<i64: 8, 128>}]} {
    %c0_i32 = arith.constant 0 : i32
    %0 = arith.cmpi eq, %arg1, %c0_i32 : i32
    %1 = arith.extui %0 : i1 to i32
    %c0_i32_0 = arith.constant 0 : i32
    %2 = arith.cmpi ne, %1, %c0_i32_0 : i32
    scf.if %2 {
      %cst_9 = arith.constant 0.000000e+00 : f32
      %12 = vector.broadcast %cst_9 : f32 to vector<8x512xf32>
      %c0_10 = arith.constant 0 : index
      %c0_11 = arith.constant 0 : index
      %13 = vector.load %arg9[%c0_10, %c0_11] : memref<8x512xf32, #tpu.memory_space<vmem>>, vector<8x512xf32>
      tpu.vector_store %arg9[%c0_10, %c0_11], %12 {strides = array<i32>} : memref<8x512xf32, #tpu.memory_space<vmem>>, vector<8x512xf32>,
    } else {
    }
    %c0 = arith.constant 0 : index
    %c0_1 = arith.constant 0 : index
    %3 = vector.load %arg9[%c0, %c0_1] : memref<8x512xf32, #tpu.memory_space<vmem>>, vector<8x512xf32>
    %c0_2 = arith.constant 0 : index
    %c0_3 = arith.constant 0 : index
    %4 = vector.load %arg2[%c0_2, %c0_3] : memref<8x512xbf16, #tpu.memory_space<vmem>>, vector<8x512xbf16>
    %c0_4 = arith.constant 0 : index
    %c0_5 = arith.constant 0 : index
    %5 = vector.load %arg3[%c0_4, %c0_5] : memref<512x512xbf16, #tpu.memory_space<vmem>>, vector<512x512xbf16>
    %cst = arith.constant dense<0.000000e+00> : vector<8x512xf32>
    %6 = tpu.matmul %4, %5, %cst {dimension_numbers = #tpu.dot_dimension_numbers<[1], [0], [0], [1], [0, 0, 1, 1], [], []>} : vector<8x512xbf16>, vector<512x512xbf16>, vector<8x512xf32> -> vector<8x512xf32>
    %7 = arith.addf %3, %6 : vector<8x512xf32>
    %c0_6 = arith.constant 0 : index
    %c0_7 = arith.constant 0 : index
    %8 = vector.load %arg9[%c0_6, %c0_7] : memref<8x512xf32, #tpu.memory_space<vmem>>, vector<8x512xf32>
    tpu.vector_store %arg9[%c0_6, %c0_7], %7 {strides = array<i32>} : memref<8x512xf32, #tpu.memory_space<vmem>>, vector<8x512xf32>,
    %c3_i32 = arith.constant 3 : i32
    %9 = arith.cmpi eq, %arg1, %c3_i32 : i32
    %10 = arith.extui %9 : i1 to i32
    %c0_i32_8 = arith.constant 0 : i32
    %11 = arith.cmpi ne, %10, %c0_i32_8 : i32
    scf.if %11 {
      %c0_9 = arith.constant 0 : index
      %c0_10 = arith.constant 0 : index
      %12 = vector.load %arg9[%c0_9, %c0_10] : memref<8x512xf32, #tpu.memory_space<vmem>>, vector<8x512xf32>
      %c0_11 = arith.constant 0 : index
      %c0_12 = arith.constant 0 : index
      %13 = vector.load %arg4[%c0_11, %c0_12] : memref<1x512xf32, #tpu.memory_space<vmem>>, vector<1x512xf32>
      %14 = vector.broadcast %13 : vector<1x512xf32> to vector<8x512xf32>
      %15 = arith.addf %12, %14 : vector<8x512xf32>
      %cst_13 = arith.constant 0.000000e+00 : f32
      %16 = vector.broadcast %cst_13 : f32 to vector<8x512xf32>
      %17 = arith.maximumf %15, %16 : vector<8x512xf32>
      %c0_14 = arith.constant 0 : index
      %c0_15 = arith.constant 0 : index
      %18 = vector.load %arg7[%c0_14, %c0_15] : memref<8x512xf32, #tpu.memory_space<vmem>>, vector<8x512xf32>
      tpu.vector_store %arg7[%c0_14, %c0_15], %17 {strides = array<i32>} : memref<8x512xf32, #tpu.memory_space<vmem>>, vector<8x512xf32>,
      %c0_16 = arith.constant 0 : index
      %c0_17 = arith.constant 0 : index
      %19 = vector.load %arg5[%c0_16, %c0_17] : memref<512x128xf32, #tpu.memory_space<vmem>>, vector<512x128xf32>
      %cst_18 = arith.constant dense<0.000000e+00> : vector<8x128xf32>
      %20 = tpu.matmul %17, %19, %cst_18 {dimension_numbers = #tpu.dot_dimension_numbers<[1], [0], [0], [1], [0, 0, 1, 1], [], []>} : vector<8x512xf32>, vector<512x128xf32>, vector<8x128xf32> -> vector<8x128xf32>
      %c0_19 = arith.constant 0 : index
      %c0_20 = arith.constant 0 : index
      %21 = vector.load %arg6[%c0_19, %c0_20] : memref<1x128xf32, #tpu.memory_space<vmem>>, vector<1x128xf32>
      %22 = vector.broadcast %21 : vector<1x128xf32> to vector<8x128xf32>
      %23 = arith.addf %20, %22 : vector<8x128xf32>
      %c0_21 = arith.constant 0 : index
      %c0_22 = arith.constant 0 : index
      %24 = vector.load %arg8[%c0_21, %c0_22] : memref<8x128xf32, #tpu.memory_space<vmem>>, vector<8x128xf32>
      tpu.vector_store %arg8[%c0_21, %c0_22], %23 {strides = array<i32>} : memref<8x128xf32, #tpu.memory_space<vmem>>, vector<8x128xf32>,
    } else {
    }
    return
  }
  func.func @transform_0(%arg0: i32, %arg1: i32) -> (i32, i32) {
    %c0_i32 = arith.constant 0 : i32
    return %arg0, %arg1 : i32, i32
  }
  func.func @transform_1(%arg0: i32, %arg1: i32) -> (i32, i32) {
    %c0_i32 = arith.constant 0 : i32
    %c0_i32_0 = arith.constant 0 : i32
    return %arg1, %c0_i32 : i32, i32
  }
  func.func @transform_2(%arg0: i32, %arg1: i32) -> (i32, i32) {
    %c0_i32 = arith.constant 0 : i32
    %c0_i32_0 = arith.constant 0 : i32
    %c0_i32_1 = arith.constant 0 : i32
    return %c0_i32, %c0_i32_0 : i32, i32
  }
  func.func @transform_3(%arg0: i32, %arg1: i32) -> (i32, i32) {
    %c0_i32 = arith.constant 0 : i32
    %c0_i32_0 = arith.constant 0 : i32
    %c0_i32_1 = arith.constant 0 : i32
    return %c0_i32, %c0_i32_0 : i32, i32
  }
  func.func @transform_4(%arg0: i32, %arg1: i32) -> (i32, i32) {
    %c0_i32 = arith.constant 0 : i32
    %c0_i32_0 = arith.constant 0 : i32
    %c0_i32_1 = arith.constant 0 : i32
    return %c0_i32, %c0_i32_0 : i32, i32
  }
  func.func @transform_5(%arg0: i32, %arg1: i32) -> (i32, i32) {
    %c0_i32 = arith.constant 0 : i32
    %c0_i32_0 = arith.constant 0 : i32
    return %arg0, %c0_i32 : i32, i32
  }
  func.func @transform_6(%arg0: i32, %arg1: i32) -> (i32, i32) {
    %c0_i32 = arith.constant 0 : i32
    %c0_i32_0 = arith.constant 0 : i32
    return %arg0, %c0_i32 : i32, i32
  }
}

</mosaic_0001>

<llo_original>
// kernel: cnn_base_forward.4
$region0: #{cnn_base_forward.4}
  #allocation0 [shape = 'u32[]', space=smem, size = 0x4, offset = 0x4, fixed_abs, tag = 'smem constant byte address 0x4 - core index']
  #allocation1 [shape = 'u32[144,128]{1,0:T(1,128)}', space=vmem, size = 0x12000, scoped, tag = 'internal scratch']
  %s0 = inlined_call_operand.vmem [shape: bf16[1024,256], index: 0, kind: input, shape index: {}]
  %s1 = inlined_call_operand.vmem [shape: bf16[256,128], index: 1, kind: input, shape index: {}]
  %s2 = inlined_call_operand.vmem [shape: f32[1,128], index: 2, kind: input, shape index: {}]
  %s3 = inlined_call_operand.vmem [shape: bf16[1024,128], index: 3, kind: output, shape index: {}]
  %s4 = sld [smem:[#allocation0]]
  $region45: #{cnn_base_forward.4} parent=0
    _
  %s6 = ssub.s32 1, %s4
  %s7 = scalar_select 0, %s6, %s4
  loop: start=0, step=1, limit=4
  $region2: #{cnn_base_forward.4} parent=0 // loop_pre_header
    _
  $region3: #{cnn_base_forward.4} parent=0 // loop_header
    %s9 = sphi 0, %s13
    %p10 = scmp.ge.s32.totalorder %s9, 4
    %s19 = sphi 0, %s21
    %s22 = sphi 0, %s19
    %s23 = sphi 0, %s22
    %s39 = sphi 0, %s23
    %s43 = sphi 0, %s43
    %s45 = sphi 0, %s43
    %s46 = sphi 0, %s45
    %s60 = sphi 0, %s46
    %s64 = sphi 0, %s64
    %s66 = sphi 0, %s64
    %s67 = sphi 0, %s66
    %s81 = sphi 0, %s67
    %s87 = sphi 0, %s89
    %s90 = sphi 0, %s87
    %s91 = sphi 0, %s90
    %s107 = sphi 0, %s91
  $region4: #{cnn_base_forward.4} parent=0 // loop_header_branch
    %12 = sbr.rel (%p10) target = $region8
  $region5: #{cnn_base_forward.4} parent=0 // loop_body
    %s14 = ssub.s32 %s9, 1
    %s15 = ssub.s32 %s9, 2
    %s16 = sadd.s32 %s9, 1
    %s17 = ssub.s32 %s9, %s16
    %p18 = scmp.eq.s32.totalorder %s17, 0
    %s20 = sadd.s32 %s19, 1
    %s21 = scalar_select %p18, %s19, %s20
    %p24 = pneg %p18
    %p25 = scmp.eq.s32.totalorder %s9, 1
    %p26 = por %p24, %p25
    %p27 = scmp.ne.s32.totalorder %s19, %s22
    %p28 = scmp.eq.s32.totalorder %s9, 0
    %p29 = por %p27, %p28
    %p30 = scmp.ne.s32.totalorder %s19, %s22
    %p31 = scmp.eq.s32.totalorder %s14, 1
    %p32 = por %p30, %p31
    %p33 = scmp.ne.s32.totalorder %s22, %s23
    %p34 = scmp.eq.s32.totalorder %s14, 0
    %p35 = por %p33, %p34
    %p36 = scmp.ne.s32.totalorder %s22, %s23
    %p37 = scmp.eq.s32.totalorder %s15, 1
    %p38 = por %p36, %p37
    %p40 = scmp.ne.s32.totalorder %s23, %s39
    %p41 = scmp.eq.s32.totalorder %s15, 0
    %p42 = por %p40, %p41
    %s44 = sadd.s32 %s43, 1
    %p47 = scmp.eq.s32.totalorder %s9, 1
    %p48 = scmp.ne.s32.totalorder %s43, %s45
    %p49 = scmp.eq.s32.totalorder %s9, 0
    %p50 = por %p48, %p49
    %p51 = scmp.ne.s32.totalorder %s43, %s45
    %p52 = scmp.eq.s32.totalorder %s14, 1
    %p53 = por %p51, %p52
    %p54 = scmp.ne.s32.totalorder %s45, %s46
    %p55 = scmp.eq.s32.totalorder %s14, 0
    %p56 = por %p54, %p55
    %p57 = scmp.ne.s32.totalorder %s45, %s46
    %p58 = scmp.eq.s32.totalorder %s15, 1
    %p59 = por %p57, %p58
    %p61 = scmp.ne.s32.totalorder %s46, %s60
    %p62 = scmp.eq.s32.totalorder %s15, 0
    %p63 = por %p61, %p62
    %s65 = sadd.s32 %s64, 1
    %p68 = scmp.eq.s32.totalorder %s9, 1
    %p69 = scmp.ne.s32.totalorder %s64, %s66
    %p70 = scmp.eq.s32.totalorder %s9, 0
    %p71 = por %p69, %p70
    %p72 = scmp.ne.s32.totalorder %s64, %s66
    %p73 = scmp.eq.s32.totalorder %s14, 1
    %p74 = por %p72, %p73
    %p75 = scmp.ne.s32.totalorder %s66, %s67
    %p76 = scmp.eq.s32.totalorder %s14, 0
    %p77 = por %p75, %p76
    %p78 = scmp.ne.s32.totalorder %s66, %s67
    %p79 = scmp.eq.s32.totalorder %s15, 1
    %p80 = por %p78, %p79
    %p82 = scmp.ne.s32.totalorder %s67, %s81
    %p83 = scmp.eq.s32.totalorder %s15, 0
    %p84 = por %p82, %p83
    %s85 = ssub.s32 %s9, %s16
    %p86 = scmp.eq.s32.totalorder %s85, 0
    %s88 = sadd.s32 %s87, 1
    %s89 = scalar_select %p86, %s87, %s88
    %p92 = pneg %p86
    %p93 = scmp.eq.s32.totalorder %s9, 1
    %p94 = por %p92, %p93
    %p95 = scmp.ne.s32.totalorder %s87, %s90
    %p96 = scmp.eq.s32.totalorder %s9, 0
    %p97 = por %p95, %p96
    %p98 = scmp.ne.s32.totalorder %s87, %s90
    %p99 = scmp.eq.s32.totalorder %s14, 1
    %p100 = por %p98, %p99
    %p101 = scmp.ne.s32.totalorder %s90, %s91
    %p102 = scmp.eq.s32.totalorder %s14, 0
    %p103 = por %p101, %p102
    %p104 = scmp.ne.s32.totalorder %s90, %s91
    %p105 = scmp.eq.s32.totalorder %s15, 1
    %p106 = por %p104, %p105
    %p108 = scmp.ne.s32.totalorder %s91, %s107
    %p109 = scmp.eq.s32.totalorder %s15, 0
    %p110 = por %p108, %p109
    %p111 = scmp.le.s32.totalorder 1, %s9
    %p112 = scmp.lt.s32.totalorder %s9, 3
    %p113 = pnand %p111, %p112
    %p114 = pneg %p113
    // Predicated region
    $region9: #{cnn_base_forward.4} parent=5 // pred_check
      _
    $region10: #{cnn_base_forward.4} parent=5 // pred_check_branch
      %116 = sbr.rel (%p113) target = $region12
    $region11: #{cnn_base_forward.4} parent=5 // pred_region
      %s117 = ssub.s32 %s9, 1
      // Predicated region
      $region13: #{cnn_base_forward.4} parent=11 // pred_check
        %p118 = pneg %p56
      $region14: #{cnn_base_forward.4} parent=11 // pred_check_branch
        %120 = sbr.rel (%p118) target = $region16
      $region15: #{cnn_base_forward.4} parent=11 // pred_region
        _
      $region16: #{cnn_base_forward.4} parent=11 // pred_fallthru
        _
      // Predicated region
      $region17: #{cnn_base_forward.4} parent=11 // pred_check
        %p121 = pneg %p77
      $region18: #{cnn_base_forward.4} parent=11 // pred_check_branch
        %123 = sbr.rel (%p121) target = $region20
      $region19: #{cnn_base_forward.4} parent=11 // pred_region
        _
      $region20: #{cnn_base_forward.4} parent=11 // pred_fallthru
        _
    $region12: #{cnn_base_forward.4} parent=5 // pred_fallthru
      _
    %p124 = scmp.lt.s32.totalorder %s9, 2
    // Predicated region
    $region21: #{cnn_base_forward.4} parent=5 // pred_check
      %p125 = pneg %p124
    $region22: #{cnn_base_forward.4} parent=5 // pred_check_branch
      %127 = sbr.rel (%p125) target = $region24
    $region23: #{cnn_base_forward.4} parent=5 // pred_region
      // Predicated region
      $region25: #{cnn_base_forward.4} parent=23 // pred_check
        %p128 = pneg %p29
      $region26: #{cnn_base_forward.4} parent=23 // pred_check_branch
        %130 = sbr.rel (%p128) target = $region28
      $region27: #{cnn_base_forward.4} parent=23 // pred_region
        %s131 = smul.u32 64, %s9
        %p132 = scmp.lt.s32.totalorder %s131, 127
        %s133 = scalar_select %p132, %s131, 127
        %s134 = smul.addr %s133, 2
        %s135 = smul.addr %s134, 4
        %s136 = scalar_lea.vmem %s0, %s135
        %s137 = smul.u32 64, %s9
      $region28: #{cnn_base_forward.4} parent=23 // pred_fallthru
        _
    $region24: #{cnn_base_forward.4} parent=5 // pred_fallthru
      _
    %p138 = scmp.le.s32.totalorder 1, %s9
    %p139 = scmp.lt.s32.totalorder %s9, 3
    %p140 = pnand %p138, %p139
    %p141 = pneg %p140
    // Predicated region
    $region29: #{cnn_base_forward.4} parent=5 // pred_check
      _
    $region30: #{cnn_base_forward.4} parent=5 // pred_check_branch
      %143 = sbr.rel (%p140) target = $region32
    $region31: #{cnn_base_forward.4} parent=5 // pred_region
      %s144 = ssub.s32 %s9, 1
      %s145 = smul.u32 64, %s14
      %p146 = scmp.lt.s32.totalorder %s145, 127
      %s147 = scalar_select %p146, %s145, 127
      %s148 = smul.addr %s147, 2
      %s149 = smul.addr %s148, 4
      %s150 = scalar_lea.vmem %s0, %s149
      %p151 = pneg %p35
      %p152 = pneg %p32
      %p153 = pneg %p56
      %p154 = pneg %p53
      %p155 = pneg %p77
      %p156 = pneg %p74
      %p157 = pneg %p103
      %p158 = pneg %p100
      %s159 = smul.u32 64, %s14
      %p160 = scmp.lt.s32.totalorder %s159, 127
      %s161 = scalar_select %p160, %s159, 127
      %s162 = smul.addr %s161, 4
      %s163 = scalar_lea.vmem %s3, %s162
      %s164 = smul.u32 64, %s14
      %p165 = scmp.lt.s32.totalorder %s164, 127
      %s166 = scalar_select %p165, %s164, 127
      %s167 = smul.addr %s166, 2
      %s168 = smul.addr %s167, 4
      %s169 = scalar_lea.vmem %s0, %s168
      %s170 = smul.u32 64, %s14
      %s171 = smul.u32 64, %s14
      %p172 = scmp.lt.s32.totalorder %s171, 127
      %s173 = scalar_select %p172, %s171, 127
      %s174 = smul.addr %s173, 4
      %s175 = scalar_lea.vmem %s3, %s174
      %s176 = smul.u32 64, %s14
      %v178 = vld [vmem:[%s169] sm:$0xff]
      %v179 = vld [vmem:[%s169 + $0x8] sm:$0xff]
      %v180 = vld [vmem:[%s169 + $0x10] sm:$0xff]
      %v181 = vld [vmem:[%s169 + $0x18] sm:$0xff]
      %v182 = vld [vmem:[%s169 + $0x20] sm:$0xff]
      %v183 = vld [vmem:[%s169 + $0x28] sm:$0xff]
      %v184 = vld [vmem:[%s169 + $0x30] sm:$0xff]
      %v185 = vld [vmem:[%s169 + $0x38] sm:$0xff]
      %v186 = vld [vmem:[%s169 + $0x40] sm:$0xff]
      %v187 = vld [vmem:[%s169 + $0x48] sm:$0xff]
      %v188 = vld [vmem:[%s169 + $0x50] sm:$0xff]
      %v189 = vld [vmem:[%s169 + $0x58] sm:$0xff]
      %v190 = vld [vmem:[%s169 + $0x60] sm:$0xff]
      %v191 = vld [vmem:[%s169 + $0x68] sm:$0xff]
      %v192 = vld [vmem:[%s169 + $0x70] sm:$0xff]
      %v193 = vld [vmem:[%s169 + $0x78] sm:$0xff]
      %v194 = vld [vmem:[%s169 + $0x80] sm:$0xff]
      %v195 = vld [vmem:[%s169 + $0x88] sm:$0xff]
      %v196 = vld [vmem:[%s169 + $0x90] sm:$0xff]
      %v197 = vld [vmem:[%s169 + $0x98] sm:$0xff]
      %v198 = vld [vmem:[%s169 + $0xa0] sm:$0xff]
      %v199 = vld [vmem:[%s169 + $0xa8] sm:$0xff]
      %v200 = vld [vmem:[%s169 + $0xb0] sm:$0xff]
      %v201 = vld [vmem:[%s169 + $0xb8] sm:$0xff]
      %v202 = vld [vmem:[%s169 + $0xc0] sm:$0xff]
      %v203 = vld [vmem:[%s169 + $0xc8] sm:$0xff]
      %v204 = vld [vmem:[%s169 + $0xd0] sm:$0xff]
      %v205 = vld [vmem:[%s169 + $0xd8] sm:$0xff]
      %v206 = vld [vmem:[%s169 + $0xe0] sm:$0xff]
      %v207 = vld [vmem:[%s169 + $0xe8] sm:$0xff]
      %v208 = vld [vmem:[%s169 + $0xf0] sm:$0xff]
      %v209 = vld [vmem:[%s169 + $0xf8] sm:$0xff]
      %v210 = vld [vmem:[%s169 + $0x100] sm:$0xff]
      %v211 = vld [vmem:[%s169 + $0x108] sm:$0xff]
      %v212 = vld [vmem:[%s169 + $0x110] sm:$0xff]
      %v213 = vld [vmem:[%s169 + $0x118] sm:$0xff]
      %v214 = vld [vmem:[%s169 + $0x120] sm:$0xff]
      %v215 = vld [vmem:[%s169 + $0x128] sm:$0xff]
      %v216 = vld [vmem:[%s169 + $0x130] sm:$0xff]
      %v217 = vld [vmem:[%s169 + $0x138] sm:$0xff]
      %v218 = vld [vmem:[%s169 + $0x140] sm:$0xff]
      %v219 = vld [vmem:[%s169 + $0x148] sm:$0xff]
      %v220 = vld [vmem:[%s169 + $0x150] sm:$0xff]
      %v221 = vld [vmem:[%s169 + $0x158] sm:$0xff]
      %v222 = vld [vmem:[%s169 + $0x160] sm:$0xff]
      %v223 = vld [vmem:[%s169 + $0x168] sm:$0xff]
      %v224 = vld [vmem:[%s169 + $0x170] sm:$0xff]
      %v225 = vld [vmem:[%s169 + $0x178] sm:$0xff]
      %v226 = vld [vmem:[%s169 + $0x180] sm:$0xff]
      %v227 = vld [vmem:[%s169 + $0x188] sm:$0xff]
      %v228 = vld [vmem:[%s169 + $0x190] sm:$0xff]
      %v229 = vld [vmem:[%s169 + $0x198] sm:$0xff]
      %v230 = vld [vmem:[%s169 + $0x1a0] sm:$0xff]
      %v231 = vld [vmem:[%s169 + $0x1a8] sm:$0xff]
      %v232 = vld [vmem:[%s169 + $0x1b0] sm:$0xff]
      %v233 = vld [vmem:[%s169 + $0x1b8] sm:$0xff]
      %v234 = vld [vmem:[%s169 + $0x1c0] sm:$0xff]
      %v235 = vld [vmem:[%s169 + $0x1c8] sm:$0xff]
      %v236 = vld [vmem:[%s169 + $0x1d0] sm:$0xff]
      %v237 = vld [vmem:[%s169 + $0x1d8] sm:$0xff]
      %v238 = vld [vmem:[%s169 + $0x1e0] sm:$0xff]
      %v239 = vld [vmem:[%s169 + $0x1e8] sm:$0xff]
      %v240 = vld [vmem:[%s169 + $0x1f0] sm:$0xff]
      %v241 = vld [vmem:[%s169 + $0x1f8] sm:$0xff]
      %v242 = vld [vmem:[%s1] sm:$0xf]
      %v243 = vld [vmem:[%s1 + $0x4] sm:$0xf]
      %v244 = vld [vmem:[%s1 + $0x8] sm:$0xf]
      %v245 = vld [vmem:[%s1 + $0xc] sm:$0xf]
      %v246 = vld [vmem:[%s1 + $0x10] sm:$0xf]
      %v247 = vld [vmem:[%s1 + $0x14] sm:$0xf]
      %v248 = vld [vmem:[%s1 + $0x18] sm:$0xf]
      %v249 = vld [vmem:[%s1 + $0x1c] sm:$0xf]
      %v250 = vld [vmem:[%s1 + $0x20] sm:$0xf]
      %v251 = vld [vmem:[%s1 + $0x24] sm:$0xf]
      %v252 = vld [vmem:[%s1 + $0x28] sm:$0xf]
      %v253 = vld [vmem:[%s1 + $0x2c] sm:$0xf]
      %v254 = vld [vmem:[%s1 + $0x30] sm:$0xf]
      %v255 = vld [vmem:[%s1 + $0x34] sm:$0xf]
      %v256 = vld [vmem:[%s1 + $0x38] sm:$0xf]
      %v257 = vld [vmem:[%s1 + $0x3c] sm:$0xf]
      %v258 = vld [vmem:[%s1 + $0x40] sm:$0xf]
      %v259 = vld [vmem:[%s1 + $0x44] sm:$0xf]
      %v260 = vld [vmem:[%s1 + $0x48] sm:$0xf]
      %v261 = vld [vmem:[%s1 + $0x4c] sm:$0xf]
      %v262 = vld [vmem:[%s1 + $0x50] sm:$0xf]
      %v263 = vld [vmem:[%s1 + $0x54] sm:$0xf]
      %v264 = vld [vmem:[%s1 + $0x58] sm:$0xf]
      %v265 = vld [vmem:[%s1 + $0x5c] sm:$0xf]
      %v266 = vld [vmem:[%s1 + $0x60] sm:$0xf]
      %v267 = vld [vmem:[%s1 + $0x64] sm:$0xf]
      %v268 = vld [vmem:[%s1 + $0x68] sm:$0xf]
      %v269 = vld [vmem:[%s1 + $0x6c] sm:$0xf]
      %v270 = vld [vmem:[%s1 + $0x70] sm:$0xf]
      %v271 = vld [vmem:[%s1 + $0x74] sm:$0xf]
      %v272 = vld [vmem:[%s1 + $0x78] sm:$0xf]
      %v273 = vld [vmem:[%s1 + $0x7c] sm:$0xf]
      %v274 = vld [vmem:[%s2] sm:$0x1]
      %v276 = vlaneseq
      %v277 = vshrl.u32 %v276, 7
      %v278 = vsub.s32 0, %v277
      %v279 = vrot.slane %v274, %v278
      %v345 = vunpack.c.l.b16 %v178
      %v346 = vunpack.c.h.b16 %v178
      %v347 = vunpack.c.l.b16 %v179
      %v348 = vunpack.c.h.b16 %v179
      %v349 = vunpack.c.l.b16 %v180
      %v350 = vunpack.c.h.b16 %v180
      %v351 = vunpack.c.l.b16 %v181
      %v352 = vunpack.c.h.b16 %v181
      %v353 = vunpack.c.l.b16 %v182
      %v354 = vunpack.c.h.b16 %v182
      %v355 = vunpack.c.l.b16 %v183
      %v356 = vunpack.c.h.b16 %v183
      %v357 = vunpack.c.l.b16 %v184
      %v358 = vunpack.c.h.b16 %v184
      %v359 = vunpack.c.l.b16 %v185
      %v360 = vunpack.c.h.b16 %v185
      %v361 = vunpack.c.l.b16 %v186
      %v362 = vunpack.c.h.b16 %v186
      %v363 = vunpack.c.l.b16 %v187
      %v364 = vunpack.c.h.b16 %v187
      %v365 = vunpack.c.l.b16 %v188
      %v366 = vunpack.c.h.b16 %v188
      %v367 = vunpack.c.l.b16 %v189
      %v368 = vunpack.c.h.b16 %v189
      %v369 = vunpack.c.l.b16 %v190
      %v370 = vunpack.c.h.b16 %v190
      %v371 = vunpack.c.l.b16 %v191
      %v372 = vunpack.c.h.b16 %v191
      %v373 = vunpack.c.l.b16 %v192
      %v374 = vunpack.c.h.b16 %v192
      %v375 = vunpack.c.l.b16 %v193
      %v376 = vunpack.c.h.b16 %v193
      %v377 = vunpack.c.l.b16 %v194
      %v378 = vunpack.c.h.b16 %v194
      %v379 = vunpack.c.l.b16 %v195
      %v380 = vunpack.c.h.b16 %v195
      %v381 = vunpack.c.l.b16 %v196
      %v382 = vunpack.c.h.b16 %v196
      %v383 = vunpack.c.l.b16 %v197
      %v384 = vunpack.c.h.b16 %v197
      %v385 = vunpack.c.l.b16 %v198
      %v386 = vunpack.c.h.b16 %v198
      %v387 = vunpack.c.l.b16 %v199
      %v388 = vunpack.c.h.b16 %v199
      %v389 = vunpack.c.l.b16 %v200
      %v390 = vunpack.c.h.b16 %v200
      %v391 = vunpack.c.l.b16 %v201
      %v392 = vunpack.c.h.b16 %v201
      %v393 = vunpack.c.l.b16 %v202
      %v394 = vunpack.c.h.b16 %v202
      %v395 = vunpack.c.l.b16 %v203
      %v396 = vunpack.c.h.b16 %v203
      %v397 = vunpack.c.l.b16 %v204
      %v398 = vunpack.c.h.b16 %v204
      %v399 = vunpack.c.l.b16 %v205
      %v400 = vunpack.c.h.b16 %v205
      %v401 = vunpack.c.l.b16 %v206
      %v402 = vunpack.c.h.b16 %v206
      %v403 = vunpack.c.l.b16 %v207
      %v404 = vunpack.c.h.b16 %v207
      %v405 = vunpack.c.l.b16 %v208
      %v406 = vunpack.c.h.b16 %v208
      %v407 = vunpack.c.l.b16 %v209
      %v408 = vunpack.c.h.b16 %v209
      %v409 = vunpack.c.l.b16 %v210
      %v410 = vunpack.c.h.b16 %v210
      %v411 = vunpack.c.l.b16 %v211
      %v412 = vunpack.c.h.b16 %v211
      %v413 = vunpack.c.l.b16 %v212
      %v414 = vunpack.c.h.b16 %v212
      %v415 = vunpack.c.l.b16 %v213
      %v416 = vunpack.c.h.b16 %v213
      %v417 = vunpack.c.l.b16 %v214
      %v418 = vunpack.c.h.b16 %v214
      %v419 = vunpack.c.l.b16 %v215
      %v420 = vunpack.c.h.b16 %v215
      %v421 = vunpack.c.l.b16 %v216
      %v422 = vunpack.c.h.b16 %v216
      %v423 = vunpack.c.l.b16 %v217
      %v424 = vunpack.c.h.b16 %v217
      %v425 = vunpack.c.l.b16 %v218
      %v426 = vunpack.c.h.b16 %v218
      %v427 = vunpack.c.l.b16 %v219
      %v428 = vunpack.c.h.b16 %v219
      %v429 = vunpack.c.l.b16 %v220
      %v430 = vunpack.c.h.b16 %v220
      %v431 = vunpack.c.l.b16 %v221
      %v432 = vunpack.c.h.b16 %v221
      %v433 = vunpack.c.l.b16 %v222
      %v434 = vunpack.c.h.b16 %v222
      %v435 = vunpack.c.l.b16 %v223
      %v436 = vunpack.c.h.b16 %v223
      %v437 = vunpack.c.l.b16 %v224
      %v438 = vunpack.c.h.b16 %v224
      %v439 = vunpack.c.l.b16 %v225
      %v440 = vunpack.c.h.b16 %v225
      %v441 = vunpack.c.l.b16 %v226
      %v442 = vunpack.c.h.b16 %v226
      %v443 = vunpack.c.l.b16 %v227
      %v444 = vunpack.c.h.b16 %v227
      %v445 = vunpack.c.l.b16 %v228
      %v446 = vunpack.c.h.b16 %v228
      %v447 = vunpack.c.l.b16 %v229
      %v448 = vunpack.c.h.b16 %v229
      %v449 = vunpack.c.l.b16 %v230
      %v450 = vunpack.c.h.b16 %v230
      %v451 = vunpack.c.l.b16 %v231
      %v452 = vunpack.c.h.b16 %v231
      %v453 = vunpack.c.l.b16 %v232
      %v454 = vunpack.c.h.b16 %v232
      %v455 = vunpack.c.l.b16 %v233
      %v456 = vunpack.c.h.b16 %v233
      %v457 = vunpack.c.l.b16 %v234
      %v458 = vunpack.c.h.b16 %v234
      %v459 = vunpack.c.l.b16 %v235
      %v460 = vunpack.c.h.b16 %v235
      %v461 = vunpack.c.l.b16 %v236
      %v462 = vunpack.c.h.b16 %v236
      %v463 = vunpack.c.l.b16 %v237
      %v464 = vunpack.c.h.b16 %v237
      %v465 = vunpack.c.l.b16 %v238
      %v466 = vunpack.c.h.b16 %v238
      %v467 = vunpack.c.l.b16 %v239
      %v468 = vunpack.c.h.b16 %v239
      %v469 = vunpack.c.l.b16 %v240
      %v470 = vunpack.c.h.b16 %v240
      %v471 = vunpack.c.l.b16 %v241
      %v472 = vunpack.c.h.b16 %v241
      %v473 = vpack.c.b16 %v347, %v345
      %v474 = vpack.c.b16 %v348, %v346
      %v475 = vpack.c.b16 %v351, %v349
      %v476 = vpack.c.b16 %v352, %v350
      %v477 = vpack.c.b16 %v355, %v353
      %v478 = vpack.c.b16 %v356, %v354
      %v479 = vpack.c.b16 %v359, %v357
      %v480 = vpack.c.b16 %v360, %v358
      %v481 = vpack.c.b16 %v363, %v361
      %v482 = vpack.c.b16 %v364, %v362
      %v483 = vpack.c.b16 %v367, %v365
      %v484 = vpack.c.b16 %v368, %v366
      %v485 = vpack.c.b16 %v371, %v369
      %v486 = vpack.c.b16 %v372, %v370
      %v487 = vpack.c.b16 %v375, %v373
      %v488 = vpack.c.b16 %v376, %v374
      %v489 = vpack.c.b16 %v379, %v377
      %v490 = vpack.c.b16 %v380, %v378
      %v491 = vpack.c.b16 %v383, %v381
      %v492 = vpack.c.b16 %v384, %v382
      %v493 = vpack.c.b16 %v387, %v385
      %v494 = vpack.c.b16 %v388, %v386
      %v495 = vpack.c.b16 %v391, %v389
      %v496 = vpack.c.b16 %v392, %v390
      %v497 = vpack.c.b16 %v395, %v393
      %v498 = vpack.c.b16 %v396, %v394
      %v499 = vpack.c.b16 %v399, %v397
      %v500 = vpack.c.b16 %v400, %v398
      %v501 = vpack.c.b16 %v403, %v401
      %v502 = vpack.c.b16 %v404, %v402
      %v503 = vpack.c.b16 %v407, %v405
      %v504 = vpack.c.b16 %v408, %v406
      %v505 = vpack.c.b16 %v411, %v409
      %v506 = vpack.c.b16 %v412, %v410
      %v507 = vpack.c.b16 %v415, %v413
      %v508 = vpack.c.b16 %v416, %v414
      %v509 = vpack.c.b16 %v419, %v417
      %v510 = vpack.c.b16 %v420, %v418
      %v511 = vpack.c.b16 %v423, %v421
      %v512 = vpack.c.b16 %v424, %v422
      %v513 = vpack.c.b16 %v427, %v425
      %v514 = vpack.c.b16 %v428, %v426
      %v515 = vpack.c.b16 %v431, %v429
      %v516 = vpack.c.b16 %v432, %v430
      %v517 = vpack.c.b16 %v435, %v433
      %v518 = vpack.c.b16 %v436, %v434
      %v519 = vpack.c.b16 %v439, %v437
      %v520 = vpack.c.b16 %v440, %v438
      %v521 = vpack.c.b16 %v443, %v441
      %v522 = vpack.c.b16 %v444, %v442
      %v523 = vpack.c.b16 %v447, %v445
      %v524 = vpack.c.b16 %v448, %v446
      %v525 = vpack.c.b16 %v451, %v449
      %v526 = vpack.c.b16 %v452, %v450
      %v527 = vpack.c.b16 %v455, %v453
      %v528 = vpack.c.b16 %v456, %v454
      %v529 = vpack.c.b16 %v459, %v457
      %v530 = vpack.c.b16 %v460, %v458
      %v531 = vpack.c.b16 %v463, %v461
      %v532 = vpack.c.b16 %v464, %v462
      %v533 = vpack.c.b16 %v467, %v465
      %v534 = vpack.c.b16 %v468, %v466
      %v535 = vpack.c.b16 %v471, %v469
      %v536 = vpack.c.b16 %v472, %v470
      %v633 = vunpack.c.l.b16 %v242
      %v634 = vunpack.c.l.b16 %v243
      %v635 = vunpack.c.l.b16 %v244
      %v636 = vunpack.c.l.b16 %v245
      %v637 = vunpack.c.l.b16 %v246
      %v638 = vunpack.c.l.b16 %v247
      %v639 = vunpack.c.l.b16 %v248
      %v640 = vunpack.c.l.b16 %v249
      %v641 = vunpack.c.l.b16 %v250
      %v642 = vunpack.c.l.b16 %v251
      %v643 = vunpack.c.l.b16 %v252
      %v644 = vunpack.c.l.b16 %v253
      %v645 = vunpack.c.l.b16 %v254
      %v646 = vunpack.c.l.b16 %v255
      %v647 = vunpack.c.l.b16 %v256
      %v648 = vunpack.c.l.b16 %v257
      %v649 = vunpack.c.l.b16 %v258
      %v650 = vunpack.c.l.b16 %v259
      %v651 = vunpack.c.l.b16 %v260
      %v652 = vunpack.c.l.b16 %v261
      %v653 = vunpack.c.l.b16 %v262
      %v654 = vunpack.c.l.b16 %v263
      %v655 = vunpack.c.l.b16 %v264
      %v656 = vunpack.c.l.b16 %v265
      %v657 = vunpack.c.l.b16 %v266
      %v658 = vunpack.c.l.b16 %v267
      %v659 = vunpack.c.l.b16 %v268
      %v660 = vunpack.c.l.b16 %v269
      %v661 = vunpack.c.l.b16 %v270
      %v662 = vunpack.c.l.b16 %v271
      %v663 = vunpack.c.l.b16 %v272
      %v664 = vunpack.c.l.b16 %v273
      %v665 = vpack.c.b16 %v634, %v633
      %v666 = vpack.c.b16 %v636, %v635
      %v667 = vpack.c.b16 %v638, %v637
      %v668 = vpack.c.b16 %v640, %v639
      %v669 = vpack.c.b16 %v642, %v641
      %v670 = vpack.c.b16 %v644, %v643
      %v671 = vpack.c.b16 %v646, %v645
      %v672 = vpack.c.b16 %v648, %v647
      %v673 = vpack.c.b16 %v650, %v649
      %v674 = vpack.c.b16 %v652, %v651
      %v675 = vpack.c.b16 %v654, %v653
      %v676 = vpack.c.b16 %v656, %v655
      %v677 = vpack.c.b16 %v658, %v657
      %v678 = vpack.c.b16 %v660, %v659
      %v679 = vpack.c.b16 %v662, %v661
      %v680 = vpack.c.b16 %v664, %v663
      %697 = vmatprep.subr.bf16.mxu0 0
      %698 = vmatpush1.bf16.msra.mxu0 %v665
      %699 = vmatprep.subr.bf16.mxu0 0
      %700 = vmatpush1.bf16.msra.mxu0 %v666
      %701 = vmatprep.subr.bf16.mxu0 0
      %702 = vmatpush1.bf16.msra.mxu0 %v667
      %703 = vmatprep.subr.bf16.mxu0 0
      %704 = vmatpush1.bf16.msra.mxu0 %v668
      %705 = vmatprep.subr.bf16.mxu0 0
      %706 = vmatpush1.bf16.msra.mxu0 %v669
      %707 = vmatprep.subr.bf16.mxu0 0
      %708 = vmatpush1.bf16.msra.mxu0 %v670
      %709 = vmatprep.subr.bf16.mxu0 0
      %710 = vmatpush1.bf16.msra.mxu0 %v671
      %711 = vmatprep.subr.bf16.mxu0 0
      %712 = vmatpush1.bf16.msra.mxu0 %v672
      %713 = vmatprep.subr.bf16.mxu0 0
      %714 = vmatpush1.bf16.msra.mxu0 %v673
      %715 = vmatprep.subr.bf16.mxu0 0
      %716 = vmatpush1.bf16.msra.mxu0 %v674
      %717 = vmatprep.subr.bf16.mxu0 0
      %718 = vmatpush1.bf16.msra.mxu0 %v675
      %719 = vmatprep.subr.bf16.mxu0 0
      %720 = vmatpush1.bf16.msra.mxu0 %v676
      %721 = vmatprep.subr.bf16.mxu0 0
      %722 = vmatpush1.bf16.msra.mxu0 %v677
      %723 = vmatprep.subr.bf16.mxu0 0
      %724 = vmatpush1.bf16.msra.mxu0 %v678
      %725 = vmatprep.subr.bf16.mxu0 0
      %726 = vmatpush1.bf16.msra.mxu0 %v679
      %727 = vmatprep.subr.bf16.mxu0 0
      %728 = vmatpush1.bf16.msra.mxu0 %v680
      %729 = vmatprep.mubr.bf16.mxu0 %v474
      %730 = vmatmul.mubr.bf16.gmra.mrb[0].mxu0 %v473
      %v731 = vpop.f32.mrb[0].mxu0
      %v732 = vadd.f32 %v279, %v731
      %v733 = vpop.f32.mrb[0].mxu0
      %v734 = vpop.f32.mrb[0].mxu0
      %v735 = vadd.f32 %v279, %v734
      %v736 = vpop.f32.mrb[0].mxu0
      %737 = vmatprep.mubr.bf16.mxu0 %v476
      %738 = vmatmul.mubr.bf16.gmra.mrb[0].mxu0 %v475
      %v739 = vpop.f32.mrb[0].mxu0
      %v740 = vadd.f32 %v279, %v739
      %v741 = vpop.f32.mrb[0].mxu0
      %v742 = vpop.f32.mrb[0].mxu0
      %v743 = vadd.f32 %v279, %v742
      %v744 = vpop.f32.mrb[0].mxu0
      %745 = vmatprep.mubr.bf16.mxu0 %v478
      %746 = vmatmul.mubr.bf16.gmra.mrb[0].mxu0 %v477
      %v747 = vpop.f32.mrb[0].mxu0
      %v748 = vadd.f32 %v279, %v747
      %v749 = vpop.f32.mrb[0].mxu0
      %v750 = vpop.f32.mrb[0].mxu0
      %v751 = vadd.f32 %v279, %v750
      %v752 = vpop.f32.mrb[0].mxu0
      %753 = vmatprep.mubr.bf16.mxu0 %v480
      %754 = vmatmul.mubr.bf16.gmra.mrb[0].mxu0 %v479
      %v755 = vpop.f32.mrb[0].mxu0
      %v756 = vadd.f32 %v279, %v755
      %v757 = vpop.f32.mrb[0].mxu0
      %v758 = vpop.f32.mrb[0].mxu0
      %v759 = vadd.f32 %v279, %v758
      %v760 = vpop.f32.mrb[0].mxu0
      %761 = vmatprep.mubr.bf16.mxu0 %v482
      %762 = vmatmul.mubr.bf16.gmra.mrb[0].mxu0 %v481
      %v763 = vpop.f32.mrb[0].mxu0
      %v764 = vadd.f32 %v279, %v763
      %v765 = vpop.f32.mrb[0].mxu0
      %v766 = vpop.f32.mrb[0].mxu0
      %v767 = vadd.f32 %v279, %v766
      %v768 = vpop.f32.mrb[0].mxu0
      %769 = vmatprep.mubr.bf16.mxu0 %v484
      %770 = vmatmul.mubr.bf16.gmra.mrb[0].mxu0 %v483
      %v771 = vpop.f32.mrb[0].mxu0
      %v772 = vadd.f32 %v279, %v771
      %v773 = vpop.f32.mrb[0].mxu0
      %v774 = vpop.f32.mrb[0].mxu0
      %v775 = vadd.f32 %v279, %v774
      %v776 = vpop.f32.mrb[0].mxu0
      %777 = vmatprep.mubr.bf16.mxu0 %v486
      %778 = vmatmul.mubr.bf16.gmra.mrb[0].mxu0 %v485
      %v779 = vpop.f32.mrb[0].mxu0
      %v780 = vadd.f32 %v279, %v779
      %v781 = vpop.f32.mrb[0].mxu0
      %v782 = vpop.f32.mrb[0].mxu0
      %v783 = vadd.f32 %v279, %v782
      %v784 = vpop.f32.mrb[0].mxu0
      %785 = vmatprep.mubr.bf16.mxu0 %v488
      %786 = vmatmul.mubr.bf16.gmra.mrb[0].mxu0 %v487
      %v787 = vpop.f32.mrb[0].mxu0
      %v788 = vadd.f32 %v279, %v787
      %v789 = vpop.f32.mrb[0].mxu0
      %v790 = vpop.f32.mrb[0].mxu0
      %v791 = vadd.f32 %v279, %v790
      %v792 = vpop.f32.mrb[0].mxu0
      %793 = vmatprep.mubr.bf16.mxu0 %v490
      %794 = vmatmul.mubr.bf16.gmra.mrb[0].mxu0 %v489
      %v795 = vpop.f32.mrb[0].mxu0
      %v796 = vadd.f32 %v279, %v795
      %v797 = vpop.f32.mrb[0].mxu0
      %v798 = vpop.f32.mrb[0].mxu0
      %v799 = vadd.f32 %v279, %v798
      %v800 = vpop.f32.mrb[0].mxu0
      %801 = vmatprep.mubr.bf16.mxu0 %v492
      %802 = vmatmul.mubr.bf16.gmra.mrb[0].mxu0 %v491
      %v803 = vpop.f32.mrb[0].mxu0
      %v804 = vadd.f32 %v279, %v803
      %v805 = vpop.f32.mrb[0].mxu0
      %v806 = vpop.f32.mrb[0].mxu0
      %v807 = vadd.f32 %v279, %v806
      %v808 = vpop.f32.mrb[0].mxu0
      %809 = vmatprep.mubr.bf16.mxu0 %v494
      %810 = vmatmul.mubr.bf16.gmra.mrb[0].mxu0 %v493
      %v811 = vpop.f32.mrb[0].mxu0
      %v812 = vadd.f32 %v279, %v811
      %v813 = vpop.f32.mrb[0].mxu0
      %v814 = vpop.f32.mrb[0].mxu0
      %v815 = vadd.f32 %v279, %v814
      %v816 = vpop.f32.mrb[0].mxu0
      %817 = vmatprep.mubr.bf16.mxu0 %v496
      %818 = vmatmul.mubr.bf16.gmra.mrb[0].mxu0 %v495
      %v819 = vpop.f32.mrb[0].mxu0
      %v820 = vadd.f32 %v279, %v819
      %v821 = vpop.f32.mrb[0].mxu0
      %v822 = vpop.f32.mrb[0].mxu0
      %v823 = vadd.f32 %v279, %v822
      %v824 = vpop.f32.mrb[0].mxu0
      %825 = vmatprep.mubr.bf16.mxu0 %v498
      %826 = vmatmul.mubr.bf16.gmra.mrb[0].mxu0 %v497
      %v827 = vpop.f32.mrb[0].mxu0
      %v828 = vadd.f32 %v279, %v827
      %v829 = vpop.f32.mrb[0].mxu0
      %v830 = vpop.f32.mrb[0].mxu0
      %v831 = vadd.f32 %v279, %v830
      %v832 = vpop.f32.mrb[0].mxu0
      %833 = vmatprep.mubr.bf16.mxu0 %v500
      %834 = vmatmul.mubr.bf16.gmra.mrb[0].mxu0 %v499
      %v835 = vpop.f32.mrb[0].mxu0
      %v836 = vadd.f32 %v279, %v835
      %v837 = vpop.f32.mrb[0].mxu0
      %v838 = vpop.f32.mrb[0].mxu0
      %v839 = vadd.f32 %v279, %v838
      %v840 = vpop.f32.mrb[0].mxu0
      %841 = vmatprep.mubr.bf16.mxu0 %v502
      %842 = vmatmul.mubr.bf16.gmra.mrb[0].mxu0 %v501
      %v843 = vpop.f32.mrb[0].mxu0
      %v844 = vadd.f32 %v279, %v843
      %v845 = vpop.f32.mrb[0].mxu0
      %v846 = vpop.f32.mrb[0].mxu0
      %v847 = vadd.f32 %v279, %v846
      %v848 = vpop.f32.mrb[0].mxu0
      %849 = vmatprep.mubr.bf16.mxu0 %v504
      %850 = vmatmul.mubr.bf16.gmra.mrb[0].mxu0 %v503
      %v851 = vpop.f32.mrb[0].mxu0
      %v852 = vadd.f32 %v279, %v851
      %v853 = vpop.f32.mrb[0].mxu0
      %v854 = vpop.f32.mrb[0].mxu0
      %v855 = vadd.f32 %v279, %v854
      %v856 = vpop.f32.mrb[0].mxu0
      %857 = vmatprep.mubr.bf16.mxu0 %v506
      %858 = vmatmul.mubr.bf16.gmra.mrb[0].mxu0 %v505
      %v859 = vpop.f32.mrb[0].mxu0
      %v860 = vadd.f32 %v279, %v859
      %v861 = vpop.f32.mrb[0].mxu0
      %v862 = vpop.f32.mrb[0].mxu0
      %v863 = vadd.f32 %v279, %v862
      %v864 = vpop.f32.mrb[0].mxu0
      %865 = vmatprep.mubr.bf16.mxu0 %v508
      %866 = vmatmul.mubr.bf16.gmra.mrb[0].mxu0 %v507
      %v867 = vpop.f32.mrb[0].mxu0
      %v868 = vadd.f32 %v279, %v867
      %v869 = vpop.f32.mrb[0].mxu0
      %v870 = vpop.f32.mrb[0].mxu0
      %v871 = vadd.f32 %v279, %v870
      %v872 = vpop.f32.mrb[0].mxu0
      %873 = vmatprep.mubr.bf16.mxu0 %v510
      %874 = vmatmul.mubr.bf16.gmra.mrb[0].mxu0 %v509
      %v875 = vpop.f32.mrb[0].mxu0
      %v876 = vadd.f32 %v279, %v875
      %v877 = vpop.f32.mrb[0].mxu0
      %v878 = vpop.f32.mrb[0].mxu0
      %v879 = vadd.f32 %v279, %v878
      %v880 = vpop.f32.mrb[0].mxu0
      %881 = vmatprep.mubr.bf16.mxu0 %v512
      %882 = vmatmul.mubr.bf16.gmra.mrb[0].mxu0 %v511
      %v883 = vpop.f32.mrb[0].mxu0
      %v884 = vadd.f32 %v279, %v883
      %v885 = vpop.f32.mrb[0].mxu0
      %v886 = vpop.f32.mrb[0].mxu0
      %v887 = vadd.f32 %v279, %v886
      %v888 = vpop.f32.mrb[0].mxu0
      %889 = vmatprep.mubr.bf16.mxu0 %v514
      %890 = vmatmul.mubr.bf16.gmra.mrb[0].mxu0 %v513
      %v891 = vpop.f32.mrb[0].mxu0
      %v892 = vadd.f32 %v279, %v891
      %v893 = vpop.f32.mrb[0].mxu0
      %v894 = vpop.f32.mrb[0].mxu0
      %v895 = vadd.f32 %v279, %v894
      %v896 = vpop.f32.mrb[0].mxu0
      %897 = vmatprep.mubr.bf16.mxu0 %v516
      %898 = vmatmul.mubr.bf16.gmra.mrb[0].mxu0 %v515
      %v899 = vpop.f32.mrb[0].mxu0
      %v900 = vadd.f32 %v279, %v899
      %v901 = vpop.f32.mrb[0].mxu0
      %v902 = vpop.f32.mrb[0].mxu0
      %v903 = vadd.f32 %v279, %v902
      %v904 = vpop.f32.mrb[0].mxu0
      %905 = vmatprep.mubr.bf16.mxu0 %v518
      %906 = vmatmul.mubr.bf16.gmra.mrb[0].mxu0 %v517
      %v907 = vpop.f32.mrb[0].mxu0
      %v908 = vadd.f32 %v279, %v907
      %v909 = vpop.f32.mrb[0].mxu0
      %v910 = vpop.f32.mrb[0].mxu0
      %v911 = vadd.f32 %v279, %v910
      %v912 = vpop.f32.mrb[0].mxu0
      %913 = vmatprep.mubr.bf16.mxu0 %v520
      %914 = vmatmul.mubr.bf16.gmra.mrb[0].mxu0 %v519
      %v915 = vpop.f32.mrb[0].mxu0
      %v916 = vadd.f32 %v279, %v915
      %v917 = vpop.f32.mrb[0].mxu0
      %v918 = vpop.f32.mrb[0].mxu0
      %v919 = vadd.f32 %v279, %v918
      %v920 = vpop.f32.mrb[0].mxu0
      %921 = vmatprep.mubr.bf16.mxu0 %v522
      %922 = vmatmul.mubr.bf16.gmra.mrb[0].mxu0 %v521
      %v923 = vpop.f32.mrb[0].mxu0
      %v924 = vadd.f32 %v279, %v923
      %v925 = vpop.f32.mrb[0].mxu0
      %v926 = vpop.f32.mrb[0].mxu0
      %v927 = vadd.f32 %v279, %v926
      %v928 = vpop.f32.mrb[0].mxu0
      %929 = vmatprep.mubr.bf16.mxu0 %v524
      %930 = vmatmul.mubr.bf16.gmra.mrb[0].mxu0 %v523
      %v931 = vpop.f32.mrb[0].mxu0
      %v932 = vadd.f32 %v279, %v931
      %v933 = vpop.f32.mrb[0].mxu0
      %v934 = vpop.f32.mrb[0].mxu0
      %v935 = vadd.f32 %v279, %v934
      %v936 = vpop.f32.mrb[0].mxu0
      %937 = vmatprep.mubr.bf16.mxu0 %v526
      %938 = vmatmul.mubr.bf16.gmra.mrb[0].mxu0 %v525
      %v939 = vpop.f32.mrb[0].mxu0
      %v940 = vadd.f32 %v279, %v939
      %v941 = vpop.f32.mrb[0].mxu0
      %v942 = vpop.f32.mrb[0].mxu0
      %v943 = vadd.f32 %v279, %v942
      %v944 = vpop.f32.mrb[0].mxu0
      %945 = vmatprep.mubr.bf16.mxu0 %v528
      %946 = vmatmul.mubr.bf16.gmra.mrb[0].mxu0 %v527
      %v947 = vpop.f32.mrb[0].mxu0
      %v948 = vadd.f32 %v279, %v947
      %v949 = vpop.f32.mrb[0].mxu0
      %v950 = vpop.f32.mrb[0].mxu0
      %v951 = vadd.f32 %v279, %v950
      %v952 = vpop.f32.mrb[0].mxu0
      %953 = vmatprep.mubr.bf16.mxu0 %v530
      %954 = vmatmul.mubr.bf16.gmra.mrb[0].mxu0 %v529
      %v955 = vpop.f32.mrb[0].mxu0
      %v956 = vadd.f32 %v279, %v955
      %v957 = vpop.f32.mrb[0].mxu0
      %v958 = vpop.f32.mrb[0].mxu0
      %v959 = vadd.f32 %v279, %v958
      %v960 = vpop.f32.mrb[0].mxu0
      %961 = vmatprep.mubr.bf16.mxu0 %v532
      %962 = vmatmul.mubr.bf16.gmra.mrb[0].mxu0 %v531
      %v963 = vpop.f32.mrb[0].mxu0
      %v964 = vadd.f32 %v279, %v963
      %v965 = vpop.f32.mrb[0].mxu0
      %v966 = vpop.f32.mrb[0].mxu0
      %v967 = vadd.f32 %v279, %v966
      %v968 = vpop.f32.mrb[0].mxu0
      %969 = vmatprep.mubr.bf16.mxu0 %v534
      %970 = vmatmul.mubr.bf16.gmra.mrb[0].mxu0 %v533
      %v971 = vpop.f32.mrb[0].mxu0
      %v972 = vadd.f32 %v279, %v971
      %v973 = vpop.f32.mrb[0].mxu0
      %v974 = vpop.f32.mrb[0].mxu0
      %v975 = vadd.f32 %v279, %v974
      %v976 = vpop.f32.mrb[0].mxu0
      %977 = vmatprep.mubr.bf16.mxu0 %v536
      %978 = vmatmul.mubr.bf16.gmra.mrb[0].mxu0 %v535
      %v979 = vpop.f32.mrb[0].mxu0
      %v980 = vadd.f32 %v279, %v979
      %v981 = vpop.f32.mrb[0].mxu0
      %v982 = vpop.f32.mrb[0].mxu0
      %v983 = vadd.f32 %v279, %v982
      %v984 = vpop.f32.mrb[0].mxu0
      %985 = vdwg.mxu0
      %v986 = vmax.f32 %v732, 0.0
      %v987 = vmax.f32 %v735, 0.0
      %v988 = vmax.f32 %v740, 0.0
      %v989 = vmax.f32 %v743, 0.0
      %v990 = vmax.f32 %v748, 0.0
      %v991 = vmax.f32 %v751, 0.0
      %v992 = vmax.f32 %v756, 0.0
      %v993 = vmax.f32 %v759, 0.0
      %v994 = vmax.f32 %v764, 0.0
      %v995 = vmax.f32 %v767, 0.0
      %v996 = vmax.f32 %v772, 0.0
      %v997 = vmax.f32 %v775, 0.0
      %v998 = vmax.f32 %v780, 0.0
      %v999 = vmax.f32 %v783, 0.0
      %v1000 = vmax.f32 %v788, 0.0
      %v1001 = vmax.f32 %v791, 0.0
      %v1002 = vmax.f32 %v796, 0.0
      %v1003 = vmax.f32 %v799, 0.0
      %v1004 = vmax.f32 %v804, 0.0
      %v1005 = vmax.f32 %v807, 0.0
      %v1006 = vmax.f32 %v812, 0.0
      %v1007 = vmax.f32 %v815, 0.0
      %v1008 = vmax.f32 %v820, 0.0
      %v1009 = vmax.f32 %v823, 0.0
      %v1010 = vmax.f32 %v828, 0.0
      %v1011 = vmax.f32 %v831, 0.0
      %v1012 = vmax.f32 %v836, 0.0
      %v1013 = vmax.f32 %v839, 0.0
      %v1014 = vmax.f32 %v844, 0.0
      %v1015 = vmax.f32 %v847, 0.0
      %v1016 = vmax.f32 %v852, 0.0
      %v1017 = vmax.f32 %v855, 0.0
      %v1018 = vmax.f32 %v860, 0.0
      %v1019 = vmax.f32 %v863, 0.0
      %v1020 = vmax.f32 %v868, 0.0
      %v1021 = vmax.f32 %v871, 0.0
      %v1022 = vmax.f32 %v876, 0.0
      %v1023 = vmax.f32 %v879, 0.0
      %v1024 = vmax.f32 %v884, 0.0
      %v1025 = vmax.f32 %v887, 0.0
      %v1026 = vmax.f32 %v892, 0.0
      %v1027 = vmax.f32 %v895, 0.0
      %v1028 = vmax.f32 %v900, 0.0
      %v1029 = vmax.f32 %v903, 0.0
      %v1030 = vmax.f32 %v908, 0.0
      %v1031 = vmax.f32 %v911, 0.0
      %v1032 = vmax.f32 %v916, 0.0
      %v1033 = vmax.f32 %v919, 0.0
      %v1034 = vmax.f32 %v924, 0.0
      %v1035 = vmax.f32 %v927, 0.0
      %v1036 = vmax.f32 %v932, 0.0
      %v1037 = vmax.f32 %v935, 0.0
      %v1038 = vmax.f32 %v940, 0.0
      %v1039 = vmax.f32 %v943, 0.0
      %v1040 = vmax.f32 %v948, 0.0
      %v1041 = vmax.f32 %v951, 0.0
      %v1042 = vmax.f32 %v956, 0.0
      %v1043 = vmax.f32 %v959, 0.0
      %v1044 = vmax.f32 %v964, 0.0
      %v1045 = vmax.f32 %v967, 0.0
      %v1046 = vmax.f32 %v972, 0.0
      %v1047 = vmax.f32 %v975, 0.0
      %v1048 = vmax.f32 %v980, 0.0
      %v1049 = vmax.f32 %v983, 0.0
      %v1050 = vpack.c.bf16 %v987, %v986
      %v1051 = vpack.c.bf16 %v989, %v988
      %v1052 = vpack.c.bf16 %v991, %v990
      %v1053 = vpack.c.bf16 %v993, %v992
      %v1054 = vpack.c.bf16 %v995, %v994
      %v1055 = vpack.c.bf16 %v997, %v996
      %v1056 = vpack.c.bf16 %v999, %v998
      %v1057 = vpack.c.bf16 %v1001, %v1000
      %v1058 = vpack.c.bf16 %v1003, %v1002
      %v1059 = vpack.c.bf16 %v1005, %v1004
      %v1060 = vpack.c.bf16 %v1007, %v1006
      %v1061 = vpack.c.bf16 %v1009, %v1008
      %v1062 = vpack.c.bf16 %v1011, %v1010
      %v1063 = vpack.c.bf16 %v1013, %v1012
      %v1064 = vpack.c.bf16 %v1015, %v1014
      %v1065 = vpack.c.bf16 %v1017, %v1016
      %v1066 = vpack.c.bf16 %v1019, %v1018
      %v1067 = vpack.c.bf16 %v1021, %v1020
      %v1068 = vpack.c.bf16 %v1023, %v1022
      %v1069 = vpack.c.bf16 %v1025, %v1024
      %v1070 = vpack.c.bf16 %v1027, %v1026
      %v1071 = vpack.c.bf16 %v1029, %v1028
      %v1072 = vpack.c.bf16 %v1031, %v1030
      %v1073 = vpack.c.bf16 %v1033, %v1032
      %v1074 = vpack.c.bf16 %v1035, %v1034
      %v1075 = vpack.c.bf16 %v1037, %v1036
      %v1076 = vpack.c.bf16 %v1039, %v1038
      %v1077 = vpack.c.bf16 %v1041, %v1040
      %v1078 = vpack.c.bf16 %v1043, %v1042
      %v1079 = vpack.c.bf16 %v1045, %v1044
      %v1080 = vpack.c.bf16 %v1047, %v1046
      %v1081 = vpack.c.bf16 %v1049, %v1048
      %v1114 = vunpack.c.l.b16 %v1050
      %v1115 = vunpack.c.h.b16 %v1050
      %v1116 = vunpack.c.l.b16 %v1051
      %v1117 = vunpack.c.h.b16 %v1051
      %v1118 = vunpack.c.l.b16 %v1052
      %v1119 = vunpack.c.h.b16 %v1052
      %v1120 = vunpack.c.l.b16 %v1053
      %v1121 = vunpack.c.h.b16 %v1053
      %v1122 = vunpack.c.l.b16 %v1054
      %v1123 = vunpack.c.h.b16 %v1054
      %v1124 = vunpack.c.l.b16 %v1055
      %v1125 = vunpack.c.h.b16 %v1055
      %v1126 = vunpack.c.l.b16 %v1056
      %v1127 = vunpack.c.h.b16 %v1056
      %v1128 = vunpack.c.l.b16 %v1057
      %v1129 = vunpack.c.h.b16 %v1057
      %v1130 = vunpack.c.l.b16 %v1058
      %v1131 = vunpack.c.h.b16 %v1058
      %v1132 = vunpack.c.l.b16 %v1059
      %v1133 = vunpack.c.h.b16 %v1059
      %v1134 = vunpack.c.l.b16 %v1060
      %v1135 = vunpack.c.h.b16 %v1060
      %v1136 = vunpack.c.l.b16 %v1061
      %v1137 = vunpack.c.h.b16 %v1061
      %v1138 = vunpack.c.l.b16 %v1062
      %v1139 = vunpack.c.h.b16 %v1062
      %v1140 = vunpack.c.l.b16 %v1063
      %v1141 = vunpack.c.h.b16 %v1063
      %v1142 = vunpack.c.l.b16 %v1064
      %v1143 = vunpack.c.h.b16 %v1064
      %v1144 = vunpack.c.l.b16 %v1065
      %v1145 = vunpack.c.h.b16 %v1065
      %v1146 = vunpack.c.l.b16 %v1066
      %v1147 = vunpack.c.h.b16 %v1066
      %v1148 = vunpack.c.l.b16 %v1067
      %v1149 = vunpack.c.h.b16 %v1067
      %v1150 = vunpack.c.l.b16 %v1068
      %v1151 = vunpack.c.h.b16 %v1068
      %v1152 = vunpack.c.l.b16 %v1069
      %v1153 = vunpack.c.h.b16 %v1069
      %v1154 = vunpack.c.l.b16 %v1070
      %v1155 = vunpack.c.h.b16 %v1070
      %v1156 = vunpack.c.l.b16 %v1071
      %v1157 = vunpack.c.h.b16 %v1071
      %v1158 = vunpack.c.l.b16 %v1072
      %v1159 = vunpack.c.h.b16 %v1072
      %v1160 = vunpack.c.l.b16 %v1073
      %v1161 = vunpack.c.h.b16 %v1073
      %v1162 = vunpack.c.l.b16 %v1074
      %v1163 = vunpack.c.h.b16 %v1074
      %v1164 = vunpack.c.l.b16 %v1075
      %v1165 = vunpack.c.h.b16 %v1075
      %v1166 = vunpack.c.l.b16 %v1076
      %v1167 = vunpack.c.h.b16 %v1076
      %v1168 = vunpack.c.l.b16 %v1077
      %v1169 = vunpack.c.h.b16 %v1077
      %v1170 = vunpack.c.l.b16 %v1078
      %v1171 = vunpack.c.h.b16 %v1078
      %v1172 = vunpack.c.l.b16 %v1079
      %v1173 = vunpack.c.h.b16 %v1079
      %v1174 = vunpack.c.l.b16 %v1080
      %v1175 = vunpack.c.h.b16 %v1080
      %v1176 = vunpack.c.l.b16 %v1081
      %v1177 = vunpack.c.h.b16 %v1081
      %v1178 = vpack.c.b16 %v1114, %v1114
      %v1179 = vpack.c.b16 %v1115, %v1115
      %v1180 = vpack.c.b16 %v1116, %v1116
      %v1181 = vpack.c.b16 %v1117, %v1117
      %v1182 = vpack.c.b16 %v1118, %v1118
      %v1183 = vpack.c.b16 %v1119, %v1119
      %v1184 = vpack.c.b16 %v1120, %v1120
      %v1185 = vpack.c.b16 %v1121, %v1121
      %v1186 = vpack.c.b16 %v1122, %v1122
      %v1187 = vpack.c.b16 %v1123, %v1123
      %v1188 = vpack.c.b16 %v1124, %v1124
      %v1189 = vpack.c.b16 %v1125, %v1125
      %v1190 = vpack.c.b16 %v1126, %v1126
      %v1191 = vpack.c.b16 %v1127, %v1127
      %v1192 = vpack.c.b16 %v1128, %v1128
      %v1193 = vpack.c.b16 %v1129, %v1129
      %v1194 = vpack.c.b16 %v1130, %v1130
      %v1195 = vpack.c.b16 %v1131, %v1131
      %v1196 = vpack.c.b16 %v1132, %v1132
      %v1197 = vpack.c.b16 %v1133, %v1133
      %v1198 = vpack.c.b16 %v1134, %v1134
      %v1199 = vpack.c.b16 %v1135, %v1135
      %v1200 = vpack.c.b16 %v1136, %v1136
      %v1201 = vpack.c.b16 %v1137, %v1137
      %v1202 = vpack.c.b16 %v1138, %v1138
      %v1203 = vpack.c.b16 %v1139, %v1139
      %v1204 = vpack.c.b16 %v1140, %v1140
      %v1205 = vpack.c.b16 %v1141, %v1141
      %v1206 = vpack.c.b16 %v1142, %v1142
      %v1207 = vpack.c.b16 %v1143, %v1143
      %v1208 = vpack.c.b16 %v1144, %v1144
      %v1209 = vpack.c.b16 %v1145, %v1145
      %v1210 = vpack.c.b16 %v1146, %v1146
      %v1211 = vpack.c.b16 %v1147, %v1147
      %v1212 = vpack.c.b16 %v1148, %v1148
      %v1213 = vpack.c.b16 %v1149, %v1149
      %v1214 = vpack.c.b16 %v1150, %v1150
      %v1215 = vpack.c.b16 %v1151, %v1151
      %v1216 = vpack.c.b16 %v1152, %v1152
      %v1217 = vpack.c.b16 %v1153, %v1153
      %v1218 = vpack.c.b16 %v1154, %v1154
      %v1219 = vpack.c.b16 %v1155, %v1155
      %v1220 = vpack.c.b16 %v1156, %v1156
      %v1221 = vpack.c.b16 %v1157, %v1157
      %v1222 = vpack.c.b16 %v1158, %v1158
      %v1223 = vpack.c.b16 %v1159, %v1159
      %v1224 = vpack.c.b16 %v1160, %v1160
      %v1225 = vpack.c.b16 %v1161, %v1161
      %v1226 = vpack.c.b16 %v1162, %v1162
      %v1227 = vpack.c.b16 %v1163, %v1163
      %v1228 = vpack.c.b16 %v1164, %v1164
      %v1229 = vpack.c.b16 %v1165, %v1165
      %v1230 = vpack.c.b16 %v1166, %v1166
      %v1231 = vpack.c.b16 %v1167, %v1167
      %v1232 = vpack.c.b16 %v1168, %v1168
      %v1233 = vpack.c.b16 %v1169, %v1169
      %v1234 = vpack.c.b16 %v1170, %v1170
      %v1235 = vpack.c.b16 %v1171, %v1171
      %v1236 = vpack.c.b16 %v1172, %v1172
      %v1237 = vpack.c.b16 %v1173, %v1173
      %v1238 = vpack.c.b16 %v1174, %v1174
      %v1239 = vpack.c.b16 %v1175, %v1175
      %v1240 = vpack.c.b16 %v1176, %v1176
      %v1241 = vpack.c.b16 %v1177, %v1177
      %1306 = vst [vmem:[%s175] sm:$0xf] %v1178
      %1307 = vst [vmem:[%s175 + $0x4] sm:$0xf] %v1179
      %1308 = vst [vmem:[%s175 + $0x8] sm:$0xf] %v1180
      %1309 = vst [vmem:[%s175 + $0xc] sm:$0xf] %v1181
      %1310 = vst [vmem:[%s175 + $0x10] sm:$0xf] %v1182
      %1311 = vst [vmem:[%s175 + $0x14] sm:$0xf] %v1183
      %1312 = vst [vmem:[%s175 + $0x18] sm:$0xf] %v1184
      %1313 = vst [vmem:[%s175 + $0x1c] sm:$0xf] %v1185
      %1314 = vst [vmem:[%s175 + $0x20] sm:$0xf] %v1186
      %1315 = vst [vmem:[%s175 + $0x24] sm:$0xf] %v1187
      %1316 = vst [vmem:[%s175 + $0x28] sm:$0xf] %v1188
      %1317 = vst [vmem:[%s175 + $0x2c] sm:$0xf] %v1189
      %1318 = vst [vmem:[%s175 + $0x30] sm:$0xf] %v1190
      %1319 = vst [vmem:[%s175 + $0x34] sm:$0xf] %v1191
      %1320 = vst [vmem:[%s175 + $0x38] sm:$0xf] %v1192
      %1321 = vst [vmem:[%s175 + $0x3c] sm:$0xf] %v1193
      %1322 = vst [vmem:[%s175 + $0x40] sm:$0xf] %v1194
      %1323 = vst [vmem:[%s175 + $0x44] sm:$0xf] %v1195
      %1324 = vst [vmem:[%s175 + $0x48] sm:$0xf] %v1196
      %1325 = vst [vmem:[%s175 + $0x4c] sm:$0xf] %v1197
      %1326 = vst [vmem:[%s175 + $0x50] sm:$0xf] %v1198
      %1327 = vst [vmem:[%s175 + $0x54] sm:$0xf] %v1199
      %1328 = vst [vmem:[%s175 + $0x58] sm:$0xf] %v1200
      %1329 = vst [vmem:[%s175 + $0x5c] sm:$0xf] %v1201
      %1330 = vst [vmem:[%s175 + $0x60] sm:$0xf] %v1202
      %1331 = vst [vmem:[%s175 + $0x64] sm:$0xf] %v1203
      %1332 = vst [vmem:[%s175 + $0x68] sm:$0xf] %v1204
      %1333 = vst [vmem:[%s175 + $0x6c] sm:$0xf] %v1205
      %1334 = vst [vmem:[%s175 + $0x70] sm:$0xf] %v1206
      %1335 = vst [vmem:[%s175 + $0x74] sm:$0xf] %v1207
      %1336 = vst [vmem:[%s175 + $0x78] sm:$0xf] %v1208
      %1337 = vst [vmem:[%s175 + $0x7c] sm:$0xf] %v1209
      %1338 = vst [vmem:[%s175 + $0x80] sm:$0xf] %v1210
      %1339 = vst [vmem:[%s175 + $0x84] sm:$0xf] %v1211
      %1340 = vst [vmem:[%s175 + $0x88] sm:$0xf] %v1212
      %1341 = vst [vmem:[%s175 + $0x8c] sm:$0xf] %v1213
      %1342 = vst [vmem:[%s175 + $0x90] sm:$0xf] %v1214
      %1343 = vst [vmem:[%s175 + $0x94] sm:$0xf] %v1215
      %1344 = vst [vmem:[%s175 + $0x98] sm:$0xf] %v1216
      %1345 = vst [vmem:[%s175 + $0x9c] sm:$0xf] %v1217
      %1346 = vst [vmem:[%s175 + $0xa0] sm:$0xf] %v1218
      %1347 = vst [vmem:[%s175 + $0xa4] sm:$0xf] %v1219
      %1348 = vst [vmem:[%s175 + $0xa8] sm:$0xf] %v1220
      %1349 = vst [vmem:[%s175 + $0xac] sm:$0xf] %v1221
      %1350 = vst [vmem:[%s175 + $0xb0] sm:$0xf] %v1222
      %1351 = vst [vmem:[%s175 + $0xb4] sm:$0xf] %v1223
      %1352 = vst [vmem:[%s175 + $0xb8] sm:$0xf] %v1224
      %1353 = vst [vmem:[%s175 + $0xbc] sm:$0xf] %v1225
      %1354 = vst [vmem:[%s175 + $0xc0] sm:$0xf] %v1226
      %1355 = vst [vmem:[%s175 + $0xc4] sm:$0xf] %v1227
      %1356 = vst [vmem:[%s175 + $0xc8] sm:$0xf] %v1228
      %1357 = vst [vmem:[%s175 + $0xcc] sm:$0xf] %v1229
      %1358 = vst [vmem:[%s175 + $0xd0] sm:$0xf] %v1230
      %1359 = vst [vmem:[%s175 + $0xd4] sm:$0xf] %v1231
      %1360 = vst [vmem:[%s175 + $0xd8] sm:$0xf] %v1232
      %1361 = vst [vmem:[%s175 + $0xdc] sm:$0xf] %v1233
      %1362 = vst [vmem:[%s175 + $0xe0] sm:$0xf] %v1234
      %1363 = vst [vmem:[%s175 + $0xe4] sm:$0xf] %v1235
      %1364 = vst [vmem:[%s175 + $0xe8] sm:$0xf] %v1236
      %1365 = vst [vmem:[%s175 + $0xec] sm:$0xf] %v1237
      %1366 = vst [vmem:[%s175 + $0xf0] sm:$0xf] %v1238
      %1367 = vst [vmem:[%s175 + $0xf4] sm:$0xf] %v1239
      %1368 = vst [vmem:[%s175 + $0xf8] sm:$0xf] %v1240
      %1369 = vst [vmem:[%s175 + $0xfc] sm:$0xf] %v1241
      %s1370 = smul.u32 64, %s14
      %p1371 = scmp.lt.s32.totalorder %s1370, 127
      %s1372 = scalar_select %p1371, %s1370, 127
      %s1373 = smul.addr %s1372, 4
      %s1374 = scalar_lea.vmem %s3, %s1373
      // Predicated region
      $region33: #{cnn_base_forward.4} parent=31 // pred_check
        %p1375 = pneg %p100
      $region34: #{cnn_base_forward.4} parent=31 // pred_check_branch
        %1377 = sbr.rel (%p1375) target = $region36
      $region35: #{cnn_base_forward.4} parent=31 // pred_region
        %s1378 = smul.u32 64, %s14
      $region36: #{cnn_base_forward.4} parent=31 // pred_fallthru
        _
    $region32: #{cnn_base_forward.4} parent=5 // pred_fallthru
      _
    %p1379 = scmp.le.s32.totalorder 2, %s9
    // Predicated region
    $region37: #{cnn_base_forward.4} parent=5 // pred_check
      %p1380 = pneg %p1379
    $region38: #{cnn_base_forward.4} parent=5 // pred_check_branch
      %1382 = sbr.rel (%p1380) target = $region40
    $region39: #{cnn_base_forward.4} parent=5 // pred_region
      %s1383 = ssub.s32 %s9, 2
      // Predicated region
      $region41: #{cnn_base_forward.4} parent=39 // pred_check
        %p1384 = pneg %p106
      $region42: #{cnn_base_forward.4} parent=39 // pred_check_branch
        %1386 = sbr.rel (%p1384) target = $region44
      $region43: #{cnn_base_forward.4} parent=39 // pred_region
        %s1387 = smul.u32 64, %s15
        %p1388 = scmp.lt.s32.totalorder %s1387, 127
        %s1389 = scalar_select %p1388, %s1387, 127
        %s1390 = smul.addr %s1389, 4
        %s1391 = scalar_lea.vmem %s3, %s1390
      $region44: #{cnn_base_forward.4} parent=39 // pred_fallthru
        _
    $region40: #{cnn_base_forward.4} parent=5 // pred_fallthru
      _
  $region6: #{cnn_base_forward.4} parent=0 // loop_footer
    %s13 = sadd.s32 1, %s9
  $region7: #{cnn_base_forward.4} parent=0 // loop_footer_branch
    %8 = sbr.rel target = $region3
  $region8: #{cnn_base_forward.4} parent=0 // loop_exit
    _

// kernel: cnn_base_forward.5
$region0: #{cnn_base_forward.5}
  #allocation0 [shape = 'u32[]', space=smem, size = 0x4, offset = 0x4, fixed_abs, tag = 'smem constant byte address 0x4 - core index']
  #allocation1 [shape = 'u32[144,128]{1,0:T(1,128)}', space=vmem, size = 0x12000, scoped, tag = 'internal scratch']
  %s0 = inlined_call_operand.vmem [shape: bf16[168,512], index: 0, kind: input, shape index: {}]
  %s1 = inlined_call_operand.vmem [shape: bf16[512,128], index: 1, kind: input, shape index: {}]
  %s2 = inlined_call_operand.vmem [shape: f32[1,128], index: 2, kind: input, shape index: {}]
  %s3 = inlined_call_operand.vmem [shape: bf16[168,128], index: 3, kind: output, shape index: {}]
  %s4 = sld [smem:[#allocation0]]
  $region22: #{cnn_base_forward.5} parent=0
    _
  %s6 = ssub.s32 1, %s4
  %s7 = scalar_select 0, %s6, %s4
  // Predicated region
  $region2: #{cnn_base_forward.5} parent=0 // pred_check
    _
  $region3: #{cnn_base_forward.5} parent=0 // pred_check_branch
    %9 = sbr.rel (0) target = $region5
  $region4: #{cnn_base_forward.5} parent=0 // pred_region
    _
  $region5: #{cnn_base_forward.5} parent=0 // pred_fallthru
    _
  // Predicated region
  $region6: #{cnn_base_forward.5} parent=0 // pred_check
    _
  $region7: #{cnn_base_forward.5} parent=0 // pred_check_branch
    %11 = sbr.rel (0) target = $region9
  $region8: #{cnn_base_forward.5} parent=0 // pred_region
    _
  $region9: #{cnn_base_forward.5} parent=0 // pred_fallthru
    _
  // Predicated region
  $region10: #{cnn_base_forward.5} parent=0 // pred_check
    _
  $region11: #{cnn_base_forward.5} parent=0 // pred_check_branch
    %13 = sbr.rel (0) target = $region13
  $region12: #{cnn_base_forward.5} parent=0 // pred_region
    _
  $region13: #{cnn_base_forward.5} parent=0 // pred_fallthru
    _
  %v15 = vld [vmem:[%s0] sm:$0xff]
  %v16 = vld [vmem:[%s0 + $0x8] sm:$0xff]
  %v17 = vld [vmem:[%s0 + $0x10] sm:$0xff]
  %v18 = vld [vmem:[%s0 + $0x18] sm:$0xff]
  %v19 = vld [vmem:[%s0 + $0x20] sm:$0xff]
  %v20 = vld [vmem:[%s0 + $0x28] sm:$0xff]
  %v21 = vld [vmem:[%s0 + $0x30] sm:$0xff]
  %v22 = vld [vmem:[%s0 + $0x38] sm:$0xff]
  %v23 = vld [vmem:[%s0 + $0x40] sm:$0xff]
  %v24 = vld [vmem:[%s0 + $0x48] sm:$0xff]
  %v25 = vld [vmem:[%s0 + $0x50] sm:$0xff]
  %v26 = vld [vmem:[%s0 + $0x58] sm:$0xff]
  %v27 = vld [vmem:[%s0 + $0x60] sm:$0xff]
  %v28 = vld [vmem:[%s0 + $0x68] sm:$0xff]
  %v29 = vld [vmem:[%s0 + $0x70] sm:$0xff]
  %v30 = vld [vmem:[%s0 + $0x78] sm:$0xff]
  %v31 = vld [vmem:[%s0 + $0x80] sm:$0xff]
  %v32 = vld [vmem:[%s0 + $0x88] sm:$0xff]
  %v33 = vld [vmem:[%s0 + $0x90] sm:$0xff]
  %v34 = vld [vmem:[%s0 + $0x98] sm:$0xff]
  %v35 = vld [vmem:[%s0 + $0xa0] sm:$0xff]
  %v36 = vld [vmem:[%s0 + $0xa8] sm:$0xff]
  %v37 = vld [vmem:[%s0 + $0xb0] sm:$0xff]
  %v38 = vld [vmem:[%s0 + $0xb8] sm:$0xff]
  %v39 = vld [vmem:[%s0 + $0xc0] sm:$0xff]
  %v40 = vld [vmem:[%s0 + $0xc8] sm:$0xff]
  %v41 = vld [vmem:[%s0 + $0xd0] sm:$0xff]
  %v42 = vld [vmem:[%s0 + $0xd8] sm:$0xff]
  %v43 = vld [vmem:[%s0 + $0xe0] sm:$0xff]
  %v44 = vld [vmem:[%s0 + $0xe8] sm:$0xff]
  %v45 = vld [vmem:[%s0 + $0xf0] sm:$0xff]
  %v46 = vld [vmem:[%s0 + $0xf8] sm:$0xff]
  %v47 = vld [vmem:[%s0 + $0x100] sm:$0xff]
  %v48 = vld [vmem:[%s0 + $0x108] sm:$0xff]
  %v49 = vld [vmem:[%s0 + $0x110] sm:$0xff]
  %v50 = vld [vmem:[%s0 + $0x118] sm:$0xff]
  %v51 = vld [vmem:[%s0 + $0x120] sm:$0xff]
  %v52 = vld [vmem:[%s0 + $0x128] sm:$0xff]
  %v53 = vld [vmem:[%s0 + $0x130] sm:$0xff]
  %v54 = vld [vmem:[%s0 + $0x138] sm:$0xff]
  %v55 = vld [vmem:[%s0 + $0x140] sm:$0xff]
  %v56 = vld [vmem:[%s0 + $0x148] sm:$0xff]
  %v57 = vld [vmem:[%s1] sm:$0xf]
  %v58 = vld [vmem:[%s1 + $0x4] sm:$0xf]
  %v59 = vld [vmem:[%s1 + $0x8] sm:$0xf]
  %v60 = vld [vmem:[%s1 + $0xc] sm:$0xf]
  %v61 = vld [vmem:[%s1 + $0x10] sm:$0xf]
  %v62 = vld [vmem:[%s1 + $0x14] sm:$0xf]
  %v63 = vld [vmem:[%s1 + $0x18] sm:$0xf]
  %v64 = vld [vmem:[%s1 + $0x1c] sm:$0xf]
  %v65 = vld [vmem:[%s1 + $0x20] sm:$0xf]
  %v66 = vld [vmem:[%s1 + $0x24] sm:$0xf]
  %v67 = vld [vmem:[%s1 + $0x28] sm:$0xf]
  %v68 = vld [vmem:[%s1 + $0x2c] sm:$0xf]
  %v69 = vld [vmem:[%s1 + $0x30] sm:$0xf]
  %v70 = vld [vmem:[%s1 + $0x34] sm:$0xf]
  %v71 = vld [vmem:[%s1 + $0x38] sm:$0xf]
  %v72 = vld [vmem:[%s1 + $0x3c] sm:$0xf]
  %v73 = vld [vmem:[%s1 + $0x40] sm:$0xf]
  %v74 = vld [vmem:[%s1 + $0x44] sm:$0xf]
  %v75 = vld [vmem:[%s1 + $0x48] sm:$0xf]
  %v76 = vld [vmem:[%s1 + $0x4c] sm:$0xf]
  %v77 = vld [vmem:[%s1 + $0x50] sm:$0xf]
  %v78 = vld [vmem:[%s1 + $0x54] sm:$0xf]
  %v79 = vld [vmem:[%s1 + $0x58] sm:$0xf]
  %v80 = vld [vmem:[%s1 + $0x5c] sm:$0xf]
  %v81 = vld [vmem:[%s1 + $0x60] sm:$0xf]
  %v82 = vld [vmem:[%s1 + $0x64] sm:$0xf]
  %v83 = vld [vmem:[%s1 + $0x68] sm:$0xf]
  %v84 = vld [vmem:[%s1 + $0x6c] sm:$0xf]
  %v85 = vld [vmem:[%s1 + $0x70] sm:$0xf]
  %v86 = vld [vmem:[%s1 + $0x74] sm:$0xf]
  %v87 = vld [vmem:[%s1 + $0x78] sm:$0xf]
  %v88 = vld [vmem:[%s1 + $0x7c] sm:$0xf]
  %v89 = vld [vmem:[%s1 + $0x80] sm:$0xf]
  %v90 = vld [vmem:[%s1 + $0x84] sm:$0xf]
  %v91 = vld [vmem:[%s1 + $0x88] sm:$0xf]
  %v92 = vld [vmem:[%s1 + $0x8c] sm:$0xf]
  %v93 = vld [vmem:[%s1 + $0x90] sm:$0xf]
  %v94 = vld [vmem:[%s1 + $0x94] sm:$0xf]
  %v95 = vld [vmem:[%s1 + $0x98] sm:$0xf]
  %v96 = vld [vmem:[%s1 + $0x9c] sm:$0xf]
  %v97 = vld [vmem:[%s1 + $0xa0] sm:$0xf]
  %v98 = vld [vmem:[%s1 + $0xa4] sm:$0xf]
  %v99 = vld [vmem:[%s1 + $0xa8] sm:$0xf]
  %v100 = vld [vmem:[%s1 + $0xac] sm:$0xf]
  %v101 = vld [vmem:[%s1 + $0xb0] sm:$0xf]
  %v102 = vld [vmem:[%s1 + $0xb4] sm:$0xf]
  %v103 = vld [vmem:[%s1 + $0xb8] sm:$0xf]
  %v104 = vld [vmem:[%s1 + $0xbc] sm:$0xf]
  %v105 = vld [vmem:[%s1 + $0xc0] sm:$0xf]
  %v106 = vld [vmem:[%s1 + $0xc4] sm:$0xf]
  %v107 = vld [vmem:[%s1 + $0xc8] sm:$0xf]
  %v108 = vld [vmem:[%s1 + $0xcc] sm:$0xf]
  %v109 = vld [vmem:[%s1 + $0xd0] sm:$0xf]
  %v110 = vld [vmem:[%s1 + $0xd4] sm:$0xf]
  %v111 = vld [vmem:[%s1 + $0xd8] sm:$0xf]
  %v112 = vld [vmem:[%s1 + $0xdc] sm:$0xf]
  %v113 = vld [vmem:[%s1 + $0xe0] sm:$0xf]
  %v114 = vld [vmem:[%s1 + $0xe4] sm:$0xf]
  %v115 = vld [vmem:[%s1 + $0xe8] sm:$0xf]
  %v116 = vld [vmem:[%s1 + $0xec] sm:$0xf]
  %v117 = vld [vmem:[%s1 + $0xf0] sm:$0xf]
  %v118 = vld [vmem:[%s1 + $0xf4] sm:$0xf]
  %v119 = vld [vmem:[%s1 + $0xf8] sm:$0xf]
  %v120 = vld [vmem:[%s1 + $0xfc] sm:$0xf]
  %v121 = vld [vmem:[%s2] sm:$0x1]
  %v123 = vlaneseq
  %v124 = vshrl.u32 %v123, 7
  %v125 = vsub.s32 0, %v124
  %v126 = vrot.slane %v121, %v125
  %v170 = vunpack.c.l.b16 %v15
  %v171 = vunpack.c.h.b16 %v15
  %v172 = vunpack.c.l.b16 %v16
  %v173 = vunpack.c.h.b16 %v16
  %v174 = vunpack.c.l.b16 %v17
  %v175 = vunpack.c.h.b16 %v17
  %v176 = vunpack.c.l.b16 %v18
  %v177 = vunpack.c.h.b16 %v18
  %v178 = vunpack.c.l.b16 %v19
  %v179 = vunpack.c.h.b16 %v19
  %v180 = vunpack.c.l.b16 %v20
  %v181 = vunpack.c.h.b16 %v20
  %v182 = vunpack.c.l.b16 %v21
  %v183 = vunpack.c.h.b16 %v21
  %v184 = vunpack.c.l.b16 %v22
  %v185 = vunpack.c.h.b16 %v22
  %v186 = vunpack.c.l.b16 %v23
  %v187 = vunpack.c.h.b16 %v23
  %v188 = vunpack.c.l.b16 %v24
  %v189 = vunpack.c.h.b16 %v24
  %v190 = vunpack.c.l.b16 %v25
  %v191 = vunpack.c.h.b16 %v25
  %v192 = vunpack.c.l.b16 %v26
  %v193 = vunpack.c.h.b16 %v26
  %v194 = vunpack.c.l.b16 %v27
  %v195 = vunpack.c.h.b16 %v27
  %v196 = vunpack.c.l.b16 %v28
  %v197 = vunpack.c.h.b16 %v28
  %v198 = vunpack.c.l.b16 %v29
  %v199 = vunpack.c.h.b16 %v29
  %v200 = vunpack.c.l.b16 %v30
  %v201 = vunpack.c.h.b16 %v30
  %v202 = vunpack.c.l.b16 %v31
  %v203 = vunpack.c.h.b16 %v31
  %v204 = vunpack.c.l.b16 %v32
  %v205 = vunpack.c.h.b16 %v32
  %v206 = vunpack.c.l.b16 %v33
  %v207 = vunpack.c.h.b16 %v33
  %v208 = vunpack.c.l.b16 %v34
  %v209 = vunpack.c.h.b16 %v34
  %v210 = vunpack.c.l.b16 %v35
  %v211 = vunpack.c.h.b16 %v35
  %v212 = vunpack.c.l.b16 %v36
  %v213 = vunpack.c.h.b16 %v36
  %v214 = vunpack.c.l.b16 %v37
  %v215 = vunpack.c.h.b16 %v37
  %v216 = vunpack.c.l.b16 %v38
  %v217 = vunpack.c.h.b16 %v38
  %v218 = vunpack.c.l.b16 %v39
  %v219 = vunpack.c.h.b16 %v39
  %v220 = vunpack.c.l.b16 %v40
  %v221 = vunpack.c.h.b16 %v40
  %v222 = vunpack.c.l.b16 %v41
  %v223 = vunpack.c.h.b16 %v41
  %v224 = vunpack.c.l.b16 %v42
  %v225 = vunpack.c.h.b16 %v42
  %v226 = vunpack.c.l.b16 %v43
  %v227 = vunpack.c.h.b16 %v43
  %v228 = vunpack.c.l.b16 %v44
  %v229 = vunpack.c.h.b16 %v44
  %v230 = vunpack.c.l.b16 %v45
  %v231 = vunpack.c.h.b16 %v45
  %v232 = vunpack.c.l.b16 %v46
  %v233 = vunpack.c.h.b16 %v46
  %v234 = vunpack.c.l.b16 %v47
  %v235 = vunpack.c.h.b16 %v47
  %v236 = vunpack.c.l.b16 %v48
  %v237 = vunpack.c.h.b16 %v48
  %v238 = vunpack.c.l.b16 %v49
  %v239 = vunpack.c.h.b16 %v49
  %v240 = vunpack.c.l.b16 %v50
  %v241 = vunpack.c.h.b16 %v50
  %v242 = vunpack.c.l.b16 %v51
  %v243 = vunpack.c.h.b16 %v51
  %v244 = vunpack.c.l.b16 %v52
  %v245 = vunpack.c.h.b16 %v52
  %v246 = vunpack.c.l.b16 %v53
  %v247 = vunpack.c.h.b16 %v53
  %v248 = vunpack.c.l.b16 %v54
  %v249 = vunpack.c.h.b16 %v54
  %v250 = vunpack.c.l.b16 %v55
  %v251 = vunpack.c.h.b16 %v55
  %v252 = vunpack.c.l.b16 %v56
  %v253 = vunpack.c.h.b16 %v56
  %v254 = vpack.c.b16 %v174, %v170
  %v255 = vpack.c.b16 %v175, %v171
  %v256 = vpack.c.b16 %v176, %v172
  %v257 = vpack.c.b16 %v177, %v173
  %v258 = vpack.c.b16 %v182, %v178
  %v259 = vpack.c.b16 %v183, %v179
  %v260 = vpack.c.b16 %v184, %v180
  %v261 = vpack.c.b16 %v185, %v181
  %v262 = vpack.c.b16 %v190, %v186
  %v263 = vpack.c.b16 %v191, %v187
  %v264 = vpack.c.b16 %v192, %v188
  %v265 = vpack.c.b16 %v193, %v189
  %v266 = vpack.c.b16 %v198, %v194
  %v267 = vpack.c.b16 %v199, %v195
  %v268 = vpack.c.b16 %v200, %v196
  %v269 = vpack.c.b16 %v201, %v197
  %v270 = vpack.c.b16 %v206, %v202
  %v271 = vpack.c.b16 %v207, %v203
  %v272 = vpack.c.b16 %v208, %v204
  %v273 = vpack.c.b16 %v209, %v205
  %v274 = vpack.c.b16 %v214, %v210
  %v275 = vpack.c.b16 %v215, %v211
  %v276 = vpack.c.b16 %v216, %v212
  %v277 = vpack.c.b16 %v217, %v213
  %v278 = vpack.c.b16 %v222, %v218
  %v279 = vpack.c.b16 %v223, %v219
  %v280 = vpack.c.b16 %v224, %v220
  %v281 = vpack.c.b16 %v225, %v221
  %v282 = vpack.c.b16 %v230, %v226
  %v283 = vpack.c.b16 %v231, %v227
  %v284 = vpack.c.b16 %v232, %v228
  %v285 = vpack.c.b16 %v233, %v229
  %v286 = vpack.c.b16 %v238, %v234
  %v287 = vpack.c.b16 %v239, %v235
  %v288 = vpack.c.b16 %v240, %v236
  %v289 = vpack.c.b16 %v241, %v237
  %v290 = vpack.c.b16 %v246, %v242
  %v291 = vpack.c.b16 %v247, %v243
  %v292 = vpack.c.b16 %v248, %v244
  %v293 = vpack.c.b16 %v249, %v245
  %v294 = vpack.c.b16 %v250, %v250
  %v295 = vpack.c.b16 %v251, %v251
  %v296 = vpack.c.b16 %v252, %v252
  %v297 = vpack.c.b16 %v253, %v253
  %v406 = vunpack.c.l.b16 %v57
  %v407 = vunpack.c.l.b16 %v58
  %v408 = vunpack.c.l.b16 %v59
  %v409 = vunpack.c.l.b16 %v60
  %v410 = vunpack.c.l.b16 %v61
  %v411 = vunpack.c.l.b16 %v62
  %v412 = vunpack.c.l.b16 %v63
  %v413 = vunpack.c.l.b16 %v64
  %v414 = vunpack.c.l.b16 %v65
  %v415 = vunpack.c.l.b16 %v66
  %v416 = vunpack.c.l.b16 %v67
  %v417 = vunpack.c.l.b16 %v68
  %v418 = vunpack.c.l.b16 %v69
  %v419 = vunpack.c.l.b16 %v70
  %v420 = vunpack.c.l.b16 %v71
  %v421 = vunpack.c.l.b16 %v72
  %v422 = vunpack.c.l.b16 %v73
  %v423 = vunpack.c.l.b16 %v74
  %v424 = vunpack.c.l.b16 %v75
  %v425 = vunpack.c.l.b16 %v76
  %v426 = vunpack.c.l.b16 %v77
  %v427 = vunpack.c.l.b16 %v78
  %v428 = vunpack.c.l.b16 %v79
  %v429 = vunpack.c.l.b16 %v80
  %v430 = vunpack.c.l.b16 %v81
  %v431 = vunpack.c.l.b16 %v82
  %v432 = vunpack.c.l.b16 %v83
  %v433 = vunpack.c.l.b16 %v84
  %v434 = vunpack.c.l.b16 %v85
  %v435 = vunpack.c.l.b16 %v86
  %v436 = vunpack.c.l.b16 %v87
  %v437 = vunpack.c.l.b16 %v88
  %v438 = vunpack.c.l.b16 %v89
  %v439 = vunpack.c.l.b16 %v90
  %v440 = vunpack.c.l.b16 %v91
  %v441 = vunpack.c.l.b16 %v92
  %v442 = vunpack.c.l.b16 %v93
  %v443 = vunpack.c.l.b16 %v94
  %v444 = vunpack.c.l.b16 %v95
  %v445 = vunpack.c.l.b16 %v96
  %v446 = vunpack.c.l.b16 %v97
  %v447 = vunpack.c.l.b16 %v98
  %v448 = vunpack.c.l.b16 %v99
  %v449 = vunpack.c.l.b16 %v100
  %v450 = vunpack.c.l.b16 %v101
  %v451 = vunpack.c.l.b16 %v102
  %v452 = vunpack.c.l.b16 %v103
  %v453 = vunpack.c.l.b16 %v104
  %v454 = vunpack.c.l.b16 %v105
  %v455 = vunpack.c.l.b16 %v106
  %v456 = vunpack.c.l.b16 %v107
  %v457 = vunpack.c.l.b16 %v108
  %v458 = vunpack.c.l.b16 %v109
  %v459 = vunpack.c.l.b16 %v110
  %v460 = vunpack.c.l.b16 %v111
  %v461 = vunpack.c.l.b16 %v112
  %v462 = vunpack.c.l.b16 %v113
  %v463 = vunpack.c.l.b16 %v114
  %v464 = vunpack.c.l.b16 %v115
  %v465 = vunpack.c.l.b16 %v116
  %v466 = vunpack.c.l.b16 %v117
  %v467 = vunpack.c.l.b16 %v118
  %v468 = vunpack.c.l.b16 %v119
  %v469 = vunpack.c.l.b16 %v120
  %v470 = vpack.c.b16 %v407, %v406
  %v471 = vpack.c.b16 %v409, %v408
  %v472 = vpack.c.b16 %v411, %v410
  %v473 = vpack.c.b16 %v413, %v412
  %v474 = vpack.c.b16 %v415, %v414
  %v475 = vpack.c.b16 %v417, %v416
  %v476 = vpack.c.b16 %v419, %v418
  %v477 = vpack.c.b16 %v421, %v420
  %v478 = vpack.c.b16 %v423, %v422
  %v479 = vpack.c.b16 %v425, %v424
  %v480 = vpack.c.b16 %v427, %v426
  %v481 = vpack.c.b16 %v429, %v428
  %v482 = vpack.c.b16 %v431, %v430
  %v483 = vpack.c.b16 %v433, %v432
  %v484 = vpack.c.b16 %v435, %v434
  %v485 = vpack.c.b16 %v437, %v436
  %v486 = vpack.c.b16 %v439, %v438
  %v487 = vpack.c.b16 %v441, %v440
  %v488 = vpack.c.b16 %v443, %v442
  %v489 = vpack.c.b16 %v445, %v444
  %v490 = vpack.c.b16 %v447, %v446
  %v491 = vpack.c.b16 %v449, %v448
  %v492 = vpack.c.b16 %v451, %v450
  %v493 = vpack.c.b16 %v453, %v452
  %v494 = vpack.c.b16 %v455, %v454
  %v495 = vpack.c.b16 %v457, %v456
  %v496 = vpack.c.b16 %v459, %v458
  %v497 = vpack.c.b16 %v461, %v460
  %v498 = vpack.c.b16 %v463, %v462
  %v499 = vpack.c.b16 %v465, %v464
  %v500 = vpack.c.b16 %v467, %v466
  %v501 = vpack.c.b16 %v469, %v468
  %534 = vmatprep.subr.bf16.mxu0 0
  %535 = vmatpush1.bf16.msra.mxu0 %v470
  %536 = vmatprep.subr.bf16.mxu0 0
  %537 = vmatpush1.bf16.msra.mxu0 %v471
  %538 = vmatprep.subr.bf16.mxu0 0
  %539 = vmatpush1.bf16.msra.mxu0 %v472
  %540 = vmatprep.subr.bf16.mxu0 0
  %541 = vmatpush1.bf16.msra.mxu0 %v473
  %542 = vmatprep.subr.bf16.mxu0 0
  %543 = vmatpush1.bf16.msra.mxu0 %v474
  %544 = vmatprep.subr.bf16.mxu0 0
  %545 = vmatpush1.bf16.msra.mxu0 %v475
  %546 = vmatprep.subr.bf16.mxu0 0
  %547 = vmatpush1.bf16.msra.mxu0 %v476
  %548 = vmatprep.subr.bf16.mxu0 0
  %549 = vmatpush1.bf16.msra.mxu0 %v477
  %550 = vmatprep.subr.bf16.mxu0 0
  %551 = vmatpush1.bf16.msra.mxu0 %v478
  %552 = vmatprep.subr.bf16.mxu0 0
  %553 = vmatpush1.bf16.msra.mxu0 %v479
  %554 = vmatprep.subr.bf16.mxu0 0
  %555 = vmatpush1.bf16.msra.mxu0 %v480
  %556 = vmatprep.subr.bf16.mxu0 0
  %557 = vmatpush1.bf16.msra.mxu0 %v481
  %558 = vmatprep.subr.bf16.mxu0 0
  %559 = vmatpush1.bf16.msra.mxu0 %v482
  %560 = vmatprep.subr.bf16.mxu0 0
  %561 = vmatpush1.bf16.msra.mxu0 %v483
  %562 = vmatprep.subr.bf16.mxu0 0
  %563 = vmatpush1.bf16.msra.mxu0 %v484
  %564 = vmatprep.subr.bf16.mxu0 0
  %565 = vmatpush1.bf16.msra.mxu0 %v485
  %566 = vmatprep.mubr.bf16.mxu0 %v255
  %567 = vmatmul.mubr.bf16.gmra.mrb[0].mxu0 %v254
  %v568 = vpop.f32.mrb[0].mxu0
  %v569 = vadd.f32 %v126, %v568
  %v570 = vpop.f32.mrb[0].mxu0
  %v571 = vpop.f32.mrb[0].mxu0
  %v572 = vadd.f32 %v126, %v571
  %v573 = vpop.f32.mrb[0].mxu0
  %574 = vmatprep.mubr.bf16.mxu0 %v259
  %575 = vmatmul.mubr.bf16.gmra.mrb[0].mxu0 %v258
  %v576 = vpop.f32.mrb[0].mxu0
  %v577 = vadd.f32 %v126, %v576
  %v578 = vpop.f32.mrb[0].mxu0
  %v579 = vpop.f32.mrb[0].mxu0
  %v580 = vadd.f32 %v126, %v579
  %v581 = vpop.f32.mrb[0].mxu0
  %582 = vmatprep.mubr.bf16.mxu0 %v263
  %583 = vmatmul.mubr.bf16.gmra.mrb[0].mxu0 %v262
  %v584 = vpop.f32.mrb[0].mxu0
  %v585 = vadd.f32 %v126, %v584
  %v586 = vpop.f32.mrb[0].mxu0
  %v587 = vpop.f32.mrb[0].mxu0
  %v588 = vadd.f32 %v126, %v587
  %v589 = vpop.f32.mrb[0].mxu0
  %590 = vmatprep.mubr.bf16.mxu0 %v267
  %591 = vmatmul.mubr.bf16.gmra.mrb[0].mxu0 %v266
  %v592 = vpop.f32.mrb[0].mxu0
  %v593 = vadd.f32 %v126, %v592
  %v594 = vpop.f32.mrb[0].mxu0
  %v595 = vpop.f32.mrb[0].mxu0
  %v596 = vadd.f32 %v126, %v595
  %v597 = vpop.f32.mrb[0].mxu0
  %598 = vmatprep.mubr.bf16.mxu0 %v271
  %599 = vmatmul.mubr.bf16.gmra.mrb[0].mxu0 %v270
  %v600 = vpop.f32.mrb[0].mxu0
  %v601 = vadd.f32 %v126, %v600
  %v602 = vpop.f32.mrb[0].mxu0
  %v603 = vpop.f32.mrb[0].mxu0
  %v604 = vadd.f32 %v126, %v603
  %v605 = vpop.f32.mrb[0].mxu0
  %606 = vmatprep.mubr.bf16.mxu0 %v275
  %607 = vmatmul.mubr.bf16.gmra.mrb[0].mxu0 %v274
  %v608 = vpop.f32.mrb[0].mxu0
  %v609 = vadd.f32 %v126, %v608
  %v610 = vpop.f32.mrb[0].mxu0
  %v611 = vpop.f32.mrb[0].mxu0
  %v612 = vadd.f32 %v126, %v611
  %v613 = vpop.f32.mrb[0].mxu0
  %614 = vmatprep.mubr.bf16.mxu0 %v279
  %615 = vmatmul.mubr.bf16.gmra.mrb[0].mxu0 %v278
  %v616 = vpop.f32.mrb[0].mxu0
  %v617 = vadd.f32 %v126, %v616
  %v618 = vpop.f32.mrb[0].mxu0
  %v619 = vpop.f32.mrb[0].mxu0
  %v620 = vadd.f32 %v126, %v619
  %v621 = vpop.f32.mrb[0].mxu0
  %622 = vmatprep.mubr.bf16.mxu0 %v283
  %623 = vmatmul.mubr.bf16.gmra.mrb[0].mxu0 %v282
  %v624 = vpop.f32.mrb[0].mxu0
  %v625 = vadd.f32 %v126, %v624
  %v626 = vpop.f32.mrb[0].mxu0
  %v627 = vpop.f32.mrb[0].mxu0
  %v628 = vadd.f32 %v126, %v627
  %v629 = vpop.f32.mrb[0].mxu0
  %630 = vmatprep.mubr.bf16.mxu0 %v287
  %631 = vmatmul.mubr.bf16.gmra.mrb[0].mxu0 %v286
  %v632 = vpop.f32.mrb[0].mxu0
  %v633 = vadd.f32 %v126, %v632
  %v634 = vpop.f32.mrb[0].mxu0
  %v635 = vpop.f32.mrb[0].mxu0
  %v636 = vadd.f32 %v126, %v635
  %v637 = vpop.f32.mrb[0].mxu0
  %638 = vmatprep.mubr.bf16.mxu0 %v291
  %639 = vmatmul.mubr.bf16.gmra.mrb[0].mxu0 %v290
  %v640 = vpop.f32.mrb[0].mxu0
  %v641 = vadd.f32 %v126, %v640
  %v642 = vpop.f32.mrb[0].mxu0
  %v643 = vpop.f32.mrb[0].mxu0
  %v644 = vadd.f32 %v126, %v643
  %v645 = vpop.f32.mrb[0].mxu0
  %646 = vmatprep.mubr.bf16.mxu0 %v295
  %647 = vmatmul.mubr.bf16.gmra.mrb[0].mxu0 %v294
  %v648 = vpop.f32.mrb[0].mxu0
  %v649 = vadd.f32 %v126, %v648
  %v650 = vpop.f32.mrb[0].mxu0
  %v651 = vpop.f32.mrb[0].mxu0
  %v652 = vpop.f32.mrb[0].mxu0
  %653 = vdwg.mxu0
  %654 = vmatprep.subr.bf16.mxu0 0
  %655 = vmatpush1.bf16.msra.mxu0 %v486
  %656 = vmatprep.subr.bf16.mxu0 0
  %657 = vmatpush1.bf16.msra.mxu0 %v487
  %658 = vmatprep.subr.bf16.mxu0 0
  %659 = vmatpush1.bf16.msra.mxu0 %v488
  %660 = vmatprep.subr.bf16.mxu0 0
  %661 = vmatpush1.bf16.msra.mxu0 %v489
  %662 = vmatprep.subr.bf16.mxu0 0
  %663 = vmatpush1.bf16.msra.mxu0 %v490
  %664 = vmatprep.subr.bf16.mxu0 0
  %665 = vmatpush1.bf16.msra.mxu0 %v491
  %666 = vmatprep.subr.bf16.mxu0 0
  %667 = vmatpush1.bf16.msra.mxu0 %v492
  %668 = vmatprep.subr.bf16.mxu0 0
  %669 = vmatpush1.bf16.msra.mxu0 %v493
  %670 = vmatprep.subr.bf16.mxu0 0
  %671 = vmatpush1.bf16.msra.mxu0 %v494
  %672 = vmatprep.subr.bf16.mxu0 0
  %673 = vmatpush1.bf16.msra.mxu0 %v495
  %674 = vmatprep.subr.bf16.mxu0 0
  %675 = vmatpush1.bf16.msra.mxu0 %v496
  %676 = vmatprep.subr.bf16.mxu0 0
  %677 = vmatpush1.bf16.msra.mxu0 %v497
  %678 = vmatprep.subr.bf16.mxu0 0
  %679 = vmatpush1.bf16.msra.mxu0 %v498
  %680 = vmatprep.subr.bf16.mxu0 0
  %681 = vmatpush1.bf16.msra.mxu0 %v499
  %682 = vmatprep.subr.bf16.mxu0 0
  %683 = vmatpush1.bf16.msra.mxu0 %v500
  %684 = vmatprep.subr.bf16.mxu0 0
  %685 = vmatpush1.bf16.msra.mxu0 %v501
  %686 = vmatprep.mubr.bf16.mxu0 %v257
  %687 = vmatmul.mubr.bf16.gmra.mrb[0].mxu0 %v256
  %v688 = vpop.f32.mrb[0].mxu0
  %v689 = vadd.f32 %v569, %v688
  %v690 = vpop.f32.mrb[0].mxu0
  %v691 = vpop.f32.mrb[0].mxu0
  %v692 = vadd.f32 %v572, %v691
  %v693 = vpop.f32.mrb[0].mxu0
  %694 = vmatprep.mubr.bf16.mxu0 %v261
  %695 = vmatmul.mubr.bf16.gmra.mrb[0].mxu0 %v260
  %v696 = vpop.f32.mrb[0].mxu0
  %v697 = vadd.f32 %v577, %v696
  %v698 = vpop.f32.mrb[0].mxu0
  %v699 = vpop.f32.mrb[0].mxu0
  %v700 = vadd.f32 %v580, %v699
  %v701 = vpop.f32.mrb[0].mxu0
  %702 = vmatprep.mubr.bf16.mxu0 %v265
  %703 = vmatmul.mubr.bf16.gmra.mrb[0].mxu0 %v264
  %v704 = vpop.f32.mrb[0].mxu0
  %v705 = vadd.f32 %v585, %v704
  %v706 = vpop.f32.mrb[0].mxu0
  %v707 = vpop.f32.mrb[0].mxu0
  %v708 = vadd.f32 %v588, %v707
  %v709 = vpop.f32.mrb[0].mxu0
  %710 = vmatprep.mubr.bf16.mxu0 %v269
  %711 = vmatmul.mubr.bf16.gmra.mrb[0].mxu0 %v268
  %v712 = vpop.f32.mrb[0].mxu0
  %v713 = vadd.f32 %v593, %v712
  %v714 = vpop.f32.mrb[0].mxu0
  %v715 = vpop.f32.mrb[0].mxu0
  %v716 = vadd.f32 %v596, %v715
  %v717 = vpop.f32.mrb[0].mxu0
  %718 = vmatprep.mubr.bf16.mxu0 %v273
  %719 = vmatmul.mubr.bf16.gmra.mrb[0].mxu0 %v272
  %v720 = vpop.f32.mrb[0].mxu0
  %v721 = vadd.f32 %v601, %v720
  %v722 = vpop.f32.mrb[0].mxu0
  %v723 = vpop.f32.mrb[0].mxu0
  %v724 = vadd.f32 %v604, %v723
  %v725 = vpop.f32.mrb[0].mxu0
  %726 = vmatprep.mubr.bf16.mxu0 %v277
  %727 = vmatmul.mubr.bf16.gmra.mrb[0].mxu0 %v276
  %v728 = vpop.f32.mrb[0].mxu0
  %v729 = vadd.f32 %v609, %v728
  %v730 = vpop.f32.mrb[0].mxu0
  %v731 = vpop.f32.mrb[0].mxu0
  %v732 = vadd.f32 %v612, %v731
  %v733 = vpop.f32.mrb[0].mxu0
  %734 = vmatprep.mubr.bf16.mxu0 %v281
  %735 = vmatmul.mubr.bf16.gmra.mrb[0].mxu0 %v280
  %v736 = vpop.f32.mrb[0].mxu0
  %v737 = vadd.f32 %v617, %v736
  %v738 = vpop.f32.mrb[0].mxu0
  %v739 = vpop.f32.mrb[0].mxu0
  %v740 = vadd.f32 %v620, %v739
  %v741 = vpop.f32.mrb[0].mxu0
  %742 = vmatprep.mubr.bf16.mxu0 %v285
  %743 = vmatmul.mubr.bf16.gmra.mrb[0].mxu0 %v284
  %v744 = vpop.f32.mrb[0].mxu0
  %v745 = vadd.f32 %v625, %v744
  %v746 = vpop.f32.mrb[0].mxu0
  %v747 = vpop.f32.mrb[0].mxu0
  %v748 = vadd.f32 %v628, %v747
  %v749 = vpop.f32.mrb[0].mxu0
  %750 = vmatprep.mubr.bf16.mxu0 %v289
  %751 = vmatmul.mubr.bf16.gmra.mrb[0].mxu0 %v288
  %v752 = vpop.f32.mrb[0].mxu0
  %v753 = vadd.f32 %v633, %v752
  %v754 = vpop.f32.mrb[0].mxu0
  %v755 = vpop.f32.mrb[0].mxu0
  %v756 = vadd.f32 %v636, %v755
  %v757 = vpop.f32.mrb[0].mxu0
  %758 = vmatprep.mubr.bf16.mxu0 %v293
  %759 = vmatmul.mubr.bf16.gmra.mrb[0].mxu0 %v292
  %v760 = vpop.f32.mrb[0].mxu0
  %v761 = vadd.f32 %v641, %v760
  %v762 = vpop.f32.mrb[0].mxu0
  %v763 = vpop.f32.mrb[0].mxu0
  %v764 = vadd.f32 %v644, %v763
  %v765 = vpop.f32.mrb[0].mxu0
  %766 = vmatprep.mubr.bf16.mxu0 %v297
  %767 = vmatmul.mubr.bf16.gmra.mrb[0].mxu0 %v296
  %v768 = vpop.f32.mrb[0].mxu0
  %v769 = vadd.f32 %v649, %v768
  %v770 = vpop.f32.mrb[0].mxu0
  %v771 = vpop.f32.mrb[0].mxu0
  %v772 = vpop.f32.mrb[0].mxu0
  %773 = vdwg.mxu0
  %v774 = vmax.f32 %v689, 0.0
  %v775 = vmax.f32 %v692, 0.0
  %v776 = vmax.f32 %v697, 0.0
  %v777 = vmax.f32 %v700, 0.0
  %v778 = vmax.f32 %v705, 0.0
  %v779 = vmax.f32 %v708, 0.0
  %v780 = vmax.f32 %v713, 0.0
  %v781 = vmax.f32 %v716, 0.0
  %v782 = vmax.f32 %v721, 0.0
  %v783 = vmax.f32 %v724, 0.0
  %v784 = vmax.f32 %v729, 0.0
  %v785 = vmax.f32 %v732, 0.0
  %v786 = vmax.f32 %v737, 0.0
  %v787 = vmax.f32 %v740, 0.0
  %v788 = vmax.f32 %v745, 0.0
  %v789 = vmax.f32 %v748, 0.0
  %v790 = vmax.f32 %v753, 0.0
  %v791 = vmax.f32 %v756, 0.0
  %v792 = vmax.f32 %v761, 0.0
  %v793 = vmax.f32 %v764, 0.0
  %v794 = vmax.f32 %v769, 0.0
  %v795 = vpack.c.bf16 %v775, %v774
  %v796 = vpack.c.bf16 %v777, %v776
  %v797 = vpack.c.bf16 %v779, %v778
  %v798 = vpack.c.bf16 %v781, %v780
  %v799 = vpack.c.bf16 %v783, %v782
  %v800 = vpack.c.bf16 %v785, %v784
  %v801 = vpack.c.bf16 %v787, %v786
  %v802 = vpack.c.bf16 %v789, %v788
  %v803 = vpack.c.bf16 %v791, %v790
  %v804 = vpack.c.bf16 %v793, %v792
  %v805 = vpack.c.bf16 %v794, %v794
  %v817 = vunpack.c.l.b16 %v795
  %v818 = vunpack.c.h.b16 %v795
  %v819 = vunpack.c.l.b16 %v796
  %v820 = vunpack.c.h.b16 %v796
  %v821 = vunpack.c.l.b16 %v797
  %v822 = vunpack.c.h.b16 %v797
  %v823 = vunpack.c.l.b16 %v798
  %v824 = vunpack.c.h.b16 %v798
  %v825 = vunpack.c.l.b16 %v799
  %v826 = vunpack.c.h.b16 %v799
  %v827 = vunpack.c.l.b16 %v800
  %v828 = vunpack.c.h.b16 %v800
  %v829 = vunpack.c.l.b16 %v801
  %v830 = vunpack.c.h.b16 %v801
  %v831 = vunpack.c.l.b16 %v802
  %v832 = vunpack.c.h.b16 %v802
  %v833 = vunpack.c.l.b16 %v803
  %v834 = vunpack.c.h.b16 %v803
  %v835 = vunpack.c.l.b16 %v804
  %v836 = vunpack.c.h.b16 %v804
  %v837 = vunpack.c.l.b16 %v805
  %v838 = vpack.c.b16 %v817, %v817
  %v839 = vpack.c.b16 %v818, %v818
  %v840 = vpack.c.b16 %v819, %v819
  %v841 = vpack.c.b16 %v820, %v820
  %v842 = vpack.c.b16 %v821, %v821
  %v843 = vpack.c.b16 %v822, %v822
  %v844 = vpack.c.b16 %v823, %v823
  %v845 = vpack.c.b16 %v824, %v824
  %v846 = vpack.c.b16 %v825, %v825
  %v847 = vpack.c.b16 %v826, %v826
  %v848 = vpack.c.b16 %v827, %v827
  %v849 = vpack.c.b16 %v828, %v828
  %v850 = vpack.c.b16 %v829, %v829
  %v851 = vpack.c.b16 %v830, %v830
  %v852 = vpack.c.b16 %v831, %v831
  %v853 = vpack.c.b16 %v832, %v832
  %v854 = vpack.c.b16 %v833, %v833
  %v855 = vpack.c.b16 %v834, %v834
  %v856 = vpack.c.b16 %v835, %v835
  %v857 = vpack.c.b16 %v836, %v836
  %v858 = vpack.c.b16 %v837, %v837
  %880 = vst [vmem:[%s3] sm:$0xf] %v838
  %881 = vst [vmem:[%s3 + $0x4] sm:$0xf] %v839
  %882 = vst [vmem:[%s3 + $0x8] sm:$0xf] %v840
  %883 = vst [vmem:[%s3 + $0xc] sm:$0xf] %v841
  %884 = vst [vmem:[%s3 + $0x10] sm:$0xf] %v842
  %885 = vst [vmem:[%s3 + $0x14] sm:$0xf] %v843
  %886 = vst [vmem:[%s3 + $0x18] sm:$0xf] %v844
  %887 = vst [vmem:[%s3 + $0x1c] sm:$0xf] %v845
  %888 = vst [vmem:[%s3 + $0x20] sm:$0xf] %v846
  %889 = vst [vmem:[%s3 + $0x24] sm:$0xf] %v847
  %890 = vst [vmem:[%s3 + $0x28] sm:$0xf] %v848
  %891 = vst [vmem:[%s3 + $0x2c] sm:$0xf] %v849
  %892 = vst [vmem:[%s3 + $0x30] sm:$0xf] %v850
  %893 = vst [vmem:[%s3 + $0x34] sm:$0xf] %v851
  %894 = vst [vmem:[%s3 + $0x38] sm:$0xf] %v852
  %895 = vst [vmem:[%s3 + $0x3c] sm:$0xf] %v853
  %896 = vst [vmem:[%s3 + $0x40] sm:$0xf] %v854
  %897 = vst [vmem:[%s3 + $0x44] sm:$0xf] %v855
  %898 = vst [vmem:[%s3 + $0x48] sm:$0xf] %v856
  %899 = vst [vmem:[%s3 + $0x4c] sm:$0xf] %v857
  %900 = vst [vmem:[%s3 + $0x50] sm:$0xf] %v858
  // Predicated region
  $region14: #{cnn_base_forward.5} parent=0 // pred_check
    _
  $region15: #{cnn_base_forward.5} parent=0 // pred_check_branch
    %902 = sbr.rel (0) target = $region17
  $region16: #{cnn_base_forward.5} parent=0 // pred_region
    _
  $region17: #{cnn_base_forward.5} parent=0 // pred_fallthru
    _
  // Predicated region
  $region18: #{cnn_base_forward.5} parent=0 // pred_check
    _
  $region19: #{cnn_base_forward.5} parent=0 // pred_check_branch
    %904 = sbr.rel (0) target = $region21
  $region20: #{cnn_base_forward.5} parent=0 // pred_region
    _
  $region21: #{cnn_base_forward.5} parent=0 // pred_fallthru
    _

// kernel: cnn_base_forward.6
$region0: #{cnn_base_forward.6}
  #allocation0 [shape = 'u32[]', space=smem, size = 0x4, offset = 0x4, fixed_abs, tag = 'smem constant byte address 0x4 - core index']
  #allocation1 [shape = 'u32[144,128]{1,0:T(1,128)}', space=vmem, size = 0x12000, scoped, tag = 'internal scratch']
  %s0 = inlined_call_operand.vmem [shape: bf16[104,640], index: 0, kind: input, shape index: {}]
  %s1 = inlined_call_operand.vmem [shape: bf16[640,128], index: 1, kind: input, shape index: {}]
  %s2 = inlined_call_operand.vmem [shape: f32[1,128], index: 2, kind: input, shape index: {}]
  %s3 = inlined_call_operand.vmem [shape: bf16[104,128], index: 3, kind: output, shape index: {}]
  %s4 = sld [smem:[#allocation0]]
  $region22: #{cnn_base_forward.6} parent=0
    _
  %s6 = ssub.s32 1, %s4
  %s7 = scalar_select 0, %s6, %s4
  // Predicated region
  $region2: #{cnn_base_forward.6} parent=0 // pred_check
    _
  $region3: #{cnn_base_forward.6} parent=0 // pred_check_branch
    %9 = sbr.rel (0) target = $region5
  $region4: #{cnn_base_forward.6} parent=0 // pred_region
    _
  $region5: #{cnn_base_forward.6} parent=0 // pred_fallthru
    _
  // Predicated region
  $region6: #{cnn_base_forward.6} parent=0 // pred_check
    _
  $region7: #{cnn_base_forward.6} parent=0 // pred_check_branch
    %11 = sbr.rel (0) target = $region9
  $region8: #{cnn_base_forward.6} parent=0 // pred_region
    _
  $region9: #{cnn_base_forward.6} parent=0 // pred_fallthru
    _
  // Predicated region
  $region10: #{cnn_base_forward.6} parent=0 // pred_check
    _
  $region11: #{cnn_base_forward.6} parent=0 // pred_check_branch
    %13 = sbr.rel (0) target = $region13
  $region12: #{cnn_base_forward.6} parent=0 // pred_region
    _
  $region13: #{cnn_base_forward.6} parent=0 // pred_fallthru
    _
  %v15 = vld [vmem:[%s0] sm:$0xff]
  %v16 = vld [vmem:[%s0 + $0x8] sm:$0xff]
  %v17 = vld [vmem:[%s0 + $0x10] sm:$0xf]
  %v18 = vld [vmem:[%s0 + $0x14] sm:$0xff]
  %v19 = vld [vmem:[%s0 + $0x1c] sm:$0xff]
  %v20 = vld [vmem:[%s0 + $0x24] sm:$0xf]
  %v21 = vld [vmem:[%s0 + $0x28] sm:$0xff]
  %v22 = vld [vmem:[%s0 + $0x30] sm:$0xff]
  %v23 = vld [vmem:[%s0 + $0x38] sm:$0xf]
  %v24 = vld [vmem:[%s0 + $0x3c] sm:$0xff]
  %v25 = vld [vmem:[%s0 + $0x44] sm:$0xff]
  %v26 = vld [vmem:[%s0 + $0x4c] sm:$0xf]
  %v27 = vld [vmem:[%s0 + $0x50] sm:$0xff]
  %v28 = vld [vmem:[%s0 + $0x58] sm:$0xff]
  %v29 = vld [vmem:[%s0 + $0x60] sm:$0xf]
  %v30 = vld [vmem:[%s0 + $0x64] sm:$0xff]
  %v31 = vld [vmem:[%s0 + $0x6c] sm:$0xff]
  %v32 = vld [vmem:[%s0 + $0x74] sm:$0xf]
  %v33 = vld [vmem:[%s0 + $0x78] sm:$0xff]
  %v34 = vld [vmem:[%s0 + $0x80] sm:$0xff]
  %v35 = vld [vmem:[%s0 + $0x88] sm:$0xf]
  %v36 = vld [vmem:[%s0 + $0x8c] sm:$0xff]
  %v37 = vld [vmem:[%s0 + $0x94] sm:$0xff]
  %v38 = vld [vmem:[%s0 + $0x9c] sm:$0xf]
  %v39 = vld [vmem:[%s0 + $0xa0] sm:$0xff]
  %v40 = vld [vmem:[%s0 + $0xa8] sm:$0xff]
  %v41 = vld [vmem:[%s0 + $0xb0] sm:$0xf]
  %v42 = vld [vmem:[%s0 + $0xb4] sm:$0xff]
  %v43 = vld [vmem:[%s0 + $0xbc] sm:$0xff]
  %v44 = vld [vmem:[%s0 + $0xc4] sm:$0xf]
  %v45 = vld [vmem:[%s0 + $0xc8] sm:$0xff]
  %v46 = vld [vmem:[%s0 + $0xd0] sm:$0xff]
  %v47 = vld [vmem:[%s0 + $0xd8] sm:$0xf]
  %v48 = vld [vmem:[%s0 + $0xdc] sm:$0xff]
  %v49 = vld [vmem:[%s0 + $0xe4] sm:$0xff]
  %v50 = vld [vmem:[%s0 + $0xec] sm:$0xf]
  %v51 = vld [vmem:[%s0 + $0xf0] sm:$0xff]
  %v52 = vld [vmem:[%s0 + $0xf8] sm:$0xff]
  %v53 = vld [vmem:[%s0 + $0x100] sm:$0xf]
  %v54 = vld [vmem:[%s1] sm:$0xf]
  %v55 = vld [vmem:[%s1 + $0x4] sm:$0xf]
  %v56 = vld [vmem:[%s1 + $0x8] sm:$0xf]
  %v57 = vld [vmem:[%s1 + $0xc] sm:$0xf]
  %v58 = vld [vmem:[%s1 + $0x10] sm:$0xf]
  %v59 = vld [vmem:[%s1 + $0x14] sm:$0xf]
  %v60 = vld [vmem:[%s1 + $0x18] sm:$0xf]
  %v61 = vld [vmem:[%s1 + $0x1c] sm:$0xf]
  %v62 = vld [vmem:[%s1 + $0x20] sm:$0xf]
  %v63 = vld [vmem:[%s1 + $0x24] sm:$0xf]
  %v64 = vld [vmem:[%s1 + $0x28] sm:$0xf]
  %v65 = vld [vmem:[%s1 + $0x2c] sm:$0xf]
  %v66 = vld [vmem:[%s1 + $0x30] sm:$0xf]
  %v67 = vld [vmem:[%s1 + $0x34] sm:$0xf]
  %v68 = vld [vmem:[%s1 + $0x38] sm:$0xf]
  %v69 = vld [vmem:[%s1 + $0x3c] sm:$0xf]
  %v70 = vld [vmem:[%s1 + $0x40] sm:$0xf]
  %v71 = vld [vmem:[%s1 + $0x44] sm:$0xf]
  %v72 = vld [vmem:[%s1 + $0x48] sm:$0xf]
  %v73 = vld [vmem:[%s1 + $0x4c] sm:$0xf]
  %v74 = vld [vmem:[%s1 + $0x50] sm:$0xf]
  %v75 = vld [vmem:[%s1 + $0x54] sm:$0xf]
  %v76 = vld [vmem:[%s1 + $0x58] sm:$0xf]
  %v77 = vld [vmem:[%s1 + $0x5c] sm:$0xf]
  %v78 = vld [vmem:[%s1 + $0x60] sm:$0xf]
  %v79 = vld [vmem:[%s1 + $0x64] sm:$0xf]
  %v80 = vld [vmem:[%s1 + $0x68] sm:$0xf]
  %v81 = vld [vmem:[%s1 + $0x6c] sm:$0xf]
  %v82 = vld [vmem:[%s1 + $0x70] sm:$0xf]
  %v83 = vld [vmem:[%s1 + $0x74] sm:$0xf]
  %v84 = vld [vmem:[%s1 + $0x78] sm:$0xf]
  %v85 = vld [vmem:[%s1 + $0x7c] sm:$0xf]
  %v86 = vld [vmem:[%s1 + $0x80] sm:$0xf]
  %v87 = vld [vmem:[%s1 + $0x84] sm:$0xf]
  %v88 = vld [vmem:[%s1 + $0x88] sm:$0xf]
  %v89 = vld [vmem:[%s1 + $0x8c] sm:$0xf]
  %v90 = vld [vmem:[%s1 + $0x90] sm:$0xf]
  %v91 = vld [vmem:[%s1 + $0x94] sm:$0xf]
  %v92 = vld [vmem:[%s1 + $0x98] sm:$0xf]
  %v93 = vld [vmem:[%s1 + $0x9c] sm:$0xf]
  %v94 = vld [vmem:[%s1 + $0xa0] sm:$0xf]
  %v95 = vld [vmem:[%s1 + $0xa4] sm:$0xf]
  %v96 = vld [vmem:[%s1 + $0xa8] sm:$0xf]
  %v97 = vld [vmem:[%s1 + $0xac] sm:$0xf]
  %v98 = vld [vmem:[%s1 + $0xb0] sm:$0xf]
  %v99 = vld [vmem:[%s1 + $0xb4] sm:$0xf]
  %v100 = vld [vmem:[%s1 + $0xb8] sm:$0xf]
  %v101 = vld [vmem:[%s1 + $0xbc] sm:$0xf]
  %v102 = vld [vmem:[%s1 + $0xc0] sm:$0xf]
  %v103 = vld [vmem:[%s1 + $0xc4] sm:$0xf]
  %v104 = vld [vmem:[%s1 + $0xc8] sm:$0xf]
  %v105 = vld [vmem:[%s1 + $0xcc] sm:$0xf]
  %v106 = vld [vmem:[%s1 + $0xd0] sm:$0xf]
  %v107 = vld [vmem:[%s1 + $0xd4] sm:$0xf]
  %v108 = vld [vmem:[%s1 + $0xd8] sm:$0xf]
  %v109 = vld [vmem:[%s1 + $0xdc] sm:$0xf]
  %v110 = vld [vmem:[%s1 + $0xe0] sm:$0xf]
  %v111 = vld [vmem:[%s1 + $0xe4] sm:$0xf]
  %v112 = vld [vmem:[%s1 + $0xe8] sm:$0xf]
  %v113 = vld [vmem:[%s1 + $0xec] sm:$0xf]
  %v114 = vld [vmem:[%s1 + $0xf0] sm:$0xf]
  %v115 = vld [vmem:[%s1 + $0xf4] sm:$0xf]
  %v116 = vld [vmem:[%s1 + $0xf8] sm:$0xf]
  %v117 = vld [vmem:[%s1 + $0xfc] sm:$0xf]
  %v118 = vld [vmem:[%s1 + $0x100] sm:$0xf]
  %v119 = vld [vmem:[%s1 + $0x104] sm:$0xf]
  %v120 = vld [vmem:[%s1 + $0x108] sm:$0xf]
  %v121 = vld [vmem:[%s1 + $0x10c] sm:$0xf]
  %v122 = vld [vmem:[%s1 + $0x110] sm:$0xf]
  %v123 = vld [vmem:[%s1 + $0x114] sm:$0xf]
  %v124 = vld [vmem:[%s1 + $0x118] sm:$0xf]
  %v125 = vld [vmem:[%s1 + $0x11c] sm:$0xf]
  %v126 = vld [vmem:[%s1 + $0x120] sm:$0xf]
  %v127 = vld [vmem:[%s1 + $0x124] sm:$0xf]
  %v128 = vld [vmem:[%s1 + $0x128] sm:$0xf]
  %v129 = vld [vmem:[%s1 + $0x12c] sm:$0xf]
  %v130 = vld [vmem:[%s1 + $0x130] sm:$0xf]
  %v131 = vld [vmem:[%s1 + $0x134] sm:$0xf]
  %v132 = vld [vmem:[%s1 + $0x138] sm:$0xf]
  %v133 = vld [vmem:[%s1 + $0x13c] sm:$0xf]
  %v134 = vld [vmem:[%s2] sm:$0x1]
  %v136 = vlaneseq
  %v137 = vshrl.u32 %v136, 7
  %v138 = vsub.s32 0, %v137
  %v139 = vrot.slane %v134, %v138
  %v180 = vunpack.c.l.b16 %v15
  %v181 = vunpack.c.h.b16 %v15
  %v182 = vunpack.c.l.b16 %v16
  %v183 = vunpack.c.h.b16 %v16
  %v184 = vunpack.c.l.b16 %v17
  %v185 = vunpack.c.l.b16 %v18
  %v186 = vunpack.c.h.b16 %v18
  %v187 = vunpack.c.l.b16 %v19
  %v188 = vunpack.c.h.b16 %v19
  %v189 = vunpack.c.l.b16 %v20
  %v190 = vunpack.c.l.b16 %v21
  %v191 = vunpack.c.h.b16 %v21
  %v192 = vunpack.c.l.b16 %v22
  %v193 = vunpack.c.h.b16 %v22
  %v194 = vunpack.c.l.b16 %v23
  %v195 = vunpack.c.l.b16 %v24
  %v196 = vunpack.c.h.b16 %v24
  %v197 = vunpack.c.l.b16 %v25
  %v198 = vunpack.c.h.b16 %v25
  %v199 = vunpack.c.l.b16 %v26
  %v200 = vunpack.c.l.b16 %v27
  %v201 = vunpack.c.h.b16 %v27
  %v202 = vunpack.c.l.b16 %v28
  %v203 = vunpack.c.h.b16 %v28
  %v204 = vunpack.c.l.b16 %v29
  %v205 = vunpack.c.l.b16 %v30
  %v206 = vunpack.c.h.b16 %v30
  %v207 = vunpack.c.l.b16 %v31
  %v208 = vunpack.c.h.b16 %v31
  %v209 = vunpack.c.l.b16 %v32
  %v210 = vunpack.c.l.b16 %v33
  %v211 = vunpack.c.h.b16 %v33
  %v212 = vunpack.c.l.b16 %v34
  %v213 = vunpack.c.h.b16 %v34
  %v214 = vunpack.c.l.b16 %v35
  %v215 = vunpack.c.l.b16 %v36
  %v216 = vunpack.c.h.b16 %v36
  %v217 = vunpack.c.l.b16 %v37
  %v218 = vunpack.c.h.b16 %v37
  %v219 = vunpack.c.l.b16 %v38
  %v220 = vunpack.c.l.b16 %v39
  %v221 = vunpack.c.h.b16 %v39
  %v222 = vunpack.c.l.b16 %v40
  %v223 = vunpack.c.h.b16 %v40
  %v224 = vunpack.c.l.b16 %v41
  %v225 = vunpack.c.l.b16 %v42
  %v226 = vunpack.c.h.b16 %v42
  %v227 = vunpack.c.l.b16 %v43
  %v228 = vunpack.c.h.b16 %v43
  %v229 = vunpack.c.l.b16 %v44
  %v230 = vunpack.c.l.b16 %v45
  %v231 = vunpack.c.h.b16 %v45
  %v232 = vunpack.c.l.b16 %v46
  %v233 = vunpack.c.h.b16 %v46
  %v234 = vunpack.c.l.b16 %v47
  %v235 = vunpack.c.l.b16 %v48
  %v236 = vunpack.c.h.b16 %v48
  %v237 = vunpack.c.l.b16 %v49
  %v238 = vunpack.c.h.b16 %v49
  %v239 = vunpack.c.l.b16 %v50
  %v240 = vunpack.c.l.b16 %v51
  %v241 = vunpack.c.h.b16 %v51
  %v242 = vunpack.c.l.b16 %v52
  %v243 = vunpack.c.h.b16 %v52
  %v244 = vunpack.c.l.b16 %v53
  %v245 = vpack.c.b16 %v185, %v180
  %v246 = vpack.c.b16 %v186, %v181
  %v247 = vpack.c.b16 %v187, %v182
  %v248 = vpack.c.b16 %v188, %v183
  %v249 = vpack.c.b16 %v189, %v184
  %v250 = vpack.c.b16 %v195, %v190
  %v251 = vpack.c.b16 %v196, %v191
  %v252 = vpack.c.b16 %v197, %v192
  %v253 = vpack.c.b16 %v198, %v193
  %v254 = vpack.c.b16 %v199, %v194
  %v255 = vpack.c.b16 %v205, %v200
  %v256 = vpack.c.b16 %v206, %v201
  %v257 = vpack.c.b16 %v207, %v202
  %v258 = vpack.c.b16 %v208, %v203
  %v259 = vpack.c.b16 %v209, %v204
  %v260 = vpack.c.b16 %v215, %v210
  %v261 = vpack.c.b16 %v216, %v211
  %v262 = vpack.c.b16 %v217, %v212
  %v263 = vpack.c.b16 %v218, %v213
  %v264 = vpack.c.b16 %v219, %v214
  %v265 = vpack.c.b16 %v225, %v220
  %v266 = vpack.c.b16 %v226, %v221
  %v267 = vpack.c.b16 %v227, %v222
  %v268 = vpack.c.b16 %v228, %v223
  %v269 = vpack.c.b16 %v229, %v224
  %v270 = vpack.c.b16 %v235, %v230
  %v271 = vpack.c.b16 %v236, %v231
  %v272 = vpack.c.b16 %v237, %v232
  %v273 = vpack.c.b16 %v238, %v233
  %v274 = vpack.c.b16 %v239, %v234
  %v275 = vpack.c.b16 %v240, %v240
  %v276 = vpack.c.b16 %v241, %v241
  %v277 = vpack.c.b16 %v242, %v242
  %v278 = vpack.c.b16 %v243, %v243
  %v279 = vpack.c.b16 %v244, %v244
  %v395 = vunpack.c.l.b16 %v54
  %v396 = vunpack.c.l.b16 %v55
  %v397 = vunpack.c.l.b16 %v56
  %v398 = vunpack.c.l.b16 %v57
  %v399 = vunpack.c.l.b16 %v58
  %v400 = vunpack.c.l.b16 %v59
  %v401 = vunpack.c.l.b16 %v60
  %v402 = vunpack.c.l.b16 %v61
  %v403 = vunpack.c.l.b16 %v62
  %v404 = vunpack.c.l.b16 %v63
  %v405 = vunpack.c.l.b16 %v64
  %v406 = vunpack.c.l.b16 %v65
  %v407 = vunpack.c.l.b16 %v66
  %v408 = vunpack.c.l.b16 %v67
  %v409 = vunpack.c.l.b16 %v68
  %v410 = vunpack.c.l.b16 %v69
  %v411 = vunpack.c.l.b16 %v70
  %v412 = vunpack.c.l.b16 %v71
  %v413 = vunpack.c.l.b16 %v72
  %v414 = vunpack.c.l.b16 %v73
  %v415 = vunpack.c.l.b16 %v74
  %v416 = vunpack.c.l.b16 %v75
  %v417 = vunpack.c.l.b16 %v76
  %v418 = vunpack.c.l.b16 %v77
  %v419 = vunpack.c.l.b16 %v78
  %v420 = vunpack.c.l.b16 %v79
  %v421 = vunpack.c.l.b16 %v80
  %v422 = vunpack.c.l.b16 %v81
  %v423 = vunpack.c.l.b16 %v82
  %v424 = vunpack.c.l.b16 %v83
  %v425 = vunpack.c.l.b16 %v84
  %v426 = vunpack.c.l.b16 %v85
  %v427 = vunpack.c.l.b16 %v86
  %v428 = vunpack.c.l.b16 %v87
  %v429 = vunpack.c.l.b16 %v88
  %v430 = vunpack.c.l.b16 %v89
  %v431 = vunpack.c.l.b16 %v90
  %v432 = vunpack.c.l.b16 %v91
  %v433 = vunpack.c.l.b16 %v92
  %v434 = vunpack.c.l.b16 %v93
  %v435 = vunpack.c.l.b16 %v94
  %v436 = vunpack.c.l.b16 %v95
  %v437 = vunpack.c.l.b16 %v96
  %v438 = vunpack.c.l.b16 %v97
  %v439 = vunpack.c.l.b16 %v98
  %v440 = vunpack.c.l.b16 %v99
  %v441 = vunpack.c.l.b16 %v100
  %v442 = vunpack.c.l.b16 %v101
  %v443 = vunpack.c.l.b16 %v102
  %v444 = vunpack.c.l.b16 %v103
  %v445 = vunpack.c.l.b16 %v104
  %v446 = vunpack.c.l.b16 %v105
  %v447 = vunpack.c.l.b16 %v106
  %v448 = vunpack.c.l.b16 %v107
  %v449 = vunpack.c.l.b16 %v108
  %v450 = vunpack.c.l.b16 %v109
  %v451 = vunpack.c.l.b16 %v110
  %v452 = vunpack.c.l.b16 %v111
  %v453 = vunpack.c.l.b16 %v112
  %v454 = vunpack.c.l.b16 %v113
  %v455 = vunpack.c.l.b16 %v114
  %v456 = vunpack.c.l.b16 %v115
  %v457 = vunpack.c.l.b16 %v116
  %v458 = vunpack.c.l.b16 %v117
  %v459 = vunpack.c.l.b16 %v118
  %v460 = vunpack.c.l.b16 %v119
  %v461 = vunpack.c.l.b16 %v120
  %v462 = vunpack.c.l.b16 %v121
  %v463 = vunpack.c.l.b16 %v122
  %v464 = vunpack.c.l.b16 %v123
  %v465 = vunpack.c.l.b16 %v124
  %v466 = vunpack.c.l.b16 %v125
  %v467 = vunpack.c.l.b16 %v126
  %v468 = vunpack.c.l.b16 %v127
  %v469 = vunpack.c.l.b16 %v128
  %v470 = vunpack.c.l.b16 %v129
  %v471 = vunpack.c.l.b16 %v130
  %v472 = vunpack.c.l.b16 %v131
  %v473 = vunpack.c.l.b16 %v132
  %v474 = vunpack.c.l.b16 %v133
  %v475 = vpack.c.b16 %v396, %v395
  %v476 = vpack.c.b16 %v398, %v397
  %v477 = vpack.c.b16 %v400, %v399
  %v478 = vpack.c.b16 %v402, %v401
  %v479 = vpack.c.b16 %v404, %v403
  %v480 = vpack.c.b16 %v406, %v405
  %v481 = vpack.c.b16 %v408, %v407
  %v482 = vpack.c.b16 %v410, %v409
  %v483 = vpack.c.b16 %v412, %v411
  %v484 = vpack.c.b16 %v414, %v413
  %v485 = vpack.c.b16 %v416, %v415
  %v486 = vpack.c.b16 %v418, %v417
  %v487 = vpack.c.b16 %v420, %v419
  %v488 = vpack.c.b16 %v422, %v421
  %v489 = vpack.c.b16 %v424, %v423
  %v490 = vpack.c.b16 %v426, %v425
  %v491 = vpack.c.b16 %v428, %v427
  %v492 = vpack.c.b16 %v430, %v429
  %v493 = vpack.c.b16 %v432, %v431
  %v494 = vpack.c.b16 %v434, %v433
  %v495 = vpack.c.b16 %v436, %v435
  %v496 = vpack.c.b16 %v438, %v437
  %v497 = vpack.c.b16 %v440, %v439
  %v498 = vpack.c.b16 %v442, %v441
  %v499 = vpack.c.b16 %v444, %v443
  %v500 = vpack.c.b16 %v446, %v445
  %v501 = vpack.c.b16 %v448, %v447
  %v502 = vpack.c.b16 %v450, %v449
  %v503 = vpack.c.b16 %v452, %v451
  %v504 = vpack.c.b16 %v454, %v453
  %v505 = vpack.c.b16 %v456, %v455
  %v506 = vpack.c.b16 %v458, %v457
  %v507 = vpack.c.b16 %v460, %v459
  %v508 = vpack.c.b16 %v462, %v461
  %v509 = vpack.c.b16 %v464, %v463
  %v510 = vpack.c.b16 %v466, %v465
  %v511 = vpack.c.b16 %v468, %v467
  %v512 = vpack.c.b16 %v470, %v469
  %v513 = vpack.c.b16 %v472, %v471
  %v514 = vpack.c.b16 %v474, %v473
  %555 = vmatprep.subr.bf16.mxu0 0
  %556 = vmatpush1.bf16.msra.mxu0 %v475
  %557 = vmatprep.subr.bf16.mxu0 0
  %558 = vmatpush1.bf16.msra.mxu0 %v476
  %559 = vmatprep.subr.bf16.mxu0 0
  %560 = vmatpush1.bf16.msra.mxu0 %v477
  %561 = vmatprep.subr.bf16.mxu0 0
  %562 = vmatpush1.bf16.msra.mxu0 %v478
  %563 = vmatprep.subr.bf16.mxu0 0
  %564 = vmatpush1.bf16.msra.mxu0 %v479
  %565 = vmatprep.subr.bf16.mxu0 0
  %566 = vmatpush1.bf16.msra.mxu0 %v480
  %567 = vmatprep.subr.bf16.mxu0 0
  %568 = vmatpush1.bf16.msra.mxu0 %v481
  %569 = vmatprep.subr.bf16.mxu0 0
  %570 = vmatpush1.bf16.msra.mxu0 %v482
  %571 = vmatprep.subr.bf16.mxu0 0
  %572 = vmatpush1.bf16.msra.mxu0 %v483
  %573 = vmatprep.subr.bf16.mxu0 0
  %574 = vmatpush1.bf16.msra.mxu0 %v484
  %575 = vmatprep.subr.bf16.mxu0 0
  %576 = vmatpush1.bf16.msra.mxu0 %v485
  %577 = vmatprep.subr.bf16.mxu0 0
  %578 = vmatpush1.bf16.msra.mxu0 %v486
  %579 = vmatprep.subr.bf16.mxu0 0
  %580 = vmatpush1.bf16.msra.mxu0 %v487
  %581 = vmatprep.subr.bf16.mxu0 0
  %582 = vmatpush1.bf16.msra.mxu0 %v488
  %583 = vmatprep.subr.bf16.mxu0 0
  %584 = vmatpush1.bf16.msra.mxu0 %v489
  %585 = vmatprep.subr.bf16.mxu0 0
  %586 = vmatpush1.bf16.msra.mxu0 %v490
  %587 = vmatprep.mubr.bf16.mxu0 %v246
  %588 = vmatmul.mubr.bf16.gmra.mrb[0].mxu0 %v245
  %v589 = vpop.f32.mrb[0].mxu0
  %v590 = vadd.f32 %v139, %v589
  %v591 = vpop.f32.mrb[0].mxu0
  %v592 = vpop.f32.mrb[0].mxu0
  %v593 = vadd.f32 %v139, %v592
  %v594 = vpop.f32.mrb[0].mxu0
  %595 = vmatprep.mubr.bf16.mxu0 %v251
  %596 = vmatmul.mubr.bf16.gmra.mrb[0].mxu0 %v250
  %v597 = vpop.f32.mrb[0].mxu0
  %v598 = vadd.f32 %v139, %v597
  %v599 = vpop.f32.mrb[0].mxu0
  %v600 = vpop.f32.mrb[0].mxu0
  %v601 = vadd.f32 %v139, %v600
  %v602 = vpop.f32.mrb[0].mxu0
  %603 = vmatprep.mubr.bf16.mxu0 %v256
  %604 = vmatmul.mubr.bf16.gmra.mrb[0].mxu0 %v255
  %v605 = vpop.f32.mrb[0].mxu0
  %v606 = vadd.f32 %v139, %v605
  %v607 = vpop.f32.mrb[0].mxu0
  %v608 = vpop.f32.mrb[0].mxu0
  %v609 = vadd.f32 %v139, %v608
  %v610 = vpop.f32.mrb[0].mxu0
  %611 = vmatprep.mubr.bf16.mxu0 %v261
  %612 = vmatmul.mubr.bf16.gmra.mrb[0].mxu0 %v260
  %v613 = vpop.f32.mrb[0].mxu0
  %v614 = vadd.f32 %v139, %v613
  %v615 = vpop.f32.mrb[0].mxu0
  %v616 = vpop.f32.mrb[0].mxu0
  %v617 = vadd.f32 %v139, %v616
  %v618 = vpop.f32.mrb[0].mxu0
  %619 = vmatprep.mubr.bf16.mxu0 %v266
  %620 = vmatmul.mubr.bf16.gmra.mrb[0].mxu0 %v265
  %v621 = vpop.f32.mrb[0].mxu0
  %v622 = vadd.f32 %v139, %v621
  %v623 = vpop.f32.mrb[0].mxu0
  %v624 = vpop.f32.mrb[0].mxu0
  %v625 = vadd.f32 %v139, %v624
  %v626 = vpop.f32.mrb[0].mxu0
  %627 = vmatprep.mubr.bf16.mxu0 %v271
  %628 = vmatmul.mubr.bf16.gmra.mrb[0].mxu0 %v270
  %v629 = vpop.f32.mrb[0].mxu0
  %v630 = vadd.f32 %v139, %v629
  %v631 = vpop.f32.mrb[0].mxu0
  %v632 = vpop.f32.mrb[0].mxu0
  %v633 = vadd.f32 %v139, %v632
  %v634 = vpop.f32.mrb[0].mxu0
  %635 = vmatprep.mubr.bf16.mxu0 %v276
  %636 = vmatmul.mubr.bf16.gmra.mrb[0].mxu0 %v275
  %v637 = vpop.f32.mrb[0].mxu0
  %v638 = vadd.f32 %v139, %v637
  %v639 = vpop.f32.mrb[0].mxu0
  %v640 = vpop.f32.mrb[0].mxu0
  %v641 = vpop.f32.mrb[0].mxu0
  %642 = vdwg.mxu0
  %643 = vmatprep.subr.bf16.mxu0 0
  %644 = vmatpush1.bf16.msra.mxu0 %v491
  %645 = vmatprep.subr.bf16.mxu0 0
  %646 = vmatpush1.bf16.msra.mxu0 %v492
  %647 = vmatprep.subr.bf16.mxu0 0
  %648 = vmatpush1.bf16.msra.mxu0 %v493
  %649 = vmatprep.subr.bf16.mxu0 0
  %650 = vmatpush1.bf16.msra.mxu0 %v494
  %651 = vmatprep.subr.bf16.mxu0 0
  %652 = vmatpush1.bf16.msra.mxu0 %v495
  %653 = vmatprep.subr.bf16.mxu0 0
  %654 = vmatpush1.bf16.msra.mxu0 %v496
  %655 = vmatprep.subr.bf16.mxu0 0
  %656 = vmatpush1.bf16.msra.mxu0 %v497
  %657 = vmatprep.subr.bf16.mxu0 0
  %658 = vmatpush1.bf16.msra.mxu0 %v498
  %659 = vmatprep.subr.bf16.mxu0 0
  %660 = vmatpush1.bf16.msra.mxu0 %v499
  %661 = vmatprep.subr.bf16.mxu0 0
  %662 = vmatpush1.bf16.msra.mxu0 %v500
  %663 = vmatprep.subr.bf16.mxu0 0
  %664 = vmatpush1.bf16.msra.mxu0 %v501
  %665 = vmatprep.subr.bf16.mxu0 0
  %666 = vmatpush1.bf16.msra.mxu0 %v502
  %667 = vmatprep.subr.bf16.mxu0 0
  %668 = vmatpush1.bf16.msra.mxu0 %v503
  %669 = vmatprep.subr.bf16.mxu0 0
  %670 = vmatpush1.bf16.msra.mxu0 %v504
  %671 = vmatprep.subr.bf16.mxu0 0
  %672 = vmatpush1.bf16.msra.mxu0 %v505
  %673 = vmatprep.subr.bf16.mxu0 0
  %674 = vmatpush1.bf16.msra.mxu0 %v506
  %675 = vmatprep.mubr.bf16.mxu0 %v248
  %676 = vmatmul.mubr.bf16.gmra.mrb[0].mxu0 %v247
  %v677 = vpop.f32.mrb[0].mxu0
  %v678 = vadd.f32 %v590, %v677
  %v679 = vpop.f32.mrb[0].mxu0
  %v680 = vpop.f32.mrb[0].mxu0
  %v681 = vadd.f32 %v593, %v680
  %v682 = vpop.f32.mrb[0].mxu0
  %683 = vmatprep.mubr.bf16.mxu0 %v253
  %684 = vmatmul.mubr.bf16.gmra.mrb[0].mxu0 %v252
  %v685 = vpop.f32.mrb[0].mxu0
  %v686 = vadd.f32 %v598, %v685
  %v687 = vpop.f32.mrb[0].mxu0
  %v688 = vpop.f32.mrb[0].mxu0
  %v689 = vadd.f32 %v601, %v688
  %v690 = vpop.f32.mrb[0].mxu0
  %691 = vmatprep.mubr.bf16.mxu0 %v258
  %692 = vmatmul.mubr.bf16.gmra.mrb[0].mxu0 %v257
  %v693 = vpop.f32.mrb[0].mxu0
  %v694 = vadd.f32 %v606, %v693
  %v695 = vpop.f32.mrb[0].mxu0
  %v696 = vpop.f32.mrb[0].mxu0
  %v697 = vadd.f32 %v609, %v696
  %v698 = vpop.f32.mrb[0].mxu0
  %699 = vmatprep.mubr.bf16.mxu0 %v263
  %700 = vmatmul.mubr.bf16.gmra.mrb[0].mxu0 %v262
  %v701 = vpop.f32.mrb[0].mxu0
  %v702 = vadd.f32 %v614, %v701
  %v703 = vpop.f32.mrb[0].mxu0
  %v704 = vpop.f32.mrb[0].mxu0
  %v705 = vadd.f32 %v617, %v704
  %v706 = vpop.f32.mrb[0].mxu0
  %707 = vmatprep.mubr.bf16.mxu0 %v268
  %708 = vmatmul.mubr.bf16.gmra.mrb[0].mxu0 %v267
  %v709 = vpop.f32.mrb[0].mxu0
  %v710 = vadd.f32 %v622, %v709
  %v711 = vpop.f32.mrb[0].mxu0
  %v712 = vpop.f32.mrb[0].mxu0
  %v713 = vadd.f32 %v625, %v712
  %v714 = vpop.f32.mrb[0].mxu0
  %715 = vmatprep.mubr.bf16.mxu0 %v273
  %716 = vmatmul.mubr.bf16.gmra.mrb[0].mxu0 %v272
  %v717 = vpop.f32.mrb[0].mxu0
  %v718 = vadd.f32 %v630, %v717
  %v719 = vpop.f32.mrb[0].mxu0
  %v720 = vpop.f32.mrb[0].mxu0
  %v721 = vadd.f32 %v633, %v720
  %v722 = vpop.f32.mrb[0].mxu0
  %723 = vmatprep.mubr.bf16.mxu0 %v278
  %724 = vmatmul.mubr.bf16.gmra.mrb[0].mxu0 %v277
  %v725 = vpop.f32.mrb[0].mxu0
  %v726 = vadd.f32 %v638, %v725
  %v727 = vpop.f32.mrb[0].mxu0
  %v728 = vpop.f32.mrb[0].mxu0
  %v729 = vpop.f32.mrb[0].mxu0
  %730 = vdwg.mxu0
  %731 = vmatprep.subr.bf16.mxu0 0
  %732 = vmatpush1.bf16.msra.mxu0 %v507
  %733 = vmatprep.subr.bf16.mxu0 0
  %734 = vmatpush1.bf16.msra.mxu0 %v508
  %735 = vmatprep.subr.bf16.mxu0 0
  %736 = vmatpush1.bf16.msra.mxu0 %v509
  %737 = vmatprep.subr.bf16.mxu0 0
  %738 = vmatpush1.bf16.msra.mxu0 %v510
  %739 = vmatprep.subr.bf16.mxu0 0
  %740 = vmatpush1.bf16.msra.mxu0 %v511
  %741 = vmatprep.subr.bf16.mxu0 0
  %742 = vmatpush1.bf16.msra.mxu0 %v512
  %743 = vmatprep.subr.bf16.mxu0 0
  %744 = vmatpush1.bf16.msra.mxu0 %v513
  %745 = vmatprep.subr.bf16.mxu0 0
  %746 = vmatpush1.bf16.msra.mxu0 %v514
  %747 = vmatprep.subr.bf16.mxu0 0
  %748 = vmatpush1.bf16.msra.mxu0 0
  %749 = vmatprep.subr.bf16.mxu0 0
  %750 = vmatpush1.bf16.msra.mxu0 0
  %751 = vmatprep.subr.bf16.mxu0 0
  %752 = vmatpush1.bf16.msra.mxu0 0
  %753 = vmatprep.subr.bf16.mxu0 0
  %754 = vmatpush1.bf16.msra.mxu0 0
  %755 = vmatprep.subr.bf16.mxu0 0
  %756 = vmatpush1.bf16.msra.mxu0 0
  %757 = vmatprep.subr.bf16.mxu0 0
  %758 = vmatpush1.bf16.msra.mxu0 0
  %759 = vmatprep.subr.bf16.mxu0 0
  %760 = vmatpush1.bf16.msra.mxu0 0
  %761 = vmatprep.subr.bf16.mxu0 0
  %762 = vmatpush1.bf16.msra.mxu0 0
  %763 = vmatprep.mubr.bf16.mxu0 0
  %764 = vmatmul.mubr.bf16.gmra.mrb[0].mxu0 %v249
  %v765 = vpop.f32.mrb[0].mxu0
  %v766 = vadd.f32 %v678, %v765
  %v767 = vpop.f32.mrb[0].mxu0
  %v768 = vpop.f32.mrb[0].mxu0
  %v769 = vadd.f32 %v681, %v768
  %v770 = vpop.f32.mrb[0].mxu0
  %771 = vmatprep.mubr.bf16.mxu0 0
  %772 = vmatmul.mubr.bf16.gmra.mrb[0].mxu0 %v254
  %v773 = vpop.f32.mrb[0].mxu0
  %v774 = vadd.f32 %v686, %v773
  %v775 = vpop.f32.mrb[0].mxu0
  %v776 = vpop.f32.mrb[0].mxu0
  %v777 = vadd.f32 %v689, %v776
  %v778 = vpop.f32.mrb[0].mxu0
  %779 = vmatprep.mubr.bf16.mxu0 0
  %780 = vmatmul.mubr.bf16.gmra.mrb[0].mxu0 %v259
  %v781 = vpop.f32.mrb[0].mxu0
  %v782 = vadd.f32 %v694, %v781
  %v783 = vpop.f32.mrb[0].mxu0
  %v784 = vpop.f32.mrb[0].mxu0
  %v785 = vadd.f32 %v697, %v784
  %v786 = vpop.f32.mrb[0].mxu0
  %787 = vmatprep.mubr.bf16.mxu0 0
  %788 = vmatmul.mubr.bf16.gmra.mrb[0].mxu0 %v264
  %v789 = vpop.f32.mrb[0].mxu0
  %v790 = vadd.f32 %v702, %v789
  %v791 = vpop.f32.mrb[0].mxu0
  %v792 = vpop.f32.mrb[0].mxu0
  %v793 = vadd.f32 %v705, %v792
  %v794 = vpop.f32.mrb[0].mxu0
  %795 = vmatprep.mubr.bf16.mxu0 0
  %796 = vmatmul.mubr.bf16.gmra.mrb[0].mxu0 %v269
  %v797 = vpop.f32.mrb[0].mxu0
  %v798 = vadd.f32 %v710, %v797
  %v799 = vpop.f32.mrb[0].mxu0
  %v800 = vpop.f32.mrb[0].mxu0
  %v801 = vadd.f32 %v713, %v800
  %v802 = vpop.f32.mrb[0].mxu0
  %803 = vmatprep.mubr.bf16.mxu0 0
  %804 = vmatmul.mubr.bf16.gmra.mrb[0].mxu0 %v274
  %v805 = vpop.f32.mrb[0].mxu0
  %v806 = vadd.f32 %v718, %v805
  %v807 = vpop.f32.mrb[0].mxu0
  %v808 = vpop.f32.mrb[0].mxu0
  %v809 = vadd.f32 %v721, %v808
  %v810 = vpop.f32.mrb[0].mxu0
  %811 = vmatprep.mubr.bf16.mxu0 0
  %812 = vmatmul.mubr.bf16.gmra.mrb[0].mxu0 %v279
  %v813 = vpop.f32.mrb[0].mxu0
  %v814 = vadd.f32 %v726, %v813
  %v815 = vpop.f32.mrb[0].mxu0
  %v816 = vpop.f32.mrb[0].mxu0
  %v817 = vpop.f32.mrb[0].mxu0
  %818 = vdwg.mxu0
  %v819 = vmax.f32 %v766, 0.0
  %v820 = vmax.f32 %v769, 0.0
  %v821 = vmax.f32 %v774, 0.0
  %v822 = vmax.f32 %v777, 0.0
  %v823 = vmax.f32 %v782, 0.0
  %v824 = vmax.f32 %v785, 0.0
  %v825 = vmax.f32 %v790, 0.0
  %v826 = vmax.f32 %v793, 0.0
  %v827 = vmax.f32 %v798, 0.0
  %v828 = vmax.f32 %v801, 0.0
  %v829 = vmax.f32 %v806, 0.0
  %v830 = vmax.f32 %v809, 0.0
  %v831 = vmax.f32 %v814, 0.0
  %v832 = vpack.c.bf16 %v820, %v819
  %v833 = vpack.c.bf16 %v822, %v821
  %v834 = vpack.c.bf16 %v824, %v823
  %v835 = vpack.c.bf16 %v826, %v825
  %v836 = vpack.c.bf16 %v828, %v827
  %v837 = vpack.c.bf16 %v830, %v829
  %v838 = vpack.c.bf16 %v831, %v831
  %v846 = vunpack.c.l.b16 %v832
  %v847 = vunpack.c.h.b16 %v832
  %v848 = vunpack.c.l.b16 %v833
  %v849 = vunpack.c.h.b16 %v833
  %v850 = vunpack.c.l.b16 %v834
  %v851 = vunpack.c.h.b16 %v834
  %v852 = vunpack.c.l.b16 %v835
  %v853 = vunpack.c.h.b16 %v835
  %v854 = vunpack.c.l.b16 %v836
  %v855 = vunpack.c.h.b16 %v836
  %v856 = vunpack.c.l.b16 %v837
  %v857 = vunpack.c.h.b16 %v837
  %v858 = vunpack.c.l.b16 %v838
  %v859 = vpack.c.b16 %v846, %v846
  %v860 = vpack.c.b16 %v847, %v847
  %v861 = vpack.c.b16 %v848, %v848
  %v862 = vpack.c.b16 %v849, %v849
  %v863 = vpack.c.b16 %v850, %v850
  %v864 = vpack.c.b16 %v851, %v851
  %v865 = vpack.c.b16 %v852, %v852
  %v866 = vpack.c.b16 %v853, %v853
  %v867 = vpack.c.b16 %v854, %v854
  %v868 = vpack.c.b16 %v855, %v855
  %v869 = vpack.c.b16 %v856, %v856
  %v870 = vpack.c.b16 %v857, %v857
  %v871 = vpack.c.b16 %v858, %v858
  %885 = vst [vmem:[%s3] sm:$0xf] %v859
  %886 = vst [vmem:[%s3 + $0x4] sm:$0xf] %v860
  %887 = vst [vmem:[%s3 + $0x8] sm:$0xf] %v861
  %888 = vst [vmem:[%s3 + $0xc] sm:$0xf] %v862
  %889 = vst [vmem:[%s3 + $0x10] sm:$0xf] %v863
  %890 = vst [vmem:[%s3 + $0x14] sm:$0xf] %v864
  %891 = vst [vmem:[%s3 + $0x18] sm:$0xf] %v865
  %892 = vst [vmem:[%s3 + $0x1c] sm:$0xf] %v866
  %893 = vst [vmem:[%s3 + $0x20] sm:$0xf] %v867
  %894 = vst [vmem:[%s3 + $0x24] sm:$0xf] %v868
  %895 = vst [vmem:[%s3 + $0x28] sm:$0xf] %v869
  %896 = vst [vmem:[%s3 + $0x2c] sm:$0xf] %v870
  %897 = vst [vmem:[%s3 + $0x30] sm:$0xf] %v871
  // Predicated region
  $region14: #{cnn_base_forward.6} parent=0 // pred_check
    _
  $region15: #{cnn_base_forward.6} parent=0 // pred_check_branch
    %899 = sbr.rel (0) target = $region17
  $region16: #{cnn_base_forward.6} parent=0 // pred_region
    _
  $region17: #{cnn_base_forward.6} parent=0 // pred_fallthru
    _
  // Predicated region
  $region18: #{cnn_base_forward.6} parent=0 // pred_check
    _
  $region19: #{cnn_base_forward.6} parent=0 // pred_check_branch
    %901 = sbr.rel (0) target = $region21
  $region20: #{cnn_base_forward.6} parent=0 // pred_region
    _
  $region21: #{cnn_base_forward.6} parent=0 // pred_fallthru
    _

// kernel: cnn_base_forward.7
$region0: #{cnn_base_forward.7}
  #allocation0 [shape = 'u32[]', space=smem, size = 0x4, offset = 0x4, fixed_abs, tag = 'smem constant byte address 0x4 - core index']
  #allocation1 [shape = 'u32[144,128]{1,0:T(1,128)}', space=vmem, size = 0x12000, scoped, tag = 'internal scratch']
  #allocation2 [shape = 'f32[8,512]{1,0:T(8,128)}', space=vmem, size = 0x4000, scoped, tag = 'scratch operand']
  %s0 = inlined_call_operand.vmem [shape: bf16[8,2048], index: 0, kind: input, shape index: {}]
  %s1 = inlined_call_operand.vmem [shape: bf16[2048,512], index: 1, kind: input, shape index: {}]
  %s2 = inlined_call_operand.vmem [shape: f32[1,512], index: 2, kind: input, shape index: {}]
  %s3 = inlined_call_operand.vmem [shape: f32[512,128], index: 3, kind: input, shape index: {}]
  %s4 = inlined_call_operand.vmem [shape: f32[1,128], index: 4, kind: input, shape index: {}]
  %s5 = inlined_call_operand.vmem [shape: f32[8,512], index: 5, kind: output, shape index: {0}]
  %s6 = inlined_call_operand.vmem [shape: f32[8,128], index: 6, kind: output, shape index: {1}]
  %7 = xla_tuple %s5, %s6
  %s8 = sld [smem:[#allocation0]]
  $region69: #{cnn_base_forward.7} parent=0
    _
  %s10 = ssub.s32 1, %s8
  %s11 = scalar_select 0, %s10, %s8
  loop: start=0, step=1, limit=6
  $region2: #{cnn_base_forward.7} parent=0 // loop_pre_header
    _
  $region3: #{cnn_base_forward.7} parent=0 // loop_header
    %s13 = sphi 0, %s17
    %p14 = scmp.ge.s32.totalorder %s13, 6
    %s20 = sphi 0, %s32
    %s21 = sphi 0, %s28
    %s22 = sphi 0, %s20
    %s23 = sphi 0, %s21
    %s24 = sphi 0, %s22
    %s25 = sphi 0, %s23
    %s37 = sphi 0, %s39
    %s40 = sphi 0, %s37
    %s41 = sphi 0, %s40
    %s57 = sphi 0, %s41
    %s63 = sphi 0, %s65
    %s66 = sphi 0, %s63
    %s67 = sphi 0, %s66
    %s83 = sphi 0, %s67
    %s87 = sphi 0, %s87
    %s89 = sphi 0, %s87
    %s90 = sphi 0, %s89
    %s104 = sphi 0, %s90
    %s108 = sphi 0, %s108
    %s110 = sphi 0, %s108
    %s111 = sphi 0, %s110
    %s125 = sphi 0, %s111
    %s129 = sphi 0, %s129
    %s131 = sphi 0, %s129
    %s132 = sphi 0, %s131
    %s146 = sphi 0, %s132
    %s152 = sphi 0, %s154
    %s155 = sphi 0, %s152
    %s156 = sphi 0, %s155
    %s172 = sphi 0, %s156
    %s178 = sphi 0, %s180
    %s181 = sphi 0, %s178
    %s182 = sphi 0, %s181
    %s198 = sphi 0, %s182
  $region4: #{cnn_base_forward.7} parent=0 // loop_header_branch
    %16 = sbr.rel (%p14) target = $region8
  $region5: #{cnn_base_forward.7} parent=0 // loop_body
    %s18 = ssub.s32 %s13, 1
    %s19 = ssub.s32 %s13, 2
    %s26 = sadd.s32 1, %s21
    %p27 = scmp.ge.s32.totalorder %s26, 4
    %s28 = scalar_select %p27, 0, %s26
    %s29 = sadd.s32 1, %s20
    %s30 = scalar_select %p27, %s29, %s20
    %p31 = scmp.ge.s32.totalorder %s30, 1
    %s32 = scalar_select %p31, 0, %s30
    %s33 = ssub.s32 %s20, %s32
    %s34 = ssub.s32 %s21, %s28
    %s35 = sor.u32 %s33, %s34
    %p36 = scmp.eq.s32.totalorder %s35, 0
    %s38 = sadd.s32 %s37, 1
    %s39 = scalar_select %p36, %s37, %s38
    %p42 = pneg %p36
    %p43 = scmp.eq.s32.totalorder %s13, 3
    %p44 = por %p42, %p43
    %p45 = scmp.ne.s32.totalorder %s37, %s40
    %p46 = scmp.eq.s32.totalorder %s13, 0
    %p47 = por %p45, %p46
    %p48 = scmp.ne.s32.totalorder %s37, %s40
    %p49 = scmp.eq.s32.totalorder %s18, 3
    %p50 = por %p48, %p49
    %p51 = scmp.ne.s32.totalorder %s40, %s41
    %p52 = scmp.eq.s32.totalorder %s18, 0
    %p53 = por %p51, %p52
    %p54 = scmp.ne.s32.totalorder %s40, %s41
    %p55 = scmp.eq.s32.totalorder %s19, 3
    %p56 = por %p54, %p55
    %p58 = scmp.ne.s32.totalorder %s41, %s57
    %p59 = scmp.eq.s32.totalorder %s19, 0
    %p60 = por %p58, %p59
    %s61 = ssub.s32 %s21, %s28
    %p62 = scmp.eq.s32.totalorder %s61, 0
    %s64 = sadd.s32 %s63, 1
    %s65 = scalar_select %p62, %s63, %s64
    %p68 = pneg %p62
    %p69 = scmp.eq.s32.totalorder %s13, 3
    %p70 = por %p68, %p69
    %p71 = scmp.ne.s32.totalorder %s63, %s66
    %p72 = scmp.eq.s32.totalorder %s13, 0
    %p73 = por %p71, %p72
    %p74 = scmp.ne.s32.totalorder %s63, %s66
    %p75 = scmp.eq.s32.totalorder %s18, 3
    %p76 = por %p74, %p75
    %p77 = scmp.ne.s32.totalorder %s66, %s67
    %p78 = scmp.eq.s32.totalorder %s18, 0
    %p79 = por %p77, %p78
    %p80 = scmp.ne.s32.totalorder %s66, %s67
    %p81 = scmp.eq.s32.totalorder %s19, 3
    %p82 = por %p80, %p81
    %p84 = scmp.ne.s32.totalorder %s67, %s83
    %p85 = scmp.eq.s32.totalorder %s19, 0
    %p86 = por %p84, %p85
    %s88 = sadd.s32 %s87, 1
    %p91 = scmp.eq.s32.totalorder %s13, 3
    %p92 = scmp.ne.s32.totalorder %s87, %s89
    %p93 = scmp.eq.s32.totalorder %s13, 0
    %p94 = por %p92, %p93
    %p95 = scmp.ne.s32.totalorder %s87, %s89
    %p96 = scmp.eq.s32.totalorder %s18, 3
    %p97 = por %p95, %p96
    %p98 = scmp.ne.s32.totalorder %s89, %s90
    %p99 = scmp.eq.s32.totalorder %s18, 0
    %p100 = por %p98, %p99
    %p101 = scmp.ne.s32.totalorder %s89, %s90
    %p102 = scmp.eq.s32.totalorder %s19, 3
    %p103 = por %p101, %p102
    %p105 = scmp.ne.s32.totalorder %s90, %s104
    %p106 = scmp.eq.s32.totalorder %s19, 0
    %p107 = por %p105, %p106
    %s109 = sadd.s32 %s108, 1
    %p112 = scmp.eq.s32.totalorder %s13, 3
    %p113 = scmp.ne.s32.totalorder %s108, %s110
    %p114 = scmp.eq.s32.totalorder %s13, 0
    %p115 = por %p113, %p114
    %p116 = scmp.ne.s32.totalorder %s108, %s110
    %p117 = scmp.eq.s32.totalorder %s18, 3
    %p118 = por %p116, %p117
    %p119 = scmp.ne.s32.totalorder %s110, %s111
    %p120 = scmp.eq.s32.totalorder %s18, 0
    %p121 = por %p119, %p120
    %p122 = scmp.ne.s32.totalorder %s110, %s111
    %p123 = scmp.eq.s32.totalorder %s19, 3
    %p124 = por %p122, %p123
    %p126 = scmp.ne.s32.totalorder %s111, %s125
    %p127 = scmp.eq.s32.totalorder %s19, 0
    %p128 = por %p126, %p127
    %s130 = sadd.s32 %s129, 1
    %p133 = scmp.eq.s32.totalorder %s13, 3
    %p134 = scmp.ne.s32.totalorder %s129, %s131
    %p135 = scmp.eq.s32.totalorder %s13, 0
    %p136 = por %p134, %p135
    %p137 = scmp.ne.s32.totalorder %s129, %s131
    %p138 = scmp.eq.s32.totalorder %s18, 3
    %p139 = por %p137, %p138
    %p140 = scmp.ne.s32.totalorder %s131, %s132
    %p141 = scmp.eq.s32.totalorder %s18, 0
    %p142 = por %p140, %p141
    %p143 = scmp.ne.s32.totalorder %s131, %s132
    %p144 = scmp.eq.s32.totalorder %s19, 3
    %p145 = por %p143, %p144
    %p147 = scmp.ne.s32.totalorder %s132, %s146
    %p148 = scmp.eq.s32.totalorder %s19, 0
    %p149 = por %p147, %p148
    %s150 = ssub.s32 %s20, %s32
    %p151 = scmp.eq.s32.totalorder %s150, 0
    %s153 = sadd.s32 %s152, 1
    %s154 = scalar_select %p151, %s152, %s153
    %p157 = pneg %p151
    %p158 = scmp.eq.s32.totalorder %s13, 3
    %p159 = por %p157, %p158
    %p160 = scmp.ne.s32.totalorder %s152, %s155
    %p161 = scmp.eq.s32.totalorder %s13, 0
    %p162 = por %p160, %p161
    %p163 = scmp.ne.s32.totalorder %s152, %s155
    %p164 = scmp.eq.s32.totalorder %s18, 3
    %p165 = por %p163, %p164
    %p166 = scmp.ne.s32.totalorder %s155, %s156
    %p167 = scmp.eq.s32.totalorder %s18, 0
    %p168 = por %p166, %p167
    %p169 = scmp.ne.s32.totalorder %s155, %s156
    %p170 = scmp.eq.s32.totalorder %s19, 3
    %p171 = por %p169, %p170
    %p173 = scmp.ne.s32.totalorder %s156, %s172
    %p174 = scmp.eq.s32.totalorder %s19, 0
    %p175 = por %p173, %p174
    %s176 = ssub.s32 %s20, %s32
    %p177 = scmp.eq.s32.totalorder %s176, 0
    %s179 = sadd.s32 %s178, 1
    %s180 = scalar_select %p177, %s178, %s179
    %p183 = pneg %p177
    %p184 = scmp.eq.s32.totalorder %s13, 3
    %p185 = por %p183, %p184
    %p186 = scmp.ne.s32.totalorder %s178, %s181
    %p187 = scmp.eq.s32.totalorder %s13, 0
    %p188 = por %p186, %p187
    %p189 = scmp.ne.s32.totalorder %s178, %s181
    %p190 = scmp.eq.s32.totalorder %s18, 3
    %p191 = por %p189, %p190
    %p192 = scmp.ne.s32.totalorder %s181, %s182
    %p193 = scmp.eq.s32.totalorder %s18, 0
    %p194 = por %p192, %p193
    %p195 = scmp.ne.s32.totalorder %s181, %s182
    %p196 = scmp.eq.s32.totalorder %s19, 3
    %p197 = por %p195, %p196
    %p199 = scmp.ne.s32.totalorder %s182, %s198
    %p200 = scmp.eq.s32.totalorder %s19, 0
    %p201 = por %p199, %p200
    %p202 = scmp.le.s32.totalorder 1, %s13
    %p203 = scmp.lt.s32.totalorder %s13, 5
    %p204 = pnand %p202, %p203
    %p205 = pneg %p204
    // Predicated region
    $region9: #{cnn_base_forward.7} parent=5 // pred_check
      _
    $region10: #{cnn_base_forward.7} parent=5 // pred_check_branch
      %207 = sbr.rel (%p204) target = $region12
    $region11: #{cnn_base_forward.7} parent=5 // pred_region
      %s208 = ssub.s32 %s13, 1
      // Predicated region
      $region13: #{cnn_base_forward.7} parent=11 // pred_check
        %p209 = pneg %p100
      $region14: #{cnn_base_forward.7} parent=11 // pred_check_branch
        %211 = sbr.rel (%p209) target = $region16
      $region15: #{cnn_base_forward.7} parent=11 // pred_region
        _
      $region16: #{cnn_base_forward.7} parent=11 // pred_fallthru
        _
      // Predicated region
      $region17: #{cnn_base_forward.7} parent=11 // pred_check
        %p212 = pneg %p121
      $region18: #{cnn_base_forward.7} parent=11 // pred_check_branch
        %214 = sbr.rel (%p212) target = $region20
      $region19: #{cnn_base_forward.7} parent=11 // pred_region
        _
      $region20: #{cnn_base_forward.7} parent=11 // pred_fallthru
        _
      // Predicated region
      $region21: #{cnn_base_forward.7} parent=11 // pred_check
        %p215 = pneg %p142
      $region22: #{cnn_base_forward.7} parent=11 // pred_check_branch
        %217 = sbr.rel (%p215) target = $region24
      $region23: #{cnn_base_forward.7} parent=11 // pred_region
        _
      $region24: #{cnn_base_forward.7} parent=11 // pred_fallthru
        _
    $region12: #{cnn_base_forward.7} parent=5 // pred_fallthru
      _
    %p218 = scmp.lt.s32.totalorder %s13, 4
    // Predicated region
    $region25: #{cnn_base_forward.7} parent=5 // pred_check
      %p219 = pneg %p218
    $region26: #{cnn_base_forward.7} parent=5 // pred_check_branch
      %221 = sbr.rel (%p219) target = $region28
    $region27: #{cnn_base_forward.7} parent=5 // pred_region
      // Predicated region
      $region29: #{cnn_base_forward.7} parent=27 // pred_check
        %p222 = pneg %p47
      $region30: #{cnn_base_forward.7} parent=27 // pred_check_branch
        %224 = sbr.rel (%p222) target = $region32
      $region31: #{cnn_base_forward.7} parent=27 // pred_region
        %s225 = smul.u32 4, %s21
        %p226 = scmp.lt.s32.totalorder %s20, 0
        %s227 = scalar_select %p226, %s20, 0
        %p228 = scmp.lt.s32.totalorder %s225, 15
        %s229 = scalar_select %p228, %s225, 15
        %s230 = smul.addr %s227, 16
        %s231 = sadd.s32 %s229, %s230
        %s232 = smul.addr %s231, 4
        %s233 = scalar_lea.vmem %s0, %s232
        %s234 = smul.u32 4, %s21
      $region32: #{cnn_base_forward.7} parent=27 // pred_fallthru
        _
      // Predicated region
      $region33: #{cnn_base_forward.7} parent=27 // pred_check
        %p235 = pneg %p73
      $region34: #{cnn_base_forward.7} parent=27 // pred_check_branch
        %237 = sbr.rel (%p235) target = $region36
      $region35: #{cnn_base_forward.7} parent=27 // pred_region
        %s238 = smul.u32 64, %s21
        %p239 = scmp.lt.s32.totalorder %s238, 255
        %s240 = scalar_select %p239, %s238, 255
        %s241 = smul.addr %s240, 4
        %s242 = smul.addr %s241, 4
        %s243 = scalar_lea.vmem %s1, %s242
        %s244 = smul.u32 64, %s21
      $region36: #{cnn_base_forward.7} parent=27 // pred_fallthru
        _
    $region28: #{cnn_base_forward.7} parent=5 // pred_fallthru
      _
    %p245 = scmp.le.s32.totalorder 1, %s13
    %p246 = scmp.lt.s32.totalorder %s13, 5
    %p247 = pnand %p245, %p246
    %p248 = pneg %p247
    // Predicated region
    $region37: #{cnn_base_forward.7} parent=5 // pred_check
      _
    $region38: #{cnn_base_forward.7} parent=5 // pred_check_branch
      %250 = sbr.rel (%p247) target = $region40
    $region39: #{cnn_base_forward.7} parent=5 // pred_region
      %s251 = ssub.s32 %s13, 1
      %s252 = smul.u32 4, %s23
      %p253 = scmp.lt.s32.totalorder %s22, 0
      %s254 = scalar_select %p253, %s22, 0
      %p255 = scmp.lt.s32.totalorder %s252, 15
      %s256 = scalar_select %p255, %s252, 15
      %s257 = smul.addr %s254, 16
      %s258 = sadd.s32 %s256, %s257
      %s259 = smul.addr %s258, 4
      %s260 = scalar_lea.vmem %s0, %s259
      %p261 = pneg %p53
      %p262 = pneg %p50
      %s263 = smul.u32 64, %s23
      %p264 = scmp.lt.s32.totalorder %s263, 255
      %s265 = scalar_select %p264, %s263, 255
      %s266 = smul.addr %s265, 4
      %s267 = smul.addr %s266, 4
      %s268 = scalar_lea.vmem %s1, %s267
      %p269 = pneg %p79
      %p270 = pneg %p76
      %p271 = pneg %p100
      %p272 = pneg %p97
      %p273 = pneg %p121
      %p274 = pneg %p118
      %p275 = pneg %p142
      %p276 = pneg %p139
      %p277 = pneg %p168
      %p278 = pneg %p165
      %p279 = scmp.lt.s32.totalorder %s22, 0
      %s280 = scalar_select %p279, %s22, 0
      %s281 = smul.addr %s280, 4
      %s282 = smul.addr %s281, 8
      %s283 = scalar_lea.vmem %s5, %s282
      %p284 = pneg %p194
      %p285 = pneg %p191
      %p286 = scmp.lt.s32.totalorder %s22, 0
      %s287 = scalar_select %p286, %s22, 0
      %s288 = smul.addr %s287, 8
      %s289 = scalar_lea.vmem %s6, %s288
      %s290 = smul.u32 4, %s23
      %p291 = scmp.lt.s32.totalorder %s22, 0
      %s292 = scalar_select %p291, %s22, 0
      %p293 = scmp.lt.s32.totalorder %s290, 15
      %s294 = scalar_select %p293, %s290, 15
      %s295 = smul.addr %s292, 16
      %s296 = sadd.s32 %s294, %s295
      %s297 = smul.addr %s296, 4
      %s298 = scalar_lea.vmem %s0, %s297
      %s299 = smul.u32 4, %s23
      %s300 = smul.u32 64, %s23
      %p301 = scmp.lt.s32.totalorder %s300, 255
      %s302 = scalar_select %p301, %s300, 255
      %s303 = smul.addr %s302, 4
      %s304 = smul.addr %s303, 4
      %s305 = scalar_lea.vmem %s1, %s304
      %s306 = smul.u32 64, %s23
      %p307 = scmp.lt.s32.totalorder %s22, 0
      %s308 = scalar_select %p307, %s22, 0
      %s309 = smul.addr %s308, 4
      %s310 = smul.addr %s309, 8
      %s311 = scalar_lea.vmem %s5, %s310
      %p312 = scmp.lt.s32.totalorder %s22, 0
      %s313 = scalar_select %p312, %s22, 0
      %s314 = smul.addr %s313, 8
      %s315 = scalar_lea.vmem %s6, %s314
      %p316 = scmp.eq.s32.totalorder %s23, 0
      // Predicated region
      $region41: #{cnn_base_forward.7} parent=39 // pred_check
        %p317 = pneg %p316
      $region42: #{cnn_base_forward.7} parent=39 // pred_check_branch
        %319 = sbr.rel (%p317) target = $region44
      $region43: #{cnn_base_forward.7} parent=39 // pred_region
        %320 = vst [vmem:[#allocation2] sm:$0xff] 0.0
        %321 = vst [vmem:[#allocation2 + $0x8] sm:$0xff] 0.0
        %322 = vst [vmem:[#allocation2 + $0x10] sm:$0xff] 0.0
        %323 = vst [vmem:[#allocation2 + $0x18] sm:$0xff] 0.0
      $region44: #{cnn_base_forward.7} parent=39 // pred_fallthru
        _
      %v324 = vld [vmem:[#allocation2] sm:$0xff]
      %v325 = vld [vmem:[#allocation2 + $0x8] sm:$0xff]
      %v326 = vld [vmem:[#allocation2 + $0x10] sm:$0xff]
      %v327 = vld [vmem:[#allocation2 + $0x18] sm:$0xff]
      %v328 = vld [vmem:[%s298] sm:$0xff]
      %v329 = vld [vmem:[%s298 + $0x8] sm:$0xff]
      %v330 = vld [vmem:[%s305] sm:$0xff]
      %v331 = vld [vmem:[%s305 + $0x8] sm:$0xff]
      %v332 = vld [vmem:[%s305 + $0x10] sm:$0xff]
      %v333 = vld [vmem:[%s305 + $0x18] sm:$0xff]
      %v334 = vld [vmem:[%s305 + $0x20] sm:$0xff]
      %v335 = vld [vmem:[%s305 + $0x28] sm:$0xff]
      %v336 = vld [vmem:[%s305 + $0x30] sm:$0xff]
      %v337 = vld [vmem:[%s305 + $0x38] sm:$0xff]
      %v338 = vld [vmem:[%s305 + $0x40] sm:$0xff]
      %v339 = vld [vmem:[%s305 + $0x48] sm:$0xff]
      %v340 = vld [vmem:[%s305 + $0x50] sm:$0xff]
      %v341 = vld [vmem:[%s305 + $0x58] sm:$0xff]
      %v342 = vld [vmem:[%s305 + $0x60] sm:$0xff]
      %v343 = vld [vmem:[%s305 + $0x68] sm:$0xff]
      %v344 = vld [vmem:[%s305 + $0x70] sm:$0xff]
      %v345 = vld [vmem:[%s305 + $0x78] sm:$0xff]
      %v346 = vld [vmem:[%s305 + $0x80] sm:$0xff]
      %v347 = vld [vmem:[%s305 + $0x88] sm:$0xff]
      %v348 = vld [vmem:[%s305 + $0x90] sm:$0xff]
      %v349 = vld [vmem:[%s305 + $0x98] sm:$0xff]
      %v350 = vld [vmem:[%s305 + $0xa0] sm:$0xff]
      %v351 = vld [vmem:[%s305 + $0xa8] sm:$0xff]
      %v352 = vld [vmem:[%s305 + $0xb0] sm:$0xff]
      %v353 = vld [vmem:[%s305 + $0xb8] sm:$0xff]
      %v354 = vld [vmem:[%s305 + $0xc0] sm:$0xff]
      %v355 = vld [vmem:[%s305 + $0xc8] sm:$0xff]
      %v356 = vld [vmem:[%s305 + $0xd0] sm:$0xff]
      %v357 = vld [vmem:[%s305 + $0xd8] sm:$0xff]
      %v358 = vld [vmem:[%s305 + $0xe0] sm:$0xff]
      %v359 = vld [vmem:[%s305 + $0xe8] sm:$0xff]
      %v360 = vld [vmem:[%s305 + $0xf0] sm:$0xff]
      %v361 = vld [vmem:[%s305 + $0xf8] sm:$0xff]
      %v362 = vld [vmem:[%s305 + $0x100] sm:$0xff]
      %v363 = vld [vmem:[%s305 + $0x108] sm:$0xff]
      %v364 = vld [vmem:[%s305 + $0x110] sm:$0xff]
      %v365 = vld [vmem:[%s305 + $0x118] sm:$0xff]
      %v366 = vld [vmem:[%s305 + $0x120] sm:$0xff]
      %v367 = vld [vmem:[%s305 + $0x128] sm:$0xff]
      %v368 = vld [vmem:[%s305 + $0x130] sm:$0xff]
      %v369 = vld [vmem:[%s305 + $0x138] sm:$0xff]
      %v370 = vld [vmem:[%s305 + $0x140] sm:$0xff]
      %v371 = vld [vmem:[%s305 + $0x148] sm:$0xff]
      %v372 = vld [vmem:[%s305 + $0x150] sm:$0xff]
      %v373 = vld [vmem:[%s305 + $0x158] sm:$0xff]
      %v374 = vld [vmem:[%s305 + $0x160] sm:$0xff]
      %v375 = vld [vmem:[%s305 + $0x168] sm:$0xff]
      %v376 = vld [vmem:[%s305 + $0x170] sm:$0xff]
      %v377 = vld [vmem:[%s305 + $0x178] sm:$0xff]
      %v378 = vld [vmem:[%s305 + $0x180] sm:$0xff]
      %v379 = vld [vmem:[%s305 + $0x188] sm:$0xff]
      %v380 = vld [vmem:[%s305 + $0x190] sm:$0xff]
      %v381 = vld [vmem:[%s305 + $0x198] sm:$0xff]
      %v382 = vld [vmem:[%s305 + $0x1a0] sm:$0xff]
      %v383 = vld [vmem:[%s305 + $0x1a8] sm:$0xff]
      %v384 = vld [vmem:[%s305 + $0x1b0] sm:$0xff]
      %v385 = vld [vmem:[%s305 + $0x1b8] sm:$0xff]
      %v386 = vld [vmem:[%s305 + $0x1c0] sm:$0xff]
      %v387 = vld [vmem:[%s305 + $0x1c8] sm:$0xff]
      %v388 = vld [vmem:[%s305 + $0x1d0] sm:$0xff]
      %v389 = vld [vmem:[%s305 + $0x1d8] sm:$0xff]
      %v390 = vld [vmem:[%s305 + $0x1e0] sm:$0xff]
      %v391 = vld [vmem:[%s305 + $0x1e8] sm:$0xff]
      %v392 = vld [vmem:[%s305 + $0x1f0] sm:$0xff]
      %v393 = vld [vmem:[%s305 + $0x1f8] sm:$0xff]
      %v394 = vld [vmem:[%s305 + $0x200] sm:$0xff]
      %v395 = vld [vmem:[%s305 + $0x208] sm:$0xff]
      %v396 = vld [vmem:[%s305 + $0x210] sm:$0xff]
      %v397 = vld [vmem:[%s305 + $0x218] sm:$0xff]
      %v398 = vld [vmem:[%s305 + $0x220] sm:$0xff]
      %v399 = vld [vmem:[%s305 + $0x228] sm:$0xff]
      %v400 = vld [vmem:[%s305 + $0x230] sm:$0xff]
      %v401 = vld [vmem:[%s305 + $0x238] sm:$0xff]
      %v402 = vld [vmem:[%s305 + $0x240] sm:$0xff]
      %v403 = vld [vmem:[%s305 + $0x248] sm:$0xff]
      %v404 = vld [vmem:[%s305 + $0x250] sm:$0xff]
      %v405 = vld [vmem:[%s305 + $0x258] sm:$0xff]
      %v406 = vld [vmem:[%s305 + $0x260] sm:$0xff]
      %v407 = vld [vmem:[%s305 + $0x268] sm:$0xff]
      %v408 = vld [vmem:[%s305 + $0x270] sm:$0xff]
      %v409 = vld [vmem:[%s305 + $0x278] sm:$0xff]
      %v410 = vld [vmem:[%s305 + $0x280] sm:$0xff]
      %v411 = vld [vmem:[%s305 + $0x288] sm:$0xff]
      %v412 = vld [vmem:[%s305 + $0x290] sm:$0xff]
      %v413 = vld [vmem:[%s305 + $0x298] sm:$0xff]
      %v414 = vld [vmem:[%s305 + $0x2a0] sm:$0xff]
      %v415 = vld [vmem:[%s305 + $0x2a8] sm:$0xff]
      %v416 = vld [vmem:[%s305 + $0x2b0] sm:$0xff]
      %v417 = vld [vmem:[%s305 + $0x2b8] sm:$0xff]
      %v418 = vld [vmem:[%s305 + $0x2c0] sm:$0xff]
      %v419 = vld [vmem:[%s305 + $0x2c8] sm:$0xff]
      %v420 = vld [vmem:[%s305 + $0x2d0] sm:$0xff]
      %v421 = vld [vmem:[%s305 + $0x2d8] sm:$0xff]
      %v422 = vld [vmem:[%s305 + $0x2e0] sm:$0xff]
      %v423 = vld [vmem:[%s305 + $0x2e8] sm:$0xff]
      %v424 = vld [vmem:[%s305 + $0x2f0] sm:$0xff]
      %v425 = vld [vmem:[%s305 + $0x2f8] sm:$0xff]
      %v426 = vld [vmem:[%s305 + $0x300] sm:$0xff]
      %v427 = vld [vmem:[%s305 + $0x308] sm:$0xff]
      %v428 = vld [vmem:[%s305 + $0x310] sm:$0xff]
      %v429 = vld [vmem:[%s305 + $0x318] sm:$0xff]
      %v430 = vld [vmem:[%s305 + $0x320] sm:$0xff]
      %v431 = vld [vmem:[%s305 + $0x328] sm:$0xff]
      %v432 = vld [vmem:[%s305 + $0x330] sm:$0xff]
      %v433 = vld [vmem:[%s305 + $0x338] sm:$0xff]
      %v434 = vld [vmem:[%s305 + $0x340] sm:$0xff]
      %v435 = vld [vmem:[%s305 + $0x348] sm:$0xff]
      %v436 = vld [vmem:[%s305 + $0x350] sm:$0xff]
      %v437 = vld [vmem:[%s305 + $0x358] sm:$0xff]
      %v438 = vld [vmem:[%s305 + $0x360] sm:$0xff]
      %v439 = vld [vmem:[%s305 + $0x368] sm:$0xff]
      %v440 = vld [vmem:[%s305 + $0x370] sm:$0xff]
      %v441 = vld [vmem:[%s305 + $0x378] sm:$0xff]
      %v442 = vld [vmem:[%s305 + $0x380] sm:$0xff]
      %v443 = vld [vmem:[%s305 + $0x388] sm:$0xff]
      %v444 = vld [vmem:[%s305 + $0x390] sm:$0xff]
      %v445 = vld [vmem:[%s305 + $0x398] sm:$0xff]
      %v446 = vld [vmem:[%s305 + $0x3a0] sm:$0xff]
      %v447 = vld [vmem:[%s305 + $0x3a8] sm:$0xff]
      %v448 = vld [vmem:[%s305 + $0x3b0] sm:$0xff]
      %v449 = vld [vmem:[%s305 + $0x3b8] sm:$0xff]
      %v450 = vld [vmem:[%s305 + $0x3c0] sm:$0xff]
      %v451 = vld [vmem:[%s305 + $0x3c8] sm:$0xff]
      %v452 = vld [vmem:[%s305 + $0x3d0] sm:$0xff]
      %v453 = vld [vmem:[%s305 + $0x3d8] sm:$0xff]
      %v454 = vld [vmem:[%s305 + $0x3e0] sm:$0xff]
      %v455 = vld [vmem:[%s305 + $0x3e8] sm:$0xff]
      %v456 = vld [vmem:[%s305 + $0x3f0] sm:$0xff]
      %v457 = vld [vmem:[%s305 + $0x3f8] sm:$0xff]
      %v460 = vunpack.c.l.b16 %v328
      %v461 = vunpack.c.h.b16 %v328
      %v462 = vunpack.c.l.b16 %v329
      %v463 = vunpack.c.h.b16 %v329
      %v464 = vpack.c.b16 %v460, %v460
      %v465 = vpack.c.b16 %v461, %v461
      %v466 = vpack.c.b16 %v462, %v462
      %v467 = vpack.c.b16 %v463, %v463
      %v600 = vunpack.c.l.b16 %v330
      %v601 = vunpack.c.h.b16 %v330
      %v602 = vunpack.c.l.b16 %v331
      %v603 = vunpack.c.h.b16 %v331
      %v604 = vunpack.c.l.b16 %v332
      %v605 = vunpack.c.h.b16 %v332
      %v606 = vunpack.c.l.b16 %v333
      %v607 = vunpack.c.h.b16 %v333
      %v608 = vunpack.c.l.b16 %v334
      %v609 = vunpack.c.h.b16 %v334
      %v610 = vunpack.c.l.b16 %v335
      %v611 = vunpack.c.h.b16 %v335
      %v612 = vunpack.c.l.b16 %v336
      %v613 = vunpack.c.h.b16 %v336
      %v614 = vunpack.c.l.b16 %v337
      %v615 = vunpack.c.h.b16 %v337
      %v616 = vunpack.c.l.b16 %v338
      %v617 = vunpack.c.h.b16 %v338
      %v618 = vunpack.c.l.b16 %v339
      %v619 = vunpack.c.h.b16 %v339
      %v620 = vunpack.c.l.b16 %v340
      %v621 = vunpack.c.h.b16 %v340
      %v622 = vunpack.c.l.b16 %v341
      %v623 = vunpack.c.h.b16 %v341
      %v624 = vunpack.c.l.b16 %v342
      %v625 = vunpack.c.h.b16 %v342
      %v626 = vunpack.c.l.b16 %v343
      %v627 = vunpack.c.h.b16 %v343
      %v628 = vunpack.c.l.b16 %v344
      %v629 = vunpack.c.h.b16 %v344
      %v630 = vunpack.c.l.b16 %v345
      %v631 = vunpack.c.h.b16 %v345
      %v632 = vunpack.c.l.b16 %v346
      %v633 = vunpack.c.h.b16 %v346
      %v634 = vunpack.c.l.b16 %v347
      %v635 = vunpack.c.h.b16 %v347
      %v636 = vunpack.c.l.b16 %v348
      %v637 = vunpack.c.h.b16 %v348
      %v638 = vunpack.c.l.b16 %v349
      %v639 = vunpack.c.h.b16 %v349
      %v640 = vunpack.c.l.b16 %v350
      %v641 = vunpack.c.h.b16 %v350
      %v642 = vunpack.c.l.b16 %v351
      %v643 = vunpack.c.h.b16 %v351
      %v644 = vunpack.c.l.b16 %v352
      %v645 = vunpack.c.h.b16 %v352
      %v646 = vunpack.c.l.b16 %v353
      %v647 = vunpack.c.h.b16 %v353
      %v648 = vunpack.c.l.b16 %v354
      %v649 = vunpack.c.h.b16 %v354
      %v650 = vunpack.c.l.b16 %v355
      %v651 = vunpack.c.h.b16 %v355
      %v652 = vunpack.c.l.b16 %v356
      %v653 = vunpack.c.h.b16 %v356
      %v654 = vunpack.c.l.b16 %v357
      %v655 = vunpack.c.h.b16 %v357
      %v656 = vunpack.c.l.b16 %v358
      %v657 = vunpack.c.h.b16 %v358
      %v658 = vunpack.c.l.b16 %v359
      %v659 = vunpack.c.h.b16 %v359
      %v660 = vunpack.c.l.b16 %v360
      %v661 = vunpack.c.h.b16 %v360
      %v662 = vunpack.c.l.b16 %v361
      %v663 = vunpack.c.h.b16 %v361
      %v664 = vunpack.c.l.b16 %v362
      %v665 = vunpack.c.h.b16 %v362
      %v666 = vunpack.c.l.b16 %v363
      %v667 = vunpack.c.h.b16 %v363
      %v668 = vunpack.c.l.b16 %v364
      %v669 = vunpack.c.h.b16 %v364
      %v670 = vunpack.c.l.b16 %v365
      %v671 = vunpack.c.h.b16 %v365
      %v672 = vunpack.c.l.b16 %v366
      %v673 = vunpack.c.h.b16 %v366
      %v674 = vunpack.c.l.b16 %v367
      %v675 = vunpack.c.h.b16 %v367
      %v676 = vunpack.c.l.b16 %v368
      %v677 = vunpack.c.h.b16 %v368
      %v678 = vunpack.c.l.b16 %v369
      %v679 = vunpack.c.h.b16 %v369
      %v680 = vunpack.c.l.b16 %v370
      %v681 = vunpack.c.h.b16 %v370
      %v682 = vunpack.c.l.b16 %v371
      %v683 = vunpack.c.h.b16 %v371
      %v684 = vunpack.c.l.b16 %v372
      %v685 = vunpack.c.h.b16 %v372
      %v686 = vunpack.c.l.b16 %v373
      %v687 = vunpack.c.h.b16 %v373
      %v688 = vunpack.c.l.b16 %v374
      %v689 = vunpack.c.h.b16 %v374
      %v690 = vunpack.c.l.b16 %v375
      %v691 = vunpack.c.h.b16 %v375
      %v692 = vunpack.c.l.b16 %v376
      %v693 = vunpack.c.h.b16 %v376
      %v694 = vunpack.c.l.b16 %v377
      %v695 = vunpack.c.h.b16 %v377
      %v696 = vunpack.c.l.b16 %v378
      %v697 = vunpack.c.h.b16 %v378
      %v698 = vunpack.c.l.b16 %v379
      %v699 = vunpack.c.h.b16 %v379
      %v700 = vunpack.c.l.b16 %v380
      %v701 = vunpack.c.h.b16 %v380
      %v702 = vunpack.c.l.b16 %v381
      %v703 = vunpack.c.h.b16 %v381
      %v704 = vunpack.c.l.b16 %v382
      %v705 = vunpack.c.h.b16 %v382
      %v706 = vunpack.c.l.b16 %v383
      %v707 = vunpack.c.h.b16 %v383
      %v708 = vunpack.c.l.b16 %v384
      %v709 = vunpack.c.h.b16 %v384
      %v710 = vunpack.c.l.b16 %v385
      %v711 = vunpack.c.h.b16 %v385
      %v712 = vunpack.c.l.b16 %v386
      %v713 = vunpack.c.h.b16 %v386
      %v714 = vunpack.c.l.b16 %v387
      %v715 = vunpack.c.h.b16 %v387
      %v716 = vunpack.c.l.b16 %v388
      %v717 = vunpack.c.h.b16 %v388
      %v718 = vunpack.c.l.b16 %v389
      %v719 = vunpack.c.h.b16 %v389
      %v720 = vunpack.c.l.b16 %v390
      %v721 = vunpack.c.h.b16 %v390
      %v722 = vunpack.c.l.b16 %v391
      %v723 = vunpack.c.h.b16 %v391
      %v724 = vunpack.c.l.b16 %v392
      %v725 = vunpack.c.h.b16 %v392
      %v726 = vunpack.c.l.b16 %v393
      %v727 = vunpack.c.h.b16 %v393
      %v728 = vunpack.c.l.b16 %v394
      %v729 = vunpack.c.h.b16 %v394
      %v730 = vunpack.c.l.b16 %v395
      %v731 = vunpack.c.h.b16 %v395
      %v732 = vunpack.c.l.b16 %v396
      %v733 = vunpack.c.h.b16 %v396
      %v734 = vunpack.c.l.b16 %v397
      %v735 = vunpack.c.h.b16 %v397
      %v736 = vunpack.c.l.b16 %v398
      %v737 = vunpack.c.h.b16 %v398
      %v738 = vunpack.c.l.b16 %v399
      %v739 = vunpack.c.h.b16 %v399
      %v740 = vunpack.c.l.b16 %v400
      %v741 = vunpack.c.h.b16 %v400
      %v742 = vunpack.c.l.b16 %v401
      %v743 = vunpack.c.h.b16 %v401
      %v744 = vunpack.c.l.b16 %v402
      %v745 = vunpack.c.h.b16 %v402
      %v746 = vunpack.c.l.b16 %v403
      %v747 = vunpack.c.h.b16 %v403
      %v748 = vunpack.c.l.b16 %v404
      %v749 = vunpack.c.h.b16 %v404
      %v750 = vunpack.c.l.b16 %v405
      %v751 = vunpack.c.h.b16 %v405
      %v752 = vunpack.c.l.b16 %v406
      %v753 = vunpack.c.h.b16 %v406
      %v754 = vunpack.c.l.b16 %v407
      %v755 = vunpack.c.h.b16 %v407
      %v756 = vunpack.c.l.b16 %v408
      %v757 = vunpack.c.h.b16 %v408
      %v758 = vunpack.c.l.b16 %v409
      %v759 = vunpack.c.h.b16 %v409
      %v760 = vunpack.c.l.b16 %v410
      %v761 = vunpack.c.h.b16 %v410
      %v762 = vunpack.c.l.b16 %v411
      %v763 = vunpack.c.h.b16 %v411
      %v764 = vunpack.c.l.b16 %v412
      %v765 = vunpack.c.h.b16 %v412
      %v766 = vunpack.c.l.b16 %v413
      %v767 = vunpack.c.h.b16 %v413
      %v768 = vunpack.c.l.b16 %v414
      %v769 = vunpack.c.h.b16 %v414
      %v770 = vunpack.c.l.b16 %v415
      %v771 = vunpack.c.h.b16 %v415
      %v772 = vunpack.c.l.b16 %v416
      %v773 = vunpack.c.h.b16 %v416
      %v774 = vunpack.c.l.b16 %v417
      %v775 = vunpack.c.h.b16 %v417
      %v776 = vunpack.c.l.b16 %v418
      %v777 = vunpack.c.h.b16 %v418
      %v778 = vunpack.c.l.b16 %v419
      %v779 = vunpack.c.h.b16 %v419
      %v780 = vunpack.c.l.b16 %v420
      %v781 = vunpack.c.h.b16 %v420
      %v782 = vunpack.c.l.b16 %v421
      %v783 = vunpack.c.h.b16 %v421
      %v784 = vunpack.c.l.b16 %v422
      %v785 = vunpack.c.h.b16 %v422
      %v786 = vunpack.c.l.b16 %v423
      %v787 = vunpack.c.h.b16 %v423
      %v788 = vunpack.c.l.b16 %v424
      %v789 = vunpack.c.h.b16 %v424
      %v790 = vunpack.c.l.b16 %v425
      %v791 = vunpack.c.h.b16 %v425
      %v792 = vunpack.c.l.b16 %v426
      %v793 = vunpack.c.h.b16 %v426
      %v794 = vunpack.c.l.b16 %v427
      %v795 = vunpack.c.h.b16 %v427
      %v796 = vunpack.c.l.b16 %v428
      %v797 = vunpack.c.h.b16 %v428
      %v798 = vunpack.c.l.b16 %v429
      %v799 = vunpack.c.h.b16 %v429
      %v800 = vunpack.c.l.b16 %v430
      %v801 = vunpack.c.h.b16 %v430
      %v802 = vunpack.c.l.b16 %v431
      %v803 = vunpack.c.h.b16 %v431
      %v804 = vunpack.c.l.b16 %v432
      %v805 = vunpack.c.h.b16 %v432
      %v806 = vunpack.c.l.b16 %v433
      %v807 = vunpack.c.h.b16 %v433
      %v808 = vunpack.c.l.b16 %v434
      %v809 = vunpack.c.h.b16 %v434
      %v810 = vunpack.c.l.b16 %v435
      %v811 = vunpack.c.h.b16 %v435
      %v812 = vunpack.c.l.b16 %v436
      %v813 = vunpack.c.h.b16 %v436
      %v814 = vunpack.c.l.b16 %v437
      %v815 = vunpack.c.h.b16 %v437
      %v816 = vunpack.c.l.b16 %v438
      %v817 = vunpack.c.h.b16 %v438
      %v818 = vunpack.c.l.b16 %v439
      %v819 = vunpack.c.h.b16 %v439
      %v820 = vunpack.c.l.b16 %v440
      %v821 = vunpack.c.h.b16 %v440
      %v822 = vunpack.c.l.b16 %v441
      %v823 = vunpack.c.h.b16 %v441
      %v824 = vunpack.c.l.b16 %v442
      %v825 = vunpack.c.h.b16 %v442
      %v826 = vunpack.c.l.b16 %v443
      %v827 = vunpack.c.h.b16 %v443
      %v828 = vunpack.c.l.b16 %v444
      %v829 = vunpack.c.h.b16 %v444
      %v830 = vunpack.c.l.b16 %v445
      %v831 = vunpack.c.h.b16 %v445
      %v832 = vunpack.c.l.b16 %v446
      %v833 = vunpack.c.h.b16 %v446
      %v834 = vunpack.c.l.b16 %v447
      %v835 = vunpack.c.h.b16 %v447
      %v836 = vunpack.c.l.b16 %v448
      %v837 = vunpack.c.h.b16 %v448
      %v838 = vunpack.c.l.b16 %v449
      %v839 = vunpack.c.h.b16 %v449
      %v840 = vunpack.c.l.b16 %v450
      %v841 = vunpack.c.h.b16 %v450
      %v842 = vunpack.c.l.b16 %v451
      %v843 = vunpack.c.h.b16 %v451
      %v844 = vunpack.c.l.b16 %v452
      %v845 = vunpack.c.h.b16 %v452
      %v846 = vunpack.c.l.b16 %v453
      %v847 = vunpack.c.h.b16 %v453
      %v848 = vunpack.c.l.b16 %v454
      %v849 = vunpack.c.h.b16 %v454
      %v850 = vunpack.c.l.b16 %v455
      %v851 = vunpack.c.h.b16 %v455
      %v852 = vunpack.c.l.b16 %v456
      %v853 = vunpack.c.h.b16 %v456
      %v854 = vunpack.c.l.b16 %v457
      %v855 = vunpack.c.h.b16 %v457
      %v856 = vpack.c.b16 %v604, %v600
      %v857 = vpack.c.b16 %v605, %v601
      %v858 = vpack.c.b16 %v606, %v602
      %v859 = vpack.c.b16 %v607, %v603
      %v860 = vpack.c.b16 %v612, %v608
      %v861 = vpack.c.b16 %v613, %v609
      %v862 = vpack.c.b16 %v614, %v610
      %v863 = vpack.c.b16 %v615, %v611
      %v864 = vpack.c.b16 %v620, %v616
      %v865 = vpack.c.b16 %v621, %v617
      %v866 = vpack.c.b16 %v622, %v618
      %v867 = vpack.c.b16 %v623, %v619
      %v868 = vpack.c.b16 %v628, %v624
      %v869 = vpack.c.b16 %v629, %v625
      %v870 = vpack.c.b16 %v630, %v626
      %v871 = vpack.c.b16 %v631, %v627
      %v872 = vpack.c.b16 %v636, %v632
      %v873 = vpack.c.b16 %v637, %v633
      %v874 = vpack.c.b16 %v638, %v634
      %v875 = vpack.c.b16 %v639, %v635
      %v876 = vpack.c.b16 %v644, %v640
      %v877 = vpack.c.b16 %v645, %v641
      %v878 = vpack.c.b16 %v646, %v642
      %v879 = vpack.c.b16 %v647, %v643
      %v880 = vpack.c.b16 %v652, %v648
      %v881 = vpack.c.b16 %v653, %v649
      %v882 = vpack.c.b16 %v654, %v650
      %v883 = vpack.c.b16 %v655, %v651
      %v884 = vpack.c.b16 %v660, %v656
      %v885 = vpack.c.b16 %v661, %v657
      %v886 = vpack.c.b16 %v662, %v658
      %v887 = vpack.c.b16 %v663, %v659
      %v888 = vpack.c.b16 %v668, %v664
      %v889 = vpack.c.b16 %v669, %v665
      %v890 = vpack.c.b16 %v670, %v666
      %v891 = vpack.c.b16 %v671, %v667
      %v892 = vpack.c.b16 %v676, %v672
      %v893 = vpack.c.b16 %v677, %v673
      %v894 = vpack.c.b16 %v678, %v674
      %v895 = vpack.c.b16 %v679, %v675
      %v896 = vpack.c.b16 %v684, %v680
      %v897 = vpack.c.b16 %v685, %v681
      %v898 = vpack.c.b16 %v686, %v682
      %v899 = vpack.c.b16 %v687, %v683
      %v900 = vpack.c.b16 %v692, %v688
      %v901 = vpack.c.b16 %v693, %v689
      %v902 = vpack.c.b16 %v694, %v690
      %v903 = vpack.c.b16 %v695, %v691
      %v904 = vpack.c.b16 %v700, %v696
      %v905 = vpack.c.b16 %v701, %v697
      %v906 = vpack.c.b16 %v702, %v698
      %v907 = vpack.c.b16 %v703, %v699
      %v908 = vpack.c.b16 %v708, %v704
      %v909 = vpack.c.b16 %v709, %v705
      %v910 = vpack.c.b16 %v710, %v706
      %v911 = vpack.c.b16 %v711, %v707
      %v912 = vpack.c.b16 %v716, %v712
      %v913 = vpack.c.b16 %v717, %v713
      %v914 = vpack.c.b16 %v718, %v714
      %v915 = vpack.c.b16 %v719, %v715
      %v916 = vpack.c.b16 %v724, %v720
      %v917 = vpack.c.b16 %v725, %v721
      %v918 = vpack.c.b16 %v726, %v722
      %v919 = vpack.c.b16 %v727, %v723
      %v920 = vpack.c.b16 %v732, %v728
      %v921 = vpack.c.b16 %v733, %v729
      %v922 = vpack.c.b16 %v734, %v730
      %v923 = vpack.c.b16 %v735, %v731
      %v924 = vpack.c.b16 %v740, %v736
      %v925 = vpack.c.b16 %v741, %v737
      %v926 = vpack.c.b16 %v742, %v738
      %v927 = vpack.c.b16 %v743, %v739
      %v928 = vpack.c.b16 %v748, %v744
      %v929 = vpack.c.b16 %v749, %v745
      %v930 = vpack.c.b16 %v750, %v746
      %v931 = vpack.c.b16 %v751, %v747
      %v932 = vpack.c.b16 %v756, %v752
      %v933 = vpack.c.b16 %v757, %v753
      %v934 = vpack.c.b16 %v758, %v754
      %v935 = vpack.c.b16 %v759, %v755
      %v936 = vpack.c.b16 %v764, %v760
      %v937 = vpack.c.b16 %v765, %v761
      %v938 = vpack.c.b16 %v766, %v762
      %v939 = vpack.c.b16 %v767, %v763
      %v940 = vpack.c.b16 %v772, %v768
      %v941 = vpack.c.b16 %v773, %v769
      %v942 = vpack.c.b16 %v774, %v770
      %v943 = vpack.c.b16 %v775, %v771
      %v944 = vpack.c.b16 %v780, %v776
      %v945 = vpack.c.b16 %v781, %v777
      %v946 = vpack.c.b16 %v782, %v778
      %v947 = vpack.c.b16 %v783, %v779
      %v948 = vpack.c.b16 %v788, %v784
      %v949 = vpack.c.b16 %v789, %v785
      %v950 = vpack.c.b16 %v790, %v786
      %v951 = vpack.c.b16 %v791, %v787
      %v952 = vpack.c.b16 %v796, %v792
      %v953 = vpack.c.b16 %v797, %v793
      %v954 = vpack.c.b16 %v798, %v794
      %v955 = vpack.c.b16 %v799, %v795
      %v956 = vpack.c.b16 %v804, %v800
      %v957 = vpack.c.b16 %v805, %v801
      %v958 = vpack.c.b16 %v806, %v802
      %v959 = vpack.c.b16 %v807, %v803
      %v960 = vpack.c.b16 %v812, %v808
      %v961 = vpack.c.b16 %v813, %v809
      %v962 = vpack.c.b16 %v814, %v810
      %v963 = vpack.c.b16 %v815, %v811
      %v964 = vpack.c.b16 %v820, %v816
      %v965 = vpack.c.b16 %v821, %v817
      %v966 = vpack.c.b16 %v822, %v818
      %v967 = vpack.c.b16 %v823, %v819
      %v968 = vpack.c.b16 %v828, %v824
      %v969 = vpack.c.b16 %v829, %v825
      %v970 = vpack.c.b16 %v830, %v826
      %v971 = vpack.c.b16 %v831, %v827
      %v972 = vpack.c.b16 %v836, %v832
      %v973 = vpack.c.b16 %v837, %v833
      %v974 = vpack.c.b16 %v838, %v834
      %v975 = vpack.c.b16 %v839, %v835
      %v976 = vpack.c.b16 %v844, %v840
      %v977 = vpack.c.b16 %v845, %v841
      %v978 = vpack.c.b16 %v846, %v842
      %v979 = vpack.c.b16 %v847, %v843
      %v980 = vpack.c.b16 %v852, %v848
      %v981 = vpack.c.b16 %v853, %v849
      %v982 = vpack.c.b16 %v854, %v850
      %v983 = vpack.c.b16 %v855, %v851
      %1112 = vmatprep.subr.bf16.mxu0 %v857
      %1113 = vmatpush1.bf16.msra.mxu0 %v856
      %1114 = vmatprep.subr.bf16.mxu0 %v861
      %1115 = vmatpush1.bf16.msra.mxu0 %v860
      %1116 = vmatprep.subr.bf16.mxu0 %v865
      %1117 = vmatpush1.bf16.msra.mxu0 %v864
      %1118 = vmatprep.subr.bf16.mxu0 %v869
      %1119 = vmatpush1.bf16.msra.mxu0 %v868
      %1120 = vmatprep.subr.bf16.mxu0 %v873
      %1121 = vmatpush1.bf16.msra.mxu0 %v872
      %1122 = vmatprep.subr.bf16.mxu0 %v877
      %1123 = vmatpush1.bf16.msra.mxu0 %v876
      %1124 = vmatprep.subr.bf16.mxu0 %v881
      %1125 = vmatpush1.bf16.msra.mxu0 %v880
      %1126 = vmatprep.subr.bf16.mxu0 %v885
      %1127 = vmatpush1.bf16.msra.mxu0 %v884
      %1128 = vmatprep.subr.bf16.mxu0 %v889
      %1129 = vmatpush1.bf16.msra.mxu0 %v888
      %1130 = vmatprep.subr.bf16.mxu0 %v893
      %1131 = vmatpush1.bf16.msra.mxu0 %v892
      %1132 = vmatprep.subr.bf16.mxu0 %v897
      %1133 = vmatpush1.bf16.msra.mxu0 %v896
      %1134 = vmatprep.subr.bf16.mxu0 %v901
      %1135 = vmatpush1.bf16.msra.mxu0 %v900
      %1136 = vmatprep.subr.bf16.mxu0 %v905
      %1137 = vmatpush1.bf16.msra.mxu0 %v904
      %1138 = vmatprep.subr.bf16.mxu0 %v909
      %1139 = vmatpush1.bf16.msra.mxu0 %v908
      %1140 = vmatprep.subr.bf16.mxu0 %v913
      %1141 = vmatpush1.bf16.msra.mxu0 %v912
      %1142 = vmatprep.subr.bf16.mxu0 %v917
      %1143 = vmatpush1.bf16.msra.mxu0 %v916
      %1144 = vmatprep.mubr.bf16.mxu0 %v465
      %1145 = vmatmul.mubr.bf16.gmra.mrb[0].mxu0 %v464
      %v1146 = vpop.f32.mrb[0].mxu0
      %v1147 = vadd.f32 0.0, %v1146
      %v1148 = vpop.f32.mrb[0].mxu0
      %v1149 = vadd.f32 0.0, %v1148
      %v1150 = vpop.f32.mrb[0].mxu0
      %v1151 = vpop.f32.mrb[0].mxu0
      %1152 = vdwg.mxu0
      %1153 = vmatprep.subr.bf16.mxu0 %v921
      %1154 = vmatpush1.bf16.msra.mxu0 %v920
      %1155 = vmatprep.subr.bf16.mxu0 %v925
      %1156 = vmatpush1.bf16.msra.mxu0 %v924
      %1157 = vmatprep.subr.bf16.mxu0 %v929
      %1158 = vmatpush1.bf16.msra.mxu0 %v928
      %1159 = vmatprep.subr.bf16.mxu0 %v933
      %1160 = vmatpush1.bf16.msra.mxu0 %v932
      %1161 = vmatprep.subr.bf16.mxu0 %v937
      %1162 = vmatpush1.bf16.msra.mxu0 %v936
      %1163 = vmatprep.subr.bf16.mxu0 %v941
      %1164 = vmatpush1.bf16.msra.mxu0 %v940
      %1165 = vmatprep.subr.bf16.mxu0 %v945
      %1166 = vmatpush1.bf16.msra.mxu0 %v944
      %1167 = vmatprep.subr.bf16.mxu0 %v949
      %1168 = vmatpush1.bf16.msra.mxu0 %v948
      %1169 = vmatprep.subr.bf16.mxu0 %v953
      %1170 = vmatpush1.bf16.msra.mxu0 %v952
      %1171 = vmatprep.subr.bf16.mxu0 %v957
      %1172 = vmatpush1.bf16.msra.mxu0 %v956
      %1173 = vmatprep.subr.bf16.mxu0 %v961
      %1174 = vmatpush1.bf16.msra.mxu0 %v960
      %1175 = vmatprep.subr.bf16.mxu0 %v965
      %1176 = vmatpush1.bf16.msra.mxu0 %v964
      %1177 = vmatprep.subr.bf16.mxu0 %v969
      %1178 = vmatpush1.bf16.msra.mxu0 %v968
      %1179 = vmatprep.subr.bf16.mxu0 %v973
      %1180 = vmatpush1.bf16.msra.mxu0 %v972
      %1181 = vmatprep.subr.bf16.mxu0 %v977
      %1182 = vmatpush1.bf16.msra.mxu0 %v976
      %1183 = vmatprep.subr.bf16.mxu0 %v981
      %1184 = vmatpush1.bf16.msra.mxu0 %v980
      %1185 = vmatprep.mubr.bf16.mxu0 %v467
      %1186 = vmatmul.mubr.bf16.gmra.mrb[0].mxu0 %v466
      %v1187 = vpop.f32.mrb[0].mxu0
      %v1188 = vadd.f32 %v1147, %v1187
      %v1189 = vpop.f32.mrb[0].mxu0
      %v1190 = vadd.f32 %v1149, %v1189
      %v1191 = vpop.f32.mrb[0].mxu0
      %v1192 = vpop.f32.mrb[0].mxu0
      %1193 = vdwg.mxu0
      %1194 = vmatprep.subr.bf16.mxu0 %v859
      %1195 = vmatpush1.bf16.msra.mxu0 %v858
      %1196 = vmatprep.subr.bf16.mxu0 %v863
      %1197 = vmatpush1.bf16.msra.mxu0 %v862
      %1198 = vmatprep.subr.bf16.mxu0 %v867
      %1199 = vmatpush1.bf16.msra.mxu0 %v866
      %1200 = vmatprep.subr.bf16.mxu0 %v871
      %1201 = vmatpush1.bf16.msra.mxu0 %v870
      %1202 = vmatprep.subr.bf16.mxu0 %v875
      %1203 = vmatpush1.bf16.msra.mxu0 %v874
      %1204 = vmatprep.subr.bf16.mxu0 %v879
      %1205 = vmatpush1.bf16.msra.mxu0 %v878
      %1206 = vmatprep.subr.bf16.mxu0 %v883
      %1207 = vmatpush1.bf16.msra.mxu0 %v882
      %1208 = vmatprep.subr.bf16.mxu0 %v887
      %1209 = vmatpush1.bf16.msra.mxu0 %v886
      %1210 = vmatprep.subr.bf16.mxu0 %v891
      %1211 = vmatpush1.bf16.msra.mxu0 %v890
      %1212 = vmatprep.subr.bf16.mxu0 %v895
      %1213 = vmatpush1.bf16.msra.mxu0 %v894
      %1214 = vmatprep.subr.bf16.mxu0 %v899
      %1215 = vmatpush1.bf16.msra.mxu0 %v898
      %1216 = vmatprep.subr.bf16.mxu0 %v903
      %1217 = vmatpush1.bf16.msra.mxu0 %v902
      %1218 = vmatprep.subr.bf16.mxu0 %v907
      %1219 = vmatpush1.bf16.msra.mxu0 %v906
      %1220 = vmatprep.subr.bf16.mxu0 %v911
      %1221 = vmatpush1.bf16.msra.mxu0 %v910
      %1222 = vmatprep.subr.bf16.mxu0 %v915
      %1223 = vmatpush1.bf16.msra.mxu0 %v914
      %1224 = vmatprep.subr.bf16.mxu0 %v919
      %1225 = vmatpush1.bf16.msra.mxu0 %v918
      %1226 = vmatprep.mubr.bf16.mxu0 %v465
      %1227 = vmatmul.mubr.bf16.gmra.mrb[0].mxu0 %v464
      %v1228 = vpop.f32.mrb[0].mxu0
      %v1229 = vadd.f32 0.0, %v1228
      %v1230 = vpop.f32.mrb[0].mxu0
      %v1231 = vadd.f32 0.0, %v1230
      %v1232 = vpop.f32.mrb[0].mxu0
      %v1233 = vpop.f32.mrb[0].mxu0
      %1234 = vdwg.mxu0
      %1235 = vmatprep.subr.bf16.mxu0 %v923
      %1236 = vmatpush1.bf16.msra.mxu0 %v922
      %1237 = vmatprep.subr.bf16.mxu0 %v927
      %1238 = vmatpush1.bf16.msra.mxu0 %v926
      %1239 = vmatprep.subr.bf16.mxu0 %v931
      %1240 = vmatpush1.bf16.msra.mxu0 %v930
      %1241 = vmatprep.subr.bf16.mxu0 %v935
      %1242 = vmatpush1.bf16.msra.mxu0 %v934
      %1243 = vmatprep.subr.bf16.mxu0 %v939
      %1244 = vmatpush1.bf16.msra.mxu0 %v938
      %1245 = vmatprep.subr.bf16.mxu0 %v943
      %1246 = vmatpush1.bf16.msra.mxu0 %v942
      %1247 = vmatprep.subr.bf16.mxu0 %v947
      %1248 = vmatpush1.bf16.msra.mxu0 %v946
      %1249 = vmatprep.subr.bf16.mxu0 %v951
      %1250 = vmatpush1.bf16.msra.mxu0 %v950
      %1251 = vmatprep.subr.bf16.mxu0 %v955
      %1252 = vmatpush1.bf16.msra.mxu0 %v954
      %1253 = vmatprep.subr.bf16.mxu0 %v959
      %1254 = vmatpush1.bf16.msra.mxu0 %v958
      %1255 = vmatprep.subr.bf16.mxu0 %v963
      %1256 = vmatpush1.bf16.msra.mxu0 %v962
      %1257 = vmatprep.subr.bf16.mxu0 %v967
      %1258 = vmatpush1.bf16.msra.mxu0 %v966
      %1259 = vmatprep.subr.bf16.mxu0 %v971
      %1260 = vmatpush1.bf16.msra.mxu0 %v970
      %1261 = vmatprep.subr.bf16.mxu0 %v975
      %1262 = vmatpush1.bf16.msra.mxu0 %v974
      %1263 = vmatprep.subr.bf16.mxu0 %v979
      %1264 = vmatpush1.bf16.msra.mxu0 %v978
      %1265 = vmatprep.subr.bf16.mxu0 %v983
      %1266 = vmatpush1.bf16.msra.mxu0 %v982
      %1267 = vmatprep.mubr.bf16.mxu0 %v467
      %1268 = vmatmul.mubr.bf16.gmra.mrb[0].mxu0 %v466
      %v1269 = vpop.f32.mrb[0].mxu0
      %v1270 = vadd.f32 %v1229, %v1269
      %v1271 = vpop.f32.mrb[0].mxu0
      %v1272 = vadd.f32 %v1231, %v1271
      %v1273 = vpop.f32.mrb[0].mxu0
      %v1274 = vpop.f32.mrb[0].mxu0
      %1275 = vdwg.mxu0
      %v1276 = vadd.f32 %v324, %v1188
      %v1277 = vadd.f32 %v325, %v1190
      %v1278 = vadd.f32 %v326, %v1270
      %v1279 = vadd.f32 %v327, %v1272
      %1280 = vst [vmem:[#allocation2] sm:$0xff] %v1276
      %1281 = vst [vmem:[#allocation2 + $0x8] sm:$0xff] %v1277
      %1282 = vst [vmem:[#allocation2 + $0x10] sm:$0xff] %v1278
      %1283 = vst [vmem:[#allocation2 + $0x18] sm:$0xff] %v1279
      %p1284 = scmp.eq.s32.totalorder %s23, 3
      // Predicated region
      $region45: #{cnn_base_forward.7} parent=39 // pred_check
        %p1285 = pneg %p1284
      $region46: #{cnn_base_forward.7} parent=39 // pred_check_branch
        %1287 = sbr.rel (%p1285) target = $region48
      $region47: #{cnn_base_forward.7} parent=39 // pred_region
        %v1288 = vld [vmem:[#allocation2] sm:$0xff]
        %v1289 = vld [vmem:[#allocation2 + $0x8] sm:$0xff]
        %v1290 = vld [vmem:[#allocation2 + $0x10] sm:$0xff]
        %v1291 = vld [vmem:[#allocation2 + $0x18] sm:$0xff]
        %v1292 = vld [vmem:[%s2] sm:$0xf]
        %v1294 = vlaneseq
        %v1295 = vshrl.u32 %v1294, 7
        %v1296 = vsub.s32 0, %v1295
        %v1297 = vrot.slane %v1292, %v1296
        %v1298 = vlaneseq
        %v1299 = vshrl.u32 %v1298, 7
        %v1300 = vsub.s32 1, %v1299
        %v1301 = vrot.slane %v1292, %v1300
        %v1302 = vlaneseq
        %v1303 = vshrl.u32 %v1302, 7
        %v1304 = vsub.s32 2, %v1303
        %v1305 = vrot.slane %v1292, %v1304
        %v1306 = vlaneseq
        %v1307 = vshrl.u32 %v1306, 7
        %v1308 = vsub.s32 3, %v1307
        %v1309 = vrot.slane %v1292, %v1308
        %v1314 = vadd.f32 %v1288, %v1297
        %v1315 = vadd.f32 %v1289, %v1301
        %v1316 = vadd.f32 %v1290, %v1305
        %v1317 = vadd.f32 %v1291, %v1309
        %v1318 = vmax.f32 %v1314, 0.0
        %v1319 = vmax.f32 %v1315, 0.0
        %v1320 = vmax.f32 %v1316, 0.0
        %v1321 = vmax.f32 %v1317, 0.0
        %1322 = vst [vmem:[%s311] sm:$0xff] %v1318
        %1323 = vst [vmem:[%s311 + $0x8] sm:$0xff] %v1319
        %1324 = vst [vmem:[%s311 + $0x10] sm:$0xff] %v1320
        %1325 = vst [vmem:[%s311 + $0x18] sm:$0xff] %v1321
        %v1326 = vld [vmem:[%s3] sm:$0xff]
        %v1327 = vld [vmem:[%s3 + $0x8] sm:$0xff]
        %v1328 = vld [vmem:[%s3 + $0x10] sm:$0xff]
        %v1329 = vld [vmem:[%s3 + $0x18] sm:$0xff]
        %v1330 = vld [vmem:[%s3 + $0x20] sm:$0xff]
        %v1331 = vld [vmem:[%s3 + $0x28] sm:$0xff]
        %v1332 = vld [vmem:[%s3 + $0x30] sm:$0xff]
        %v1333 = vld [vmem:[%s3 + $0x38] sm:$0xff]
        %v1334 = vld [vmem:[%s3 + $0x40] sm:$0xff]
        %v1335 = vld [vmem:[%s3 + $0x48] sm:$0xff]
        %v1336 = vld [vmem:[%s3 + $0x50] sm:$0xff]
        %v1337 = vld [vmem:[%s3 + $0x58] sm:$0xff]
        %v1338 = vld [vmem:[%s3 + $0x60] sm:$0xff]
        %v1339 = vld [vmem:[%s3 + $0x68] sm:$0xff]
        %v1340 = vld [vmem:[%s3 + $0x70] sm:$0xff]
        %v1341 = vld [vmem:[%s3 + $0x78] sm:$0xff]
        %v1342 = vld [vmem:[%s3 + $0x80] sm:$0xff]
        %v1343 = vld [vmem:[%s3 + $0x88] sm:$0xff]
        %v1344 = vld [vmem:[%s3 + $0x90] sm:$0xff]
        %v1345 = vld [vmem:[%s3 + $0x98] sm:$0xff]
        %v1346 = vld [vmem:[%s3 + $0xa0] sm:$0xff]
        %v1347 = vld [vmem:[%s3 + $0xa8] sm:$0xff]
        %v1348 = vld [vmem:[%s3 + $0xb0] sm:$0xff]
        %v1349 = vld [vmem:[%s3 + $0xb8] sm:$0xff]
        %v1350 = vld [vmem:[%s3 + $0xc0] sm:$0xff]
        %v1351 = vld [vmem:[%s3 + $0xc8] sm:$0xff]
        %v1352 = vld [vmem:[%s3 + $0xd0] sm:$0xff]
        %v1353 = vld [vmem:[%s3 + $0xd8] sm:$0xff]
        %v1354 = vld [vmem:[%s3 + $0xe0] sm:$0xff]
        %v1355 = vld [vmem:[%s3 + $0xe8] sm:$0xff]
        %v1356 = vld [vmem:[%s3 + $0xf0] sm:$0xff]
        %v1357 = vld [vmem:[%s3 + $0xf8] sm:$0xff]
        %v1358 = vld [vmem:[%s3 + $0x100] sm:$0xff]
        %v1359 = vld [vmem:[%s3 + $0x108] sm:$0xff]
        %v1360 = vld [vmem:[%s3 + $0x110] sm:$0xff]
        %v1361 = vld [vmem:[%s3 + $0x118] sm:$0xff]
        %v1362 = vld [vmem:[%s3 + $0x120] sm:$0xff]
        %v1363 = vld [vmem:[%s3 + $0x128] sm:$0xff]
        %v1364 = vld [vmem:[%s3 + $0x130] sm:$0xff]
        %v1365 = vld [vmem:[%s3 + $0x138] sm:$0xff]
        %v1366 = vld [vmem:[%s3 + $0x140] sm:$0xff]
        %v1367 = vld [vmem:[%s3 + $0x148] sm:$0xff]
        %v1368 = vld [vmem:[%s3 + $0x150] sm:$0xff]
        %v1369 = vld [vmem:[%s3 + $0x158] sm:$0xff]
        %v1370 = vld [vmem:[%s3 + $0x160] sm:$0xff]
        %v1371 = vld [vmem:[%s3 + $0x168] sm:$0xff]
        %v1372 = vld [vmem:[%s3 + $0x170] sm:$0xff]
        %v1373 = vld [vmem:[%s3 + $0x178] sm:$0xff]
        %v1374 = vld [vmem:[%s3 + $0x180] sm:$0xff]
        %v1375 = vld [vmem:[%s3 + $0x188] sm:$0xff]
        %v1376 = vld [vmem:[%s3 + $0x190] sm:$0xff]
        %v1377 = vld [vmem:[%s3 + $0x198] sm:$0xff]
        %v1378 = vld [vmem:[%s3 + $0x1a0] sm:$0xff]
        %v1379 = vld [vmem:[%s3 + $0x1a8] sm:$0xff]
        %v1380 = vld [vmem:[%s3 + $0x1b0] sm:$0xff]
        %v1381 = vld [vmem:[%s3 + $0x1b8] sm:$0xff]
        %v1382 = vld [vmem:[%s3 + $0x1c0] sm:$0xff]
        %v1383 = vld [vmem:[%s3 + $0x1c8] sm:$0xff]
        %v1384 = vld [vmem:[%s3 + $0x1d0] sm:$0xff]
        %v1385 = vld [vmem:[%s3 + $0x1d8] sm:$0xff]
        %v1386 = vld [vmem:[%s3 + $0x1e0] sm:$0xff]
        %v1387 = vld [vmem:[%s3 + $0x1e8] sm:$0xff]
        %v1388 = vld [vmem:[%s3 + $0x1f0] sm:$0xff]
        %v1389 = vld [vmem:[%s3 + $0x1f8] sm:$0xff]
        %v1390 = vld [vmem:[%s4] sm:$0x1]
        %v1392 = vlaneseq
        %v1393 = vshrl.u32 %v1392, 7
        %v1394 = vsub.s32 0, %v1393
        %v1395 = vrot.slane %v1390, %v1394
        %1397 = vmatprep.subr.mxu0 0.0
        %1398 = vmatpush1.msra.mxu0 %v1326
        %1399 = vmatprep.subr.mxu0 0.0
        %1400 = vmatpush1.msra.mxu0 %v1327
        %1401 = vmatprep.subr.mxu0 0.0
        %1402 = vmatpush1.msra.mxu0 %v1328
        %1403 = vmatprep.subr.mxu0 0.0
        %1404 = vmatpush1.msra.mxu0 %v1329
        %1405 = vmatprep.subr.mxu0 0.0
        %1406 = vmatpush1.msra.mxu0 %v1330
        %1407 = vmatprep.subr.mxu0 0.0
        %1408 = vmatpush1.msra.mxu0 %v1331
        %1409 = vmatprep.subr.mxu0 0.0
        %1410 = vmatpush1.msra.mxu0 %v1332
        %1411 = vmatprep.subr.mxu0 0.0
        %1412 = vmatpush1.msra.mxu0 %v1333
        %1413 = vmatprep.subr.mxu0 0.0
        %1414 = vmatpush1.msra.mxu0 %v1334
        %1415 = vmatprep.subr.mxu0 0.0
        %1416 = vmatpush1.msra.mxu0 %v1335
        %1417 = vmatprep.subr.mxu0 0.0
        %1418 = vmatpush1.msra.mxu0 %v1336
        %1419 = vmatprep.subr.mxu0 0.0
        %1420 = vmatpush1.msra.mxu0 %v1337
        %1421 = vmatprep.subr.mxu0 0.0
        %1422 = vmatpush1.msra.mxu0 %v1338
        %1423 = vmatprep.subr.mxu0 0.0
        %1424 = vmatpush1.msra.mxu0 %v1339
        %1425 = vmatprep.subr.mxu0 0.0
        %1426 = vmatpush1.msra.mxu0 %v1340
        %1427 = vmatprep.subr.mxu0 0.0
        %1428 = vmatpush1.msra.mxu0 %v1341
        %1429 = vmatprep.subr.mxu0 0.0
        %1430 = vmatpush1.msra.mxu0 %v1342
        %1431 = vmatprep.subr.mxu0 0.0
        %1432 = vmatpush1.msra.mxu0 %v1343
        %1433 = vmatprep.subr.mxu0 0.0
        %1434 = vmatpush1.msra.mxu0 %v1344
        %1435 = vmatprep.subr.mxu0 0.0
        %1436 = vmatpush1.msra.mxu0 %v1345
        %1437 = vmatprep.subr.mxu0 0.0
        %1438 = vmatpush1.msra.mxu0 %v1346
        %1439 = vmatprep.subr.mxu0 0.0
        %1440 = vmatpush1.msra.mxu0 %v1347
        %1441 = vmatprep.subr.mxu0 0.0
        %1442 = vmatpush1.msra.mxu0 %v1348
        %1443 = vmatprep.subr.mxu0 0.0
        %1444 = vmatpush1.msra.mxu0 %v1349
        %1445 = vmatprep.subr.mxu0 0.0
        %1446 = vmatpush1.msra.mxu0 %v1350
        %1447 = vmatprep.subr.mxu0 0.0
        %1448 = vmatpush1.msra.mxu0 %v1351
        %1449 = vmatprep.subr.mxu0 0.0
        %1450 = vmatpush1.msra.mxu0 %v1352
        %1451 = vmatprep.subr.mxu0 0.0
        %1452 = vmatpush1.msra.mxu0 %v1353
        %1453 = vmatprep.subr.mxu0 0.0
        %1454 = vmatpush1.msra.mxu0 %v1354
        %1455 = vmatprep.subr.mxu0 0.0
        %1456 = vmatpush1.msra.mxu0 %v1355
        %1457 = vmatprep.subr.mxu0 0.0
        %1458 = vmatpush1.msra.mxu0 %v1356
        %1459 = vmatprep.subr.mxu0 0.0
        %1460 = vmatpush1.msra.mxu0 %v1357
        %1461 = vmatprep.mubr.f32.mxu0 %v1319
        %1462 = vmatmul.mubr.f32.gmra.mrb[0].mxu0 %v1318
        %v1463 = vpop.f32.mrb[0].mxu0
        %v1464 = vadd.f32 %v1395, %v1463
        %v1465 = vpop.f32.mrb[0].mxu0
        %1466 = vdwg.mxu0
        %1467 = vmatprep.subr.mxu0 0.0
        %1468 = vmatpush1.msra.mxu0 %v1358
        %1469 = vmatprep.subr.mxu0 0.0
        %1470 = vmatpush1.msra.mxu0 %v1359
        %1471 = vmatprep.subr.mxu0 0.0
        %1472 = vmatpush1.msra.mxu0 %v1360
        %1473 = vmatprep.subr.mxu0 0.0
        %1474 = vmatpush1.msra.mxu0 %v1361
        %1475 = vmatprep.subr.mxu0 0.0
        %1476 = vmatpush1.msra.mxu0 %v1362
        %1477 = vmatprep.subr.mxu0 0.0
        %1478 = vmatpush1.msra.mxu0 %v1363
        %1479 = vmatprep.subr.mxu0 0.0
        %1480 = vmatpush1.msra.mxu0 %v1364
        %1481 = vmatprep.subr.mxu0 0.0
        %1482 = vmatpush1.msra.mxu0 %v1365
        %1483 = vmatprep.subr.mxu0 0.0
        %1484 = vmatpush1.msra.mxu0 %v1366
        %1485 = vmatprep.subr.mxu0 0.0
        %1486 = vmatpush1.msra.mxu0 %v1367
        %1487 = vmatprep.subr.mxu0 0.0
        %1488 = vmatpush1.msra.mxu0 %v1368
        %1489 = vmatprep.subr.mxu0 0.0
        %1490 = vmatpush1.msra.mxu0 %v1369
        %1491 = vmatprep.subr.mxu0 0.0
        %1492 = vmatpush1.msra.mxu0 %v1370
        %1493 = vmatprep.subr.mxu0 0.0
        %1494 = vmatpush1.msra.mxu0 %v1371
        %1495 = vmatprep.subr.mxu0 0.0
        %1496 = vmatpush1.msra.mxu0 %v1372
        %1497 = vmatprep.subr.mxu0 0.0
        %1498 = vmatpush1.msra.mxu0 %v1373
        %1499 = vmatprep.subr.mxu0 0.0
        %1500 = vmatpush1.msra.mxu0 %v1374
        %1501 = vmatprep.subr.mxu0 0.0
        %1502 = vmatpush1.msra.mxu0 %v1375
        %1503 = vmatprep.subr.mxu0 0.0
        %1504 = vmatpush1.msra.mxu0 %v1376
        %1505 = vmatprep.subr.mxu0 0.0
        %1506 = vmatpush1.msra.mxu0 %v1377
        %1507 = vmatprep.subr.mxu0 0.0
        %1508 = vmatpush1.msra.mxu0 %v1378
        %1509 = vmatprep.subr.mxu0 0.0
        %1510 = vmatpush1.msra.mxu0 %v1379
        %1511 = vmatprep.subr.mxu0 0.0
        %1512 = vmatpush1.msra.mxu0 %v1380
        %1513 = vmatprep.subr.mxu0 0.0
        %1514 = vmatpush1.msra.mxu0 %v1381
        %1515 = vmatprep.subr.mxu0 0.0
        %1516 = vmatpush1.msra.mxu0 %v1382
        %1517 = vmatprep.subr.mxu0 0.0
        %1518 = vmatpush1.msra.mxu0 %v1383
        %1519 = vmatprep.subr.mxu0 0.0
        %1520 = vmatpush1.msra.mxu0 %v1384
        %1521 = vmatprep.subr.mxu0 0.0
        %1522 = vmatpush1.msra.mxu0 %v1385
        %1523 = vmatprep.subr.mxu0 0.0
        %1524 = vmatpush1.msra.mxu0 %v1386
        %1525 = vmatprep.subr.mxu0 0.0
        %1526 = vmatpush1.msra.mxu0 %v1387
        %1527 = vmatprep.subr.mxu0 0.0
        %1528 = vmatpush1.msra.mxu0 %v1388
        %1529 = vmatprep.subr.mxu0 0.0
        %1530 = vmatpush1.msra.mxu0 %v1389
        %1531 = vmatprep.mubr.f32.mxu0 %v1321
        %1532 = vmatmul.mubr.f32.gmra.mrb[0].mxu0 %v1320
        %v1533 = vpop.f32.mrb[0].mxu0
        %v1534 = vadd.f32 %v1464, %v1533
        %v1535 = vpop.f32.mrb[0].mxu0
        %1536 = vdwg.mxu0
        %1537 = vst [vmem:[%s315] sm:$0xff] %v1534
      $region48: #{cnn_base_forward.7} parent=39 // pred_fallthru
        _
      %p1538 = scmp.lt.s32.totalorder %s22, 0
      %s1539 = scalar_select %p1538, %s22, 0
      %s1540 = smul.addr %s1539, 4
      %s1541 = smul.addr %s1540, 8
      %s1542 = scalar_lea.vmem %s5, %s1541
      %p1543 = scmp.lt.s32.totalorder %s22, 0
      %s1544 = scalar_select %p1543, %s22, 0
      %s1545 = smul.addr %s1544, 8
      %s1546 = scalar_lea.vmem %s6, %s1545
      // Predicated region
      $region49: #{cnn_base_forward.7} parent=39 // pred_check
        %p1547 = pneg %p165
      $region50: #{cnn_base_forward.7} parent=39 // pred_check_branch
        %1549 = sbr.rel (%p1547) target = $region52
      $region51: #{cnn_base_forward.7} parent=39 // pred_region
        _
      $region52: #{cnn_base_forward.7} parent=39 // pred_fallthru
        _
      // Predicated region
      $region53: #{cnn_base_forward.7} parent=39 // pred_check
        %p1550 = pneg %p191
      $region54: #{cnn_base_forward.7} parent=39 // pred_check_branch
        %1552 = sbr.rel (%p1550) target = $region56
      $region55: #{cnn_base_forward.7} parent=39 // pred_region
        _
      $region56: #{cnn_base_forward.7} parent=39 // pred_fallthru
        _
      // Predicated region
      $region57: #{cnn_base_forward.7} parent=39 // pred_check
        %p1553 = pneg %p165
      $region58: #{cnn_base_forward.7} parent=39 // pred_check_branch
        %1555 = sbr.rel (%p1553) target = $region60
      $region59: #{cnn_base_forward.7} parent=39 // pred_region
        %p1556 = scmp.lt.s32.totalorder %s22, 0
        %s1557 = scalar_select %p1556, %s22, 0
        %s1558 = smul.addr %s1557, 4
        %s1559 = smul.addr %s1558, 8
        %s1560 = scalar_lea.vmem %s5, %s1559
      $region60: #{cnn_base_forward.7} parent=39 // pred_fallthru
        _
      // Predicated region
      $region61: #{cnn_base_forward.7} parent=39 // pred_check
        %p1561 = pneg %p191
      $region62: #{cnn_base_forward.7} parent=39 // pred_check_branch
        %1563 = sbr.rel (%p1561) target = $region64
      $region63: #{cnn_base_forward.7} parent=39 // pred_region
        %p1564 = scmp.lt.s32.totalorder %s22, 0
        %s1565 = scalar_select %p1564, %s22, 0
        %s1566 = smul.addr %s1565, 8
        %s1567 = scalar_lea.vmem %s6, %s1566
      $region64: #{cnn_base_forward.7} parent=39 // pred_fallthru
        _
    $region40: #{cnn_base_forward.7} parent=5 // pred_fallthru
      _
    %p1568 = scmp.le.s32.totalorder 2, %s13
    // Predicated region
    $region65: #{cnn_base_forward.7} parent=5 // pred_check
      %p1569 = pneg %p1568
    $region66: #{cnn_base_forward.7} parent=5 // pred_check_branch
      %1571 = sbr.rel (%p1569) target = $region68
    $region67: #{cnn_base_forward.7} parent=5 // pred_region
      %s1572 = ssub.s32 %s13, 2
    $region68: #{cnn_base_forward.7} parent=5 // pred_fallthru
      _
  $region6: #{cnn_base_forward.7} parent=0 // loop_footer
    %s17 = sadd.s32 1, %s13
  $region7: #{cnn_base_forward.7} parent=0 // loop_footer_branch
    %12 = sbr.rel target = $region3
  $region8: #{cnn_base_forward.7} parent=0 // loop_exit
    _

</llo_original>
